<compile_context>
chip_gen: v7x
topology: tpu7x:2x2x1
jax: 0.10.0
libtpu: 0.0.40
codegen_flags: <defaults>
</compile_context>

<pallas_src>
import functools

import jax
import jax.numpy as jnp
from jax import lax
from jax.experimental import pallas as pl
from jax.experimental.pallas import tpu as pltpu


def _csdn_kernel(xb_ref, wc_ref, bc_ref, out_ref):
    """Fused depthwise-3x3 + pointwise-1x1 conv for one (batch, row-band) tile.

    xb_ref : (TH+2, W+2, Cin)  zero-padded NHWC input band (1-row/col halo)
    wc_ref : (9*Cin, Cout)     combined weights, row index = k*Cin + c
    bc_ref : (1, Cout)         combined bias  (b_dw @ w_pw + b_pw)
    out_ref: (TH, W, Cout)
    """
    TH, W, Cout = out_ref.shape
    Cin = xb_ref.shape[-1]

    x = xb_ref[...]          # (TH+2, W+2, Cin)
    wc = wc_ref[...]         # (9*Cin, Cout), f32 or bf16

    # Bias folded into the accumulator init (hoisted broadcast, not in loop).
    acc = jnp.broadcast_to(bc_ref[...], (TH * W, Cout)).astype(jnp.float32)

    # 9 shifted MXU matmuls accumulated in f32 (MXU does the channel
    # contraction; no VPU broadcast-mul-add passes).
    for kh in range(3):
        for kw in range(3):
            k = kh * 3 + kw
            xs = x[kh:kh + TH, kw:kw + W, :].reshape(TH * W, Cin)
            xs = xs.astype(wc.dtype)          # bf16 MXU path when weights are bf16
            acc = acc + jnp.dot(xs, wc[k * Cin:(k + 1) * Cin, :],
                                preferred_element_type=jnp.float32)

    out_ref[...] = acc.reshape(TH, W, Cout).astype(out_ref.dtype)


def _pick_tile_h(H, W, Cin, Cout, budget_bytes=24 << 20):
    """Largest row-band height whose pipelined working set fits `budget_bytes`.

    Budget is set for the smallest per-generation VMEM (v7x: 64 MiB physical,
    32 MiB default scoped); v5e/v6e have more headroom.
    """
    def need(th):
        in_band = (th + 2) * (W + 2) * Cin * 4
        out_band = th * W * Cout * 4
        wts = (9 * Cin * Cout + Cout) * 4
        # 2x double-buffered in/out blocks + in-kernel shifted-slice / acc temps.
        return 2 * (in_band + out_band) + 3 * in_band + 4 * out_band + 2 * wts

    th = min(H, 512)
    while th > 8 and need(th) > budget_bytes:
        th = max(8, (th + 1) // 2)
    return max(1, min(th, H))


def csdn_tem_forward(x_nchw, w_dw, b_dw, w_pw, b_pw, *, tile_h=None,
                     use_bf16=False):
    """Pallas implementation of CSDN_Tem.forward (kernel=3, stride=1, pad=1).

    x_nchw : (N, Cin, H, W)    float32
    w_dw   : (Cin, 1, 3, 3)    depthwise conv weight (PyTorch layout)
    b_dw   : (Cin,)
    w_pw   : (Cout, Cin, 1, 1) pointwise conv weight
    b_pw   : (Cout,)
    returns: (N, Cout, H, W)   float32
    """
    N, Cin, H, W = x_nchw.shape
    Cout = w_pw.shape[0]
    Wp = W + 2

    # ---- fold depthwise + pointwise into one combined weight / bias --------
    # out[o] = sum_{k,c} x_shift_k[c] * w_dw[k,c] * w_pw[c,o]
    #          + (b_dw @ w_pw + b_pw)[o]
    wdw = jnp.transpose(w_dw.reshape(Cin, 9), (1, 0))            # (9, Cin)
    wpw = jnp.transpose(w_pw.reshape(Cout, Cin), (1, 0))         # (Cin, Cout)
    w_comb = (wdw[:, :, None] * wpw[None, :, :]).reshape(9 * Cin, Cout)
    b_comb = (b_dw[None, :] @ wpw + b_pw[None, :]).astype(jnp.float32)
    if use_bf16:
        w_comb = w_comb.astype(jnp.bfloat16)                     # v6e/v7x MXU rate

    # ---- spatial row-band tiling with 1-row halo ----------------------------
    TH = _pick_tile_h(H, W, Cin, Cout) if tile_h is None else int(tile_h)
    nH = pl.cdiv(H, TH)
    Hp = nH * TH

    # Transpose to NHWC + conv zero-padding + overlapping halo-band extraction,
    # done as one fused XLA copy (overlapping windows cannot be expressed by a
    # plain Blocked index_map).
    # TODO(synk): absorb this copy into the kernel via manual halo DMA
    # (memory_space=pl.ANY + pltpu.make_async_copy) to save one HBM round trip.
    x_nhwc = jnp.transpose(x_nchw, (0, 2, 3, 1))                 # (N, H, W, Cin)
    xpad = jnp.pad(x_nhwc, ((0, 0), (1, 1 + Hp - H), (1, 1), (0, 0)))
    xb = jnp.stack([xpad[:, i * TH:i * TH + TH + 2] for i in range(nH)],
                   axis=1)                                       # (N, nH, TH+2, Wp, Cin)

    flops = 2 * N * Hp * W * (9 * Cin) * Cout
    bytes_accessed = (4 * (xb.size + N * Hp * W * Cout)
                      + w_comb.size * w_comb.dtype.itemsize)

    in_band = (TH + 2) * Wp * Cin * 4
    out_band = TH * W * Cout * 4
    vmem_need = (2 * (in_band + out_band) + 3 * in_band + 4 * out_band
                 + (9 * Cin * Cout + Cout) * 8)
    vmem_limit = int(min(max(2 * vmem_need, 32 << 20), 56 << 20))

    out_b = pl.pallas_call(
        _csdn_kernel,
        out_shape=jax.ShapeDtypeStruct((N, nH, TH, W, Cout), jnp.float32),
        grid_spec=pltpu.PrefetchScalarGridSpec(
            num_scalar_prefetch=0,
            grid=(N, nH),
            in_specs=[
                pl.BlockSpec((None, None, TH + 2, Wp, Cin),
                             lambda n, i: (n, i, 0, 0, 0)),
                pl.BlockSpec((9 * Cin, Cout), lambda n, i: (0, 0)),
                pl.BlockSpec((1, Cout), lambda n, i: (0, 0)),
            ],
            out_specs=pl.BlockSpec((None, None, TH, W, Cout),
                                   lambda n, i: (n, i, 0, 0, 0)),
        ),
        compiler_params=pltpu.CompilerParams(
            dimension_semantics=("parallel", "parallel"),
            vmem_limit_bytes=vmem_limit),
        cost_estimate=pl.CostEstimate(
            flops=int(flops), transcendentals=0,
            bytes_accessed=int(bytes_accessed)),
    )(xb, w_comb, b_comb)

    out_nhwc = out_b.reshape(N, Hp, W, Cout)[:, :H]              # drop pad rows
    return jnp.transpose(out_nhwc, (0, 3, 1, 2))                 # back to NCHW


def _reference_forward(x_nchw, w_dw, b_dw, w_pw, b_pw):
    """Pure-JAX reference (XLA convs) for correctness checking."""
    Cin = x_nchw.shape[1]
    dn = ("NCHW", "OIHW", "NCHW")
    dw = lax.conv_general_dilated(
        x_nchw, w_dw, window_strides=(1, 1), padding=((1, 1), (1, 1)),
        dimension_numbers=dn, feature_group_count=Cin)
    dw = dw + b_dw[None, :, None, None]
    pw = lax.conv_general_dilated(
        dw, w_pw, window_strides=(1, 1), padding="VALID",
        dimension_numbers=dn)
    return pw + b_pw[None, :, None, None]


if __name__ == "__main__":
    # Small deterministic setup: batch=2, in_ch=4, out_ch=8, spatial=16.
    N, Cin, Cout, H, W = 2, 4, 8, 16, 16

    key = jax.random.PRNGKey(0)
    k_x, k_wd, k_bd, k_wp, k_bp = jax.random.split(key, 5)

    x = jax.random.normal(k_x, (N, Cin, H, W), dtype=jnp.float32)
    w_dw = jax.random.normal(k_wd, (Cin, 1, 3, 3), dtype=jnp.float32) * 0.1
    b_dw = jax.random.normal(k_bd, (Cin,), dtype=jnp.float32) * 0.1
    w_pw = jax.random.normal(k_wp, (Cout, Cin, 1, 1), dtype=jnp.float32) * 0.1
    b_pw = jax.random.normal(k_bp, (Cout,), dtype=jnp.float32) * 0.1

    ref = _reference_forward(x, w_dw, b_dw, w_pw, b_pw)

    # f32 path, default tile chooser (single band per image at H=16).
    out = jax.block_until_ready(
        jax.jit(csdn_tem_forward)(x, w_dw, b_dw, w_pw, b_pw))
    assert out.shape == (N, Cout, H, W), out.shape
    assert jnp.allclose(out, ref, rtol=1e-4, atol=1e-4), float(
        jnp.max(jnp.abs(out - ref)))

    # f32 path, multi-band halo tiling (exercises the grid=(N, nH) pipeline).
    out_t = jax.block_until_ready(
        jax.jit(functools.partial(csdn_tem_forward, tile_h=8))(
            x, w_dw, b_dw, w_pw, b_pw))
    assert jnp.allclose(out_t, ref, rtol=1e-4, atol=1e-4), float(
        jnp.max(jnp.abs(out_t - ref)))

    # bf16 MXU path (v6e/v7x fast matmul); looser tolerance for bf16 rounding.
    out_h = jax.block_until_ready(
        jax.jit(functools.partial(csdn_tem_forward, use_bf16=True))(
            x, w_dw, b_dw, w_pw, b_pw))
    assert jnp.allclose(out_h, ref, rtol=2e-2, atol=2e-2), float(
        jnp.max(jnp.abs(out_h - ref)))

    print("KERNEL_OK")
</pallas_src>

<mosaic_0001>
module attributes {stable_mosaic.version = 11 : i64} {
  func.func @_csdn_kernel(%arg0: i32, %arg1: i32, %arg2: memref<1x1x18x18x4xf32, #tpu.memory_space<vmem>>, %arg3: memref<36x8xf32, #tpu.memory_space<vmem>>, %arg4: memref<1x8xf32, #tpu.memory_space<vmem>>, %arg5: memref<1x1x16x16x8xf32, #tpu.memory_space<vmem>>) attributes {dimension_semantics = [#tpu.dimension_semantics<parallel>, #tpu.dimension_semantics<parallel>], iteration_bounds = array<i64: 2, 1>, scalar_prefetch = 0 : i64, scratch_operands = 0 : i64, tpu.core_type = #tpu.core_type<tc>, window_params = [{transform_indices = @transform_0, window_bounds = array<i64: 1, 1, 18, 18, 4>}, {pipeline_mode = #tpu.pipeline_mode<synchronous>, transform_indices = @transform_1, window_bounds = array<i64: 36, 8>}, {pipeline_mode = #tpu.pipeline_mode<synchronous>, transform_indices = @transform_2, window_bounds = array<i64: 1, 8>}, {transform_indices = @transform_3, window_bounds = array<i64: 1, 1, 16, 16, 8>}]} {
    %c0 = arith.constant 0 : index
    %c0_0 = arith.constant 0 : index
    %c0_1 = arith.constant 0 : index
    %c0_2 = arith.constant 0 : index
    %c0_3 = arith.constant 0 : index
    %0 = vector.load %arg2[%c0, %c0_0, %c0_1, %c0_2, %c0_3] : memref<1x1x18x18x4xf32, #tpu.memory_space<vmem>>, vector<1x1x18x18x4xf32>
    %1 = vector.shape_cast %0 : vector<1x1x18x18x4xf32> to vector<18x18x4xf32>
    %c0_4 = arith.constant 0 : index
    %c0_5 = arith.constant 0 : index
    %2 = vector.load %arg3[%c0_4, %c0_5] : memref<36x8xf32, #tpu.memory_space<vmem>>, vector<36x8xf32>
    %c0_6 = arith.constant 0 : index
    %c0_7 = arith.constant 0 : index
    %3 = vector.load %arg4[%c0_6, %c0_7] : memref<1x8xf32, #tpu.memory_space<vmem>>, vector<1x8xf32>
    %4 = vector.shape_cast %3 : vector<1x8xf32> to vector<1x8xf32>
    %5 = vector.broadcast %4 : vector<1x8xf32> to vector<256x8xf32>
    %6 = vector.extract_strided_slice %1 {offsets = [0, 0, 0], sizes = [16, 16, 4], strides = [1, 1, 1]} : vector<18x18x4xf32> to vector<16x16x4xf32>
    %7 = vector.shape_cast %6 : vector<16x16x4xf32> to vector<256x4xf32>
    %8 = vector.extract_strided_slice %2 {offsets = [0, 0], sizes = [4, 8], strides = [1, 1]} : vector<36x8xf32> to vector<4x8xf32>
    %cst = arith.constant dense<0.000000e+00> : vector<256x8xf32>
    %9 = tpu.matmul %7, %8, %cst {dimension_numbers = #tpu.dot_dimension_numbers<[1], [0], [0], [1], [0, 0, 1, 1], [], []>} : vector<256x4xf32>, vector<4x8xf32>, vector<256x8xf32> -> vector<256x8xf32>
    %10 = arith.addf %5, %9 : vector<256x8xf32>
    %11 = vector.extract_strided_slice %1 {offsets = [0, 1, 0], sizes = [16, 16, 4], strides = [1, 1, 1]} : vector<18x18x4xf32> to vector<16x16x4xf32>
    %12 = vector.shape_cast %11 : vector<16x16x4xf32> to vector<256x4xf32>
    %13 = vector.extract_strided_slice %2 {offsets = [4, 0], sizes = [4, 8], strides = [1, 1]} : vector<36x8xf32> to vector<4x8xf32>
    %cst_8 = arith.constant dense<0.000000e+00> : vector<256x8xf32>
    %14 = tpu.matmul %12, %13, %cst_8 {dimension_numbers = #tpu.dot_dimension_numbers<[1], [0], [0], [1], [0, 0, 1, 1], [], []>} : vector<256x4xf32>, vector<4x8xf32>, vector<256x8xf32> -> vector<256x8xf32>
    %15 = arith.addf %10, %14 : vector<256x8xf32>
    %16 = vector.extract_strided_slice %1 {offsets = [0, 2, 0], sizes = [16, 16, 4], strides = [1, 1, 1]} : vector<18x18x4xf32> to vector<16x16x4xf32>
    %17 = vector.shape_cast %16 : vector<16x16x4xf32> to vector<256x4xf32>
    %18 = vector.extract_strided_slice %2 {offsets = [8, 0], sizes = [4, 8], strides = [1, 1]} : vector<36x8xf32> to vector<4x8xf32>
    %cst_9 = arith.constant dense<0.000000e+00> : vector<256x8xf32>
    %19 = tpu.matmul %17, %18, %cst_9 {dimension_numbers = #tpu.dot_dimension_numbers<[1], [0], [0], [1], [0, 0, 1, 1], [], []>} : vector<256x4xf32>, vector<4x8xf32>, vector<256x8xf32> -> vector<256x8xf32>
    %20 = arith.addf %15, %19 : vector<256x8xf32>
    %21 = vector.extract_strided_slice %1 {offsets = [1, 0, 0], sizes = [16, 16, 4], strides = [1, 1, 1]} : vector<18x18x4xf32> to vector<16x16x4xf32>
    %22 = vector.shape_cast %21 : vector<16x16x4xf32> to vector<256x4xf32>
    %23 = vector.extract_strided_slice %2 {offsets = [12, 0], sizes = [4, 8], strides = [1, 1]} : vector<36x8xf32> to vector<4x8xf32>
    %cst_10 = arith.constant dense<0.000000e+00> : vector<256x8xf32>
    %24 = tpu.matmul %22, %23, %cst_10 {dimension_numbers = #tpu.dot_dimension_numbers<[1], [0], [0], [1], [0, 0, 1, 1], [], []>} : vector<256x4xf32>, vector<4x8xf32>, vector<256x8xf32> -> vector<256x8xf32>
    %25 = arith.addf %20, %24 : vector<256x8xf32>
    %26 = vector.extract_strided_slice %1 {offsets = [1, 1, 0], sizes = [16, 16, 4], strides = [1, 1, 1]} : vector<18x18x4xf32> to vector<16x16x4xf32>
    %27 = vector.shape_cast %26 : vector<16x16x4xf32> to vector<256x4xf32>
    %28 = vector.extract_strided_slice %2 {offsets = [16, 0], sizes = [4, 8], strides = [1, 1]} : vector<36x8xf32> to vector<4x8xf32>
    %cst_11 = arith.constant dense<0.000000e+00> : vector<256x8xf32>
    %29 = tpu.matmul %27, %28, %cst_11 {dimension_numbers = #tpu.dot_dimension_numbers<[1], [0], [0], [1], [0, 0, 1, 1], [], []>} : vector<256x4xf32>, vector<4x8xf32>, vector<256x8xf32> -> vector<256x8xf32>
    %30 = arith.addf %25, %29 : vector<256x8xf32>
    %31 = vector.extract_strided_slice %1 {offsets = [1, 2, 0], sizes = [16, 16, 4], strides = [1, 1, 1]} : vector<18x18x4xf32> to vector<16x16x4xf32>
    %32 = vector.shape_cast %31 : vector<16x16x4xf32> to vector<256x4xf32>
    %33 = vector.extract_strided_slice %2 {offsets = [20, 0], sizes = [4, 8], strides = [1, 1]} : vector<36x8xf32> to vector<4x8xf32>
    %cst_12 = arith.constant dense<0.000000e+00> : vector<256x8xf32>
    %34 = tpu.matmul %32, %33, %cst_12 {dimension_numbers = #tpu.dot_dimension_numbers<[1], [0], [0], [1], [0, 0, 1, 1], [], []>} : vector<256x4xf32>, vector<4x8xf32>, vector<256x8xf32> -> vector<256x8xf32>
    %35 = arith.addf %30, %34 : vector<256x8xf32>
    %36 = vector.extract_strided_slice %1 {offsets = [2, 0, 0], sizes = [16, 16, 4], strides = [1, 1, 1]} : vector<18x18x4xf32> to vector<16x16x4xf32>
    %37 = vector.shape_cast %36 : vector<16x16x4xf32> to vector<256x4xf32>
    %38 = vector.extract_strided_slice %2 {offsets = [24, 0], sizes = [4, 8], strides = [1, 1]} : vector<36x8xf32> to vector<4x8xf32>
    %cst_13 = arith.constant dense<0.000000e+00> : vector<256x8xf32>
    %39 = tpu.matmul %37, %38, %cst_13 {dimension_numbers = #tpu.dot_dimension_numbers<[1], [0], [0], [1], [0, 0, 1, 1], [], []>} : vector<256x4xf32>, vector<4x8xf32>, vector<256x8xf32> -> vector<256x8xf32>
    %40 = arith.addf %35, %39 : vector<256x8xf32>
    %41 = vector.extract_strided_slice %1 {offsets = [2, 1, 0], sizes = [16, 16, 4], strides = [1, 1, 1]} : vector<18x18x4xf32> to vector<16x16x4xf32>
    %42 = vector.shape_cast %41 : vector<16x16x4xf32> to vector<256x4xf32>
    %43 = vector.extract_strided_slice %2 {offsets = [28, 0], sizes = [4, 8], strides = [1, 1]} : vector<36x8xf32> to vector<4x8xf32>
    %cst_14 = arith.constant dense<0.000000e+00> : vector<256x8xf32>
    %44 = tpu.matmul %42, %43, %cst_14 {dimension_numbers = #tpu.dot_dimension_numbers<[1], [0], [0], [1], [0, 0, 1, 1], [], []>} : vector<256x4xf32>, vector<4x8xf32>, vector<256x8xf32> -> vector<256x8xf32>
    %45 = arith.addf %40, %44 : vector<256x8xf32>
    %46 = vector.extract_strided_slice %1 {offsets = [2, 2, 0], sizes = [16, 16, 4], strides = [1, 1, 1]} : vector<18x18x4xf32> to vector<16x16x4xf32>
    %47 = vector.shape_cast %46 : vector<16x16x4xf32> to vector<256x4xf32>
    %48 = vector.extract_strided_slice %2 {offsets = [32, 0], sizes = [4, 8], strides = [1, 1]} : vector<36x8xf32> to vector<4x8xf32>
    %cst_15 = arith.constant dense<0.000000e+00> : vector<256x8xf32>
    %49 = tpu.matmul %47, %48, %cst_15 {dimension_numbers = #tpu.dot_dimension_numbers<[1], [0], [0], [1], [0, 0, 1, 1], [], []>} : vector<256x4xf32>, vector<4x8xf32>, vector<256x8xf32> -> vector<256x8xf32>
    %50 = arith.addf %45, %49 : vector<256x8xf32>
    %51 = vector.shape_cast %50 : vector<256x8xf32> to vector<16x16x8xf32>
    %c0_16 = arith.constant 0 : index
    %c0_17 = arith.constant 0 : index
    %c0_18 = arith.constant 0 : index
    %c0_19 = arith.constant 0 : index
    %c0_20 = arith.constant 0 : index
    %52 = vector.load %arg5[%c0_16, %c0_17, %c0_18, %c0_19, %c0_20] : memref<1x1x16x16x8xf32, #tpu.memory_space<vmem>>, vector<1x1x16x16x8xf32>
    %53 = vector.shape_cast %52 : vector<1x1x16x16x8xf32> to vector<16x16x8xf32>
    %54 = vector.shape_cast %51 : vector<16x16x8xf32> to vector<1x1x16x16x8xf32>
    tpu.vector_store %arg5[%c0_16, %c0_17, %c0_18, %c0_19, %c0_20], %54 {strides = array<i32>} : memref<1x1x16x16x8xf32, #tpu.memory_space<vmem>>, vector<1x1x16x16x8xf32>,
    return
  }
  func.func @transform_0(%arg0: i32, %arg1: i32) -> (i32, i32, i32, i32, i32) {
    %c0_i32 = arith.constant 0 : i32
    %c0_i32_0 = arith.constant 0 : i32
    %c0_i32_1 = arith.constant 0 : i32
    %c0_i32_2 = arith.constant 0 : i32
    return %arg0, %arg1, %c0_i32, %c0_i32_0, %c0_i32_1 : i32, i32, i32, i32, i32
  }
  func.func @transform_1(%arg0: i32, %arg1: i32) -> (i32, i32) {
    %c0_i32 = arith.constant 0 : i32
    %c0_i32_0 = arith.constant 0 : i32
    %c0_i32_1 = arith.constant 0 : i32
    return %c0_i32, %c0_i32_0 : i32, i32
  }
  func.func @transform_2(%arg0: i32, %arg1: i32) -> (i32, i32) {
    %c0_i32 = arith.constant 0 : i32
    %c0_i32_0 = arith.constant 0 : i32
    %c0_i32_1 = arith.constant 0 : i32
    return %c0_i32, %c0_i32_0 : i32, i32
  }
  func.func @transform_3(%arg0: i32, %arg1: i32) -> (i32, i32, i32, i32, i32) {
    %c0_i32 = arith.constant 0 : i32
    %c0_i32_0 = arith.constant 0 : i32
    %c0_i32_1 = arith.constant 0 : i32
    %c0_i32_2 = arith.constant 0 : i32
    return %arg0, %arg1, %c0_i32, %c0_i32_0, %c0_i32_1 : i32, i32, i32, i32, i32
  }
}

</mosaic_0001>

<llo_original>
// kernel: csdn_tem_forward.1
$region0: #{csdn_tem_forward.1}
  #allocation0 [shape = 'u32[]', space=smem, size = 0x4, offset = 0x4, fixed_abs, tag = 'smem constant byte address 0x4 - core index']
  #allocation1 [shape = 'u32[144,128]{1,0:T(1,128)}', space=vmem, size = 0x12000, scoped, tag = 'internal scratch']
  %s0 = inlined_call_operand.vmem [shape: f32[2,1,18,18,4], index: 0, kind: input, shape index: {}]
  %s1 = inlined_call_operand.vmem [shape: f32[36,8], index: 1, kind: input, shape index: {}]
  %s2 = inlined_call_operand.vmem [shape: f32[1,8], index: 2, kind: input, shape index: {}]
  %s3 = inlined_call_operand.vmem [shape: f32[2,1,16,16,8], index: 3, kind: output, shape index: {}]
  %s4 = sld [smem:[#allocation0]]
  $region45: #{csdn_tem_forward.1} parent=0
    _
  %s6 = ssub.s32 1, %s4
  %s7 = scalar_select 0, %s6, %s4
  loop: start=0, step=1, limit=4
  $region2: #{csdn_tem_forward.1} parent=0 // loop_pre_header
    _
  $region3: #{csdn_tem_forward.1} parent=0 // loop_header
    %s9 = sphi 0, %s13
    %p10 = scmp.ge.s32.totalorder %s9, 4
    %s16 = sphi 0, %s28
    %s17 = sphi 0, %s24
    %s18 = sphi 0, %s16
    %s19 = sphi 0, %s17
    %s20 = sphi 0, %s18
    %s21 = sphi 0, %s19
    %s33 = sphi 0, %s35
    %s36 = sphi 0, %s33
    %s37 = sphi 0, %s36
    %s53 = sphi 0, %s37
    %s57 = sphi 0, %s57
    %s59 = sphi 0, %s57
    %s60 = sphi 0, %s59
    %s74 = sphi 0, %s60
    %s78 = sphi 0, %s78
    %s80 = sphi 0, %s78
    %s81 = sphi 0, %s80
    %s95 = sphi 0, %s81
    %s103 = sphi 0, %s105
    %s106 = sphi 0, %s103
    %s107 = sphi 0, %s106
    %s123 = sphi 0, %s107
  $region4: #{csdn_tem_forward.1} parent=0 // loop_header_branch
    %12 = sbr.rel (%p10) target = $region8
  $region5: #{csdn_tem_forward.1} parent=0 // loop_body
    %s14 = ssub.s32 %s9, 1
    %s15 = ssub.s32 %s9, 2
    %s22 = sadd.s32 1, %s17
    %p23 = scmp.ge.s32.totalorder %s22, 1
    %s24 = scalar_select %p23, 0, %s22
    %s25 = sadd.s32 1, %s16
    %s26 = scalar_select %p23, %s25, %s16
    %p27 = scmp.ge.s32.totalorder %s26, 2
    %s28 = scalar_select %p27, 0, %s26
    %s29 = ssub.s32 %s16, %s28
    %s30 = ssub.s32 %s17, %s24
    %s31 = sor.u32 %s29, %s30
    %p32 = scmp.eq.s32.totalorder %s31, 0
    %s34 = sadd.s32 %s33, 1
    %s35 = scalar_select %p32, %s33, %s34
    %p38 = pneg %p32
    %p39 = scmp.eq.s32.totalorder %s9, 1
    %p40 = por %p38, %p39
    %p41 = scmp.ne.s32.totalorder %s33, %s36
    %p42 = scmp.eq.s32.totalorder %s9, 0
    %p43 = por %p41, %p42
    %p44 = scmp.ne.s32.totalorder %s33, %s36
    %p45 = scmp.eq.s32.totalorder %s14, 1
    %p46 = por %p44, %p45
    %p47 = scmp.ne.s32.totalorder %s36, %s37
    %p48 = scmp.eq.s32.totalorder %s14, 0
    %p49 = por %p47, %p48
    %p50 = scmp.ne.s32.totalorder %s36, %s37
    %p51 = scmp.eq.s32.totalorder %s15, 1
    %p52 = por %p50, %p51
    %p54 = scmp.ne.s32.totalorder %s37, %s53
    %p55 = scmp.eq.s32.totalorder %s15, 0
    %p56 = por %p54, %p55
    %s58 = sadd.s32 %s57, 1
    %p61 = scmp.eq.s32.totalorder %s9, 1
    %p62 = scmp.ne.s32.totalorder %s57, %s59
    %p63 = scmp.eq.s32.totalorder %s9, 0
    %p64 = por %p62, %p63
    %p65 = scmp.ne.s32.totalorder %s57, %s59
    %p66 = scmp.eq.s32.totalorder %s14, 1
    %p67 = por %p65, %p66
    %p68 = scmp.ne.s32.totalorder %s59, %s60
    %p69 = scmp.eq.s32.totalorder %s14, 0
    %p70 = por %p68, %p69
    %p71 = scmp.ne.s32.totalorder %s59, %s60
    %p72 = scmp.eq.s32.totalorder %s15, 1
    %p73 = por %p71, %p72
    %p75 = scmp.ne.s32.totalorder %s60, %s74
    %p76 = scmp.eq.s32.totalorder %s15, 0
    %p77 = por %p75, %p76
    %s79 = sadd.s32 %s78, 1
    %p82 = scmp.eq.s32.totalorder %s9, 1
    %p83 = scmp.ne.s32.totalorder %s78, %s80
    %p84 = scmp.eq.s32.totalorder %s9, 0
    %p85 = por %p83, %p84
    %p86 = scmp.ne.s32.totalorder %s78, %s80
    %p87 = scmp.eq.s32.totalorder %s14, 1
    %p88 = por %p86, %p87
    %p89 = scmp.ne.s32.totalorder %s80, %s81
    %p90 = scmp.eq.s32.totalorder %s14, 0
    %p91 = por %p89, %p90
    %p92 = scmp.ne.s32.totalorder %s80, %s81
    %p93 = scmp.eq.s32.totalorder %s15, 1
    %p94 = por %p92, %p93
    %p96 = scmp.ne.s32.totalorder %s81, %s95
    %p97 = scmp.eq.s32.totalorder %s15, 0
    %p98 = por %p96, %p97
    %s99 = ssub.s32 %s16, %s28
    %s100 = ssub.s32 %s17, %s24
    %s101 = sor.u32 %s99, %s100
    %p102 = scmp.eq.s32.totalorder %s101, 0
    %s104 = sadd.s32 %s103, 1
    %s105 = scalar_select %p102, %s103, %s104
    %p108 = pneg %p102
    %p109 = scmp.eq.s32.totalorder %s9, 1
    %p110 = por %p108, %p109
    %p111 = scmp.ne.s32.totalorder %s103, %s106
    %p112 = scmp.eq.s32.totalorder %s9, 0
    %p113 = por %p111, %p112
    %p114 = scmp.ne.s32.totalorder %s103, %s106
    %p115 = scmp.eq.s32.totalorder %s14, 1
    %p116 = por %p114, %p115
    %p117 = scmp.ne.s32.totalorder %s106, %s107
    %p118 = scmp.eq.s32.totalorder %s14, 0
    %p119 = por %p117, %p118
    %p120 = scmp.ne.s32.totalorder %s106, %s107
    %p121 = scmp.eq.s32.totalorder %s15, 1
    %p122 = por %p120, %p121
    %p124 = scmp.ne.s32.totalorder %s107, %s123
    %p125 = scmp.eq.s32.totalorder %s15, 0
    %p126 = por %p124, %p125
    %p127 = scmp.le.s32.totalorder 1, %s9
    %p128 = scmp.lt.s32.totalorder %s9, 3
    %p129 = pnand %p127, %p128
    %p130 = pneg %p129
    // Predicated region
    $region9: #{csdn_tem_forward.1} parent=5 // pred_check
      _
    $region10: #{csdn_tem_forward.1} parent=5 // pred_check_branch
      %132 = sbr.rel (%p129) target = $region12
    $region11: #{csdn_tem_forward.1} parent=5 // pred_region
      %s133 = ssub.s32 %s9, 1
      // Predicated region
      $region13: #{csdn_tem_forward.1} parent=11 // pred_check
        %p134 = pneg %p70
      $region14: #{csdn_tem_forward.1} parent=11 // pred_check_branch
        %136 = sbr.rel (%p134) target = $region16
      $region15: #{csdn_tem_forward.1} parent=11 // pred_region
        _
      $region16: #{csdn_tem_forward.1} parent=11 // pred_fallthru
        _
      // Predicated region
      $region17: #{csdn_tem_forward.1} parent=11 // pred_check
        %p137 = pneg %p91
      $region18: #{csdn_tem_forward.1} parent=11 // pred_check_branch
        %139 = sbr.rel (%p137) target = $region20
      $region19: #{csdn_tem_forward.1} parent=11 // pred_region
        _
      $region20: #{csdn_tem_forward.1} parent=11 // pred_fallthru
        _
    $region12: #{csdn_tem_forward.1} parent=5 // pred_fallthru
      _
    %p140 = scmp.lt.s32.totalorder %s9, 2
    // Predicated region
    $region21: #{csdn_tem_forward.1} parent=5 // pred_check
      %p141 = pneg %p140
    $region22: #{csdn_tem_forward.1} parent=5 // pred_check_branch
      %143 = sbr.rel (%p141) target = $region24
    $region23: #{csdn_tem_forward.1} parent=5 // pred_region
      // Predicated region
      $region25: #{csdn_tem_forward.1} parent=23 // pred_check
        %p144 = pneg %p43
      $region26: #{csdn_tem_forward.1} parent=23 // pred_check_branch
        %146 = sbr.rel (%p144) target = $region28
      $region27: #{csdn_tem_forward.1} parent=23 // pred_region
        %p147 = scmp.lt.s32.totalorder %s16, 1
        %s148 = scalar_select %p147, %s16, 1
        %p149 = scmp.lt.s32.totalorder %s17, 0
        %s150 = scalar_select %p149, %s17, 0
        %s151 = smul.addr %s150, 54
        %s152 = smul.addr %s148, 54
        %s153 = sadd.s32 %s151, %s152
        %s154 = smul.addr %s153, 8
        %s155 = scalar_lea.vmem %s0, %s154
      $region28: #{csdn_tem_forward.1} parent=23 // pred_fallthru
        _
    $region24: #{csdn_tem_forward.1} parent=5 // pred_fallthru
      _
    %p156 = scmp.le.s32.totalorder 1, %s9
    %p157 = scmp.lt.s32.totalorder %s9, 3
    %p158 = pnand %p156, %p157
    %p159 = pneg %p158
    // Predicated region
    $region29: #{csdn_tem_forward.1} parent=5 // pred_check
      _
    $region30: #{csdn_tem_forward.1} parent=5 // pred_check_branch
      %161 = sbr.rel (%p158) target = $region32
    $region31: #{csdn_tem_forward.1} parent=5 // pred_region
      %s162 = ssub.s32 %s9, 1
      %p163 = scmp.lt.s32.totalorder %s18, 1
      %s164 = scalar_select %p163, %s18, 1
      %p165 = scmp.lt.s32.totalorder %s19, 0
      %s166 = scalar_select %p165, %s19, 0
      %s167 = smul.addr %s166, 54
      %s168 = smul.addr %s164, 54
      %s169 = sadd.s32 %s167, %s168
      %s170 = smul.addr %s169, 8
      %s171 = scalar_lea.vmem %s0, %s170
      %p172 = pneg %p49
      %p173 = pneg %p46
      %p174 = pneg %p70
      %p175 = pneg %p67
      %p176 = pneg %p91
      %p177 = pneg %p88
      %p178 = pneg %p119
      %p179 = pneg %p116
      %p180 = scmp.lt.s32.totalorder %s18, 1
      %s181 = scalar_select %p180, %s18, 1
      %p182 = scmp.lt.s32.totalorder %s19, 0
      %s183 = scalar_select %p182, %s19, 0
      %s184 = smul.addr %s183, 32
      %s185 = smul.addr %s181, 32
      %s186 = sadd.s32 %s184, %s185
      %s187 = smul.addr %s186, 8
      %s188 = scalar_lea.vmem %s3, %s187
      %p189 = scmp.lt.s32.totalorder %s18, 1
      %s190 = scalar_select %p189, %s18, 1
      %p191 = scmp.lt.s32.totalorder %s19, 0
      %s192 = scalar_select %p191, %s19, 0
      %s193 = smul.addr %s192, 54
      %s194 = smul.addr %s190, 54
      %s195 = sadd.s32 %s193, %s194
      %s196 = smul.addr %s195, 8
      %s197 = scalar_lea.vmem %s0, %s196
      %p198 = scmp.lt.s32.totalorder %s18, 1
      %s199 = scalar_select %p198, %s18, 1
      %p200 = scmp.lt.s32.totalorder %s19, 0
      %s201 = scalar_select %p200, %s19, 0
      %s202 = smul.addr %s201, 32
      %s203 = smul.addr %s199, 32
      %s204 = sadd.s32 %s202, %s203
      %s205 = smul.addr %s204, 8
      %s206 = scalar_lea.vmem %s3, %s205
      %v207 = vld [vmem:[%s197] sm:$0xff]
      %v208 = vld [vmem:[%s197 + $0x8] sm:$0xff]
      %v209 = vld [vmem:[%s197 + $0x10] sm:$0x3]
      %v210 = vld [vmem:[%s197 + $0x18] sm:$0xff]
      %v211 = vld [vmem:[%s197 + $0x20] sm:$0xff]
      %v212 = vld [vmem:[%s197 + $0x28] sm:$0x3]
      %v213 = vld [vmem:[%s197 + $0x30] sm:$0xff]
      %v214 = vld [vmem:[%s197 + $0x38] sm:$0xff]
      %v215 = vld [vmem:[%s197 + $0x40] sm:$0x3]
      %v216 = vld [vmem:[%s197 + $0x48] sm:$0xff]
      %v217 = vld [vmem:[%s197 + $0x50] sm:$0xff]
      %v218 = vld [vmem:[%s197 + $0x58] sm:$0x3]
      %v219 = vld [vmem:[%s197 + $0x60] sm:$0xff]
      %v220 = vld [vmem:[%s197 + $0x68] sm:$0xff]
      %v221 = vld [vmem:[%s197 + $0x70] sm:$0x3]
      %v222 = vld [vmem:[%s197 + $0x78] sm:$0xff]
      %v223 = vld [vmem:[%s197 + $0x80] sm:$0xff]
      %v224 = vld [vmem:[%s197 + $0x88] sm:$0x3]
      %v225 = vld [vmem:[%s197 + $0x90] sm:$0xff]
      %v226 = vld [vmem:[%s197 + $0x98] sm:$0xff]
      %v227 = vld [vmem:[%s197 + $0xa0] sm:$0x3]
      %v228 = vld [vmem:[%s197 + $0xa8] sm:$0xff]
      %v229 = vld [vmem:[%s197 + $0xb0] sm:$0xff]
      %v230 = vld [vmem:[%s197 + $0xb8] sm:$0x3]
      %v231 = vld [vmem:[%s197 + $0xc0] sm:$0xff]
      %v232 = vld [vmem:[%s197 + $0xc8] sm:$0xff]
      %v233 = vld [vmem:[%s197 + $0xd0] sm:$0x3]
      %v234 = vld [vmem:[%s197 + $0xd8] sm:$0xff]
      %v235 = vld [vmem:[%s197 + $0xe0] sm:$0xff]
      %v236 = vld [vmem:[%s197 + $0xe8] sm:$0x3]
      %v237 = vld [vmem:[%s197 + $0xf0] sm:$0xff]
      %v238 = vld [vmem:[%s197 + $0xf8] sm:$0xff]
      %v239 = vld [vmem:[%s197 + $0x100] sm:$0x3]
      %v240 = vld [vmem:[%s197 + $0x108] sm:$0xff]
      %v241 = vld [vmem:[%s197 + $0x110] sm:$0xff]
      %v242 = vld [vmem:[%s197 + $0x118] sm:$0x3]
      %v243 = vld [vmem:[%s197 + $0x120] sm:$0xff]
      %v244 = vld [vmem:[%s197 + $0x128] sm:$0xff]
      %v245 = vld [vmem:[%s197 + $0x130] sm:$0x3]
      %v246 = vld [vmem:[%s197 + $0x138] sm:$0xff]
      %v247 = vld [vmem:[%s197 + $0x140] sm:$0xff]
      %v248 = vld [vmem:[%s197 + $0x148] sm:$0x3]
      %v249 = vld [vmem:[%s197 + $0x150] sm:$0xff]
      %v250 = vld [vmem:[%s197 + $0x158] sm:$0xff]
      %v251 = vld [vmem:[%s197 + $0x160] sm:$0x3]
      %v252 = vld [vmem:[%s197 + $0x168] sm:$0xff]
      %v253 = vld [vmem:[%s197 + $0x170] sm:$0xff]
      %v254 = vld [vmem:[%s197 + $0x178] sm:$0x3]
      %v255 = vld [vmem:[%s197 + $0x180] sm:$0xff]
      %v256 = vld [vmem:[%s197 + $0x188] sm:$0xff]
      %v257 = vld [vmem:[%s197 + $0x190] sm:$0x3]
      %v258 = vld [vmem:[%s197 + $0x198] sm:$0xff]
      %v259 = vld [vmem:[%s197 + $0x1a0] sm:$0xff]
      %v260 = vld [vmem:[%s197 + $0x1a8] sm:$0x3]
      %v261 = vld [vmem:[%s1] sm:$0xff]
      %v262 = vld [vmem:[%s1 + $0x8] sm:$0xff]
      %v263 = vld [vmem:[%s1 + $0x10] sm:$0xff]
      %v264 = vld [vmem:[%s1 + $0x18] sm:$0xff]
      %v265 = vld [vmem:[%s1 + $0x20] sm:$0xf]
      %v266 = vld [vmem:[%s2] sm:$0x1]
      %v268 = vlaneseq
      %v269 = vshrl.u32 %v268, 7
      %v270 = vsub.s32 0, %v269
      %v271 = vrot.slane %v266, %v270
      %vm273 = vcmask 31744
      %v275 = vsel %vm273, %v207, 0
      %v278 = vsel %vm273, %v208, 0
      %v281 = vsel %vm273, %v210, 0
      %v284 = vsel %vm273, %v211, 0
      %v287 = vsel %vm273, %v213, 0
      %v290 = vsel %vm273, %v214, 0
      %v293 = vsel %vm273, %v216, 0
      %v296 = vsel %vm273, %v217, 0
      %v299 = vsel %vm273, %v219, 0
      %v302 = vsel %vm273, %v220, 0
      %v305 = vsel %vm273, %v222, 0
      %v308 = vsel %vm273, %v223, 0
      %v311 = vsel %vm273, %v225, 0
      %v314 = vsel %vm273, %v226, 0
      %v317 = vsel %vm273, %v228, 0
      %v320 = vsel %vm273, %v229, 0
      %v323 = vsel %vm273, %v231, 0
      %v326 = vsel %vm273, %v232, 0
      %v329 = vsel %vm273, %v234, 0
      %v332 = vsel %vm273, %v235, 0
      %v335 = vsel %vm273, %v237, 0
      %v338 = vsel %vm273, %v238, 0
      %v341 = vsel %vm273, %v240, 0
      %v344 = vsel %vm273, %v241, 0
      %v347 = vsel %vm273, %v243, 0
      %v350 = vsel %vm273, %v244, 0
      %v353 = vsel %vm273, %v246, 0
      %v356 = vsel %vm273, %v247, 0
      %v359 = vsel %vm273, %v249, 0
      %v362 = vsel %vm273, %v250, 0
      %v365 = vsel %vm273, %v252, 0
      %v368 = vsel %vm273, %v253, 0
      %vm370 = vcmask 1043456
      %v372 = vsel %vm370, %v261, 0
      %374 = vmatprep.subr.mxu0 0.0
      %375 = vmatpush1.msra.mxu0 %v372
      %376 = vmatprep.subr.mxu0 0.0
      %377 = vmatpush1.msra.mxu0 0.0
      %378 = vmatprep.subr.mxu0 0.0
      %379 = vmatpush1.msra.mxu0 0.0
      %380 = vmatprep.subr.mxu0 0.0
      %381 = vmatpush1.msra.mxu0 0.0
      %382 = vmatprep.subr.mxu0 0.0
      %383 = vmatpush1.msra.mxu0 0.0
      %384 = vmatprep.subr.mxu0 0.0
      %385 = vmatpush1.msra.mxu0 0.0
      %386 = vmatprep.subr.mxu0 0.0
      %387 = vmatpush1.msra.mxu0 0.0
      %388 = vmatprep.subr.mxu0 0.0
      %389 = vmatpush1.msra.mxu0 0.0
      %390 = vmatprep.subr.mxu0 0.0
      %391 = vmatpush1.msra.mxu0 0.0
      %392 = vmatprep.subr.mxu0 0.0
      %393 = vmatpush1.msra.mxu0 0.0
      %394 = vmatprep.subr.mxu0 0.0
      %395 = vmatpush1.msra.mxu0 0.0
      %396 = vmatprep.subr.mxu0 0.0
      %397 = vmatpush1.msra.mxu0 0.0
      %398 = vmatprep.subr.mxu0 0.0
      %399 = vmatpush1.msra.mxu0 0.0
      %400 = vmatprep.subr.mxu0 0.0
      %401 = vmatpush1.msra.mxu0 0.0
      %402 = vmatprep.subr.mxu0 0.0
      %403 = vmatpush1.msra.mxu0 0.0
      %404 = vmatprep.subr.mxu0 0.0
      %405 = vmatpush1.msra.mxu0 0.0
      %406 = vmatprep.subr.mxu0 0.0
      %407 = vmatpush1.msra.mxu0 0.0
      %408 = vmatprep.subr.mxu0 0.0
      %409 = vmatpush1.msra.mxu0 0.0
      %410 = vmatprep.subr.mxu0 0.0
      %411 = vmatpush1.msra.mxu0 0.0
      %412 = vmatprep.subr.mxu0 0.0
      %413 = vmatpush1.msra.mxu0 0.0
      %414 = vmatprep.subr.mxu0 0.0
      %415 = vmatpush1.msra.mxu0 0.0
      %416 = vmatprep.subr.mxu0 0.0
      %417 = vmatpush1.msra.mxu0 0.0
      %418 = vmatprep.subr.mxu0 0.0
      %419 = vmatpush1.msra.mxu0 0.0
      %420 = vmatprep.subr.mxu0 0.0
      %421 = vmatpush1.msra.mxu0 0.0
      %422 = vmatprep.subr.mxu0 0.0
      %423 = vmatpush1.msra.mxu0 0.0
      %424 = vmatprep.subr.mxu0 0.0
      %425 = vmatpush1.msra.mxu0 0.0
      %426 = vmatprep.subr.mxu0 0.0
      %427 = vmatpush1.msra.mxu0 0.0
      %428 = vmatprep.subr.mxu0 0.0
      %429 = vmatpush1.msra.mxu0 0.0
      %430 = vmatprep.subr.mxu0 0.0
      %431 = vmatpush1.msra.mxu0 0.0
      %432 = vmatprep.subr.mxu0 0.0
      %433 = vmatpush1.msra.mxu0 0.0
      %434 = vmatprep.subr.mxu0 0.0
      %435 = vmatpush1.msra.mxu0 0.0
      %436 = vmatprep.subr.mxu0 0.0
      %437 = vmatpush1.msra.mxu0 0.0
      %438 = vmatprep.mubr.f32.mxu0 0.0
      %439 = vmatmul.mubr.f32.gmra.mrb[0].mxu0 %v275
      %v440 = vpop.f32.mrb[0].mxu0
      %v441 = vadd.f32 0.0, %v440
      %v442 = vpop.f32.mrb[0].mxu0
      %443 = vmatprep.mubr.f32.mxu0 0.0
      %444 = vmatmul.mubr.f32.gmra.mrb[0].mxu0 %v278
      %v445 = vpop.f32.mrb[0].mxu0
      %v446 = vadd.f32 0.0, %v445
      %v447 = vpop.f32.mrb[0].mxu0
      %448 = vmatprep.mubr.f32.mxu0 0.0
      %449 = vmatmul.mubr.f32.gmra.mrb[0].mxu0 %v281
      %v450 = vpop.f32.mrb[0].mxu0
      %v451 = vadd.f32 0.0, %v450
      %v452 = vpop.f32.mrb[0].mxu0
      %453 = vmatprep.mubr.f32.mxu0 0.0
      %454 = vmatmul.mubr.f32.gmra.mrb[0].mxu0 %v284
      %v455 = vpop.f32.mrb[0].mxu0
      %v456 = vadd.f32 0.0, %v455
      %v457 = vpop.f32.mrb[0].mxu0
      %458 = vmatprep.mubr.f32.mxu0 0.0
      %459 = vmatmul.mubr.f32.gmra.mrb[0].mxu0 %v287
      %v460 = vpop.f32.mrb[0].mxu0
      %v461 = vadd.f32 0.0, %v460
      %v462 = vpop.f32.mrb[0].mxu0
      %463 = vmatprep.mubr.f32.mxu0 0.0
      %464 = vmatmul.mubr.f32.gmra.mrb[0].mxu0 %v290
      %v465 = vpop.f32.mrb[0].mxu0
      %v466 = vadd.f32 0.0, %v465
      %v467 = vpop.f32.mrb[0].mxu0
      %468 = vmatprep.mubr.f32.mxu0 0.0
      %469 = vmatmul.mubr.f32.gmra.mrb[0].mxu0 %v293
      %v470 = vpop.f32.mrb[0].mxu0
      %v471 = vadd.f32 0.0, %v470
      %v472 = vpop.f32.mrb[0].mxu0
      %473 = vmatprep.mubr.f32.mxu0 0.0
      %474 = vmatmul.mubr.f32.gmra.mrb[0].mxu0 %v296
      %v475 = vpop.f32.mrb[0].mxu0
      %v476 = vadd.f32 0.0, %v475
      %v477 = vpop.f32.mrb[0].mxu0
      %478 = vmatprep.mubr.f32.mxu0 0.0
      %479 = vmatmul.mubr.f32.gmra.mrb[0].mxu0 %v299
      %v480 = vpop.f32.mrb[0].mxu0
      %v481 = vadd.f32 0.0, %v480
      %v482 = vpop.f32.mrb[0].mxu0
      %483 = vmatprep.mubr.f32.mxu0 0.0
      %484 = vmatmul.mubr.f32.gmra.mrb[0].mxu0 %v302
      %v485 = vpop.f32.mrb[0].mxu0
      %v486 = vadd.f32 0.0, %v485
      %v487 = vpop.f32.mrb[0].mxu0
      %488 = vmatprep.mubr.f32.mxu0 0.0
      %489 = vmatmul.mubr.f32.gmra.mrb[0].mxu0 %v305
      %v490 = vpop.f32.mrb[0].mxu0
      %v491 = vadd.f32 0.0, %v490
      %v492 = vpop.f32.mrb[0].mxu0
      %493 = vmatprep.mubr.f32.mxu0 0.0
      %494 = vmatmul.mubr.f32.gmra.mrb[0].mxu0 %v308
      %v495 = vpop.f32.mrb[0].mxu0
      %v496 = vadd.f32 0.0, %v495
      %v497 = vpop.f32.mrb[0].mxu0
      %498 = vmatprep.mubr.f32.mxu0 0.0
      %499 = vmatmul.mubr.f32.gmra.mrb[0].mxu0 %v311
      %v500 = vpop.f32.mrb[0].mxu0
      %v501 = vadd.f32 0.0, %v500
      %v502 = vpop.f32.mrb[0].mxu0
      %503 = vmatprep.mubr.f32.mxu0 0.0
      %504 = vmatmul.mubr.f32.gmra.mrb[0].mxu0 %v314
      %v505 = vpop.f32.mrb[0].mxu0
      %v506 = vadd.f32 0.0, %v505
      %v507 = vpop.f32.mrb[0].mxu0
      %508 = vmatprep.mubr.f32.mxu0 0.0
      %509 = vmatmul.mubr.f32.gmra.mrb[0].mxu0 %v317
      %v510 = vpop.f32.mrb[0].mxu0
      %v511 = vadd.f32 0.0, %v510
      %v512 = vpop.f32.mrb[0].mxu0
      %513 = vmatprep.mubr.f32.mxu0 0.0
      %514 = vmatmul.mubr.f32.gmra.mrb[0].mxu0 %v320
      %v515 = vpop.f32.mrb[0].mxu0
      %v516 = vadd.f32 0.0, %v515
      %v517 = vpop.f32.mrb[0].mxu0
      %518 = vmatprep.mubr.f32.mxu0 0.0
      %519 = vmatmul.mubr.f32.gmra.mrb[0].mxu0 %v323
      %v520 = vpop.f32.mrb[0].mxu0
      %v521 = vadd.f32 0.0, %v520
      %v522 = vpop.f32.mrb[0].mxu0
      %523 = vmatprep.mubr.f32.mxu0 0.0
      %524 = vmatmul.mubr.f32.gmra.mrb[0].mxu0 %v326
      %v525 = vpop.f32.mrb[0].mxu0
      %v526 = vadd.f32 0.0, %v525
      %v527 = vpop.f32.mrb[0].mxu0
      %528 = vmatprep.mubr.f32.mxu0 0.0
      %529 = vmatmul.mubr.f32.gmra.mrb[0].mxu0 %v329
      %v530 = vpop.f32.mrb[0].mxu0
      %v531 = vadd.f32 0.0, %v530
      %v532 = vpop.f32.mrb[0].mxu0
      %533 = vmatprep.mubr.f32.mxu0 0.0
      %534 = vmatmul.mubr.f32.gmra.mrb[0].mxu0 %v332
      %v535 = vpop.f32.mrb[0].mxu0
      %v536 = vadd.f32 0.0, %v535
      %v537 = vpop.f32.mrb[0].mxu0
      %538 = vmatprep.mubr.f32.mxu0 0.0
      %539 = vmatmul.mubr.f32.gmra.mrb[0].mxu0 %v335
      %v540 = vpop.f32.mrb[0].mxu0
      %v541 = vadd.f32 0.0, %v540
      %v542 = vpop.f32.mrb[0].mxu0
      %543 = vmatprep.mubr.f32.mxu0 0.0
      %544 = vmatmul.mubr.f32.gmra.mrb[0].mxu0 %v338
      %v545 = vpop.f32.mrb[0].mxu0
      %v546 = vadd.f32 0.0, %v545
      %v547 = vpop.f32.mrb[0].mxu0
      %548 = vmatprep.mubr.f32.mxu0 0.0
      %549 = vmatmul.mubr.f32.gmra.mrb[0].mxu0 %v341
      %v550 = vpop.f32.mrb[0].mxu0
      %v551 = vadd.f32 0.0, %v550
      %v552 = vpop.f32.mrb[0].mxu0
      %553 = vmatprep.mubr.f32.mxu0 0.0
      %554 = vmatmul.mubr.f32.gmra.mrb[0].mxu0 %v344
      %v555 = vpop.f32.mrb[0].mxu0
      %v556 = vadd.f32 0.0, %v555
      %v557 = vpop.f32.mrb[0].mxu0
      %558 = vmatprep.mubr.f32.mxu0 0.0
      %559 = vmatmul.mubr.f32.gmra.mrb[0].mxu0 %v347
      %v560 = vpop.f32.mrb[0].mxu0
      %v561 = vadd.f32 0.0, %v560
      %v562 = vpop.f32.mrb[0].mxu0
      %563 = vmatprep.mubr.f32.mxu0 0.0
      %564 = vmatmul.mubr.f32.gmra.mrb[0].mxu0 %v350
      %v565 = vpop.f32.mrb[0].mxu0
      %v566 = vadd.f32 0.0, %v565
      %v567 = vpop.f32.mrb[0].mxu0
      %568 = vmatprep.mubr.f32.mxu0 0.0
      %569 = vmatmul.mubr.f32.gmra.mrb[0].mxu0 %v353
      %v570 = vpop.f32.mrb[0].mxu0
      %v571 = vadd.f32 0.0, %v570
      %v572 = vpop.f32.mrb[0].mxu0
      %573 = vmatprep.mubr.f32.mxu0 0.0
      %574 = vmatmul.mubr.f32.gmra.mrb[0].mxu0 %v356
      %v575 = vpop.f32.mrb[0].mxu0
      %v576 = vadd.f32 0.0, %v575
      %v577 = vpop.f32.mrb[0].mxu0
      %578 = vmatprep.mubr.f32.mxu0 0.0
      %579 = vmatmul.mubr.f32.gmra.mrb[0].mxu0 %v359
      %v580 = vpop.f32.mrb[0].mxu0
      %v581 = vadd.f32 0.0, %v580
      %v582 = vpop.f32.mrb[0].mxu0
      %583 = vmatprep.mubr.f32.mxu0 0.0
      %584 = vmatmul.mubr.f32.gmra.mrb[0].mxu0 %v362
      %v585 = vpop.f32.mrb[0].mxu0
      %v586 = vadd.f32 0.0, %v585
      %v587 = vpop.f32.mrb[0].mxu0
      %588 = vmatprep.mubr.f32.mxu0 0.0
      %589 = vmatmul.mubr.f32.gmra.mrb[0].mxu0 %v365
      %v590 = vpop.f32.mrb[0].mxu0
      %v591 = vadd.f32 0.0, %v590
      %v592 = vpop.f32.mrb[0].mxu0
      %593 = vmatprep.mubr.f32.mxu0 0.0
      %594 = vmatmul.mubr.f32.gmra.mrb[0].mxu0 %v368
      %v595 = vpop.f32.mrb[0].mxu0
      %v596 = vadd.f32 0.0, %v595
      %v597 = vpop.f32.mrb[0].mxu0
      %598 = vdwg.mxu0
      %v599 = vadd.f32 %v271, %v441
      %v600 = vadd.f32 %v271, %v446
      %v601 = vadd.f32 %v271, %v451
      %v602 = vadd.f32 %v271, %v456
      %v603 = vadd.f32 %v271, %v461
      %v604 = vadd.f32 %v271, %v466
      %v605 = vadd.f32 %v271, %v471
      %v606 = vadd.f32 %v271, %v476
      %v607 = vadd.f32 %v271, %v481
      %v608 = vadd.f32 %v271, %v486
      %v609 = vadd.f32 %v271, %v491
      %v610 = vadd.f32 %v271, %v496
      %v611 = vadd.f32 %v271, %v501
      %v612 = vadd.f32 %v271, %v506
      %v613 = vadd.f32 %v271, %v511
      %v614 = vadd.f32 %v271, %v516
      %v615 = vadd.f32 %v271, %v521
      %v616 = vadd.f32 %v271, %v526
      %v617 = vadd.f32 %v271, %v531
      %v618 = vadd.f32 %v271, %v536
      %v619 = vadd.f32 %v271, %v541
      %v620 = vadd.f32 %v271, %v546
      %v621 = vadd.f32 %v271, %v551
      %v622 = vadd.f32 %v271, %v556
      %v623 = vadd.f32 %v271, %v561
      %v624 = vadd.f32 %v271, %v566
      %v625 = vadd.f32 %v271, %v571
      %v626 = vadd.f32 %v271, %v576
      %v627 = vadd.f32 %v271, %v581
      %v628 = vadd.f32 %v271, %v586
      %v629 = vadd.f32 %v271, %v591
      %v630 = vadd.f32 %v271, %v596
      %vm647 = vcmask 1046528
      %v648 = vrot.slane %v207, 1
      %v649 = vrot.slane %v208, 1
      %v650 = vsel %vm647, %v648, %v649
      %v651 = vrot.slane %v209, 1
      %v652 = vsel %vm647, %v649, %v651
      %v653 = vrot.slane %v210, 1
      %v654 = vrot.slane %v211, 1
      %v655 = vsel %vm647, %v653, %v654
      %v656 = vrot.slane %v212, 1
      %v657 = vsel %vm647, %v654, %v656
      %v658 = vrot.slane %v213, 1
      %v659 = vrot.slane %v214, 1
      %v660 = vsel %vm647, %v658, %v659
      %v661 = vrot.slane %v215, 1
      %v662 = vsel %vm647, %v659, %v661
      %v663 = vrot.slane %v216, 1
      %v664 = vrot.slane %v217, 1
      %v665 = vsel %vm647, %v663, %v664
      %v666 = vrot.slane %v218, 1
      %v667 = vsel %vm647, %v664, %v666
      %v668 = vrot.slane %v219, 1
      %v669 = vrot.slane %v220, 1
      %v670 = vsel %vm647, %v668, %v669
      %v671 = vrot.slane %v221, 1
      %v672 = vsel %vm647, %v669, %v671
      %v673 = vrot.slane %v222, 1
      %v674 = vrot.slane %v223, 1
      %v675 = vsel %vm647, %v673, %v674
      %v676 = vrot.slane %v224, 1
      %v677 = vsel %vm647, %v674, %v676
      %v678 = vrot.slane %v225, 1
      %v679 = vrot.slane %v226, 1
      %v680 = vsel %vm647, %v678, %v679
      %v681 = vrot.slane %v227, 1
      %v682 = vsel %vm647, %v679, %v681
      %v683 = vrot.slane %v228, 1
      %v684 = vrot.slane %v229, 1
      %v685 = vsel %vm647, %v683, %v684
      %v686 = vrot.slane %v230, 1
      %v687 = vsel %vm647, %v684, %v686
      %v688 = vrot.slane %v231, 1
      %v689 = vrot.slane %v232, 1
      %v690 = vsel %vm647, %v688, %v689
      %v691 = vrot.slane %v233, 1
      %v692 = vsel %vm647, %v689, %v691
      %v693 = vrot.slane %v234, 1
      %v694 = vrot.slane %v235, 1
      %v695 = vsel %vm647, %v693, %v694
      %v696 = vrot.slane %v236, 1
      %v697 = vsel %vm647, %v694, %v696
      %v698 = vrot.slane %v237, 1
      %v699 = vrot.slane %v238, 1
      %v700 = vsel %vm647, %v698, %v699
      %v701 = vrot.slane %v239, 1
      %v702 = vsel %vm647, %v699, %v701
      %v703 = vrot.slane %v240, 1
      %v704 = vrot.slane %v241, 1
      %v705 = vsel %vm647, %v703, %v704
      %v706 = vrot.slane %v242, 1
      %v707 = vsel %vm647, %v704, %v706
      %v708 = vrot.slane %v243, 1
      %v709 = vrot.slane %v244, 1
      %v710 = vsel %vm647, %v708, %v709
      %v711 = vrot.slane %v245, 1
      %v712 = vsel %vm647, %v709, %v711
      %v713 = vrot.slane %v246, 1
      %v714 = vrot.slane %v247, 1
      %v715 = vsel %vm647, %v713, %v714
      %v716 = vrot.slane %v248, 1
      %v717 = vsel %vm647, %v714, %v716
      %v718 = vrot.slane %v249, 1
      %v719 = vrot.slane %v250, 1
      %v720 = vsel %vm647, %v718, %v719
      %v721 = vrot.slane %v251, 1
      %v722 = vsel %vm647, %v719, %v721
      %v723 = vrot.slane %v252, 1
      %v724 = vrot.slane %v253, 1
      %v725 = vsel %vm647, %v723, %v724
      %v726 = vrot.slane %v254, 1
      %v727 = vsel %vm647, %v724, %v726
      %v728 = vrot.slane %v261, 4
      %v729 = vsel %vm273, %v650, 0
      %v731 = vsel %vm273, %v652, 0
      %v733 = vsel %vm273, %v655, 0
      %v735 = vsel %vm273, %v657, 0
      %v737 = vsel %vm273, %v660, 0
      %v739 = vsel %vm273, %v662, 0
      %v741 = vsel %vm273, %v665, 0
      %v743 = vsel %vm273, %v667, 0
      %v745 = vsel %vm273, %v670, 0
      %v747 = vsel %vm273, %v672, 0
      %v749 = vsel %vm273, %v675, 0
      %v751 = vsel %vm273, %v677, 0
      %v753 = vsel %vm273, %v680, 0
      %v755 = vsel %vm273, %v682, 0
      %v757 = vsel %vm273, %v685, 0
      %v759 = vsel %vm273, %v687, 0
      %v761 = vsel %vm273, %v690, 0
      %v763 = vsel %vm273, %v692, 0
      %v765 = vsel %vm273, %v695, 0
      %v767 = vsel %vm273, %v697, 0
      %v769 = vsel %vm273, %v700, 0
      %v771 = vsel %vm273, %v702, 0
      %v773 = vsel %vm273, %v705, 0
      %v775 = vsel %vm273, %v707, 0
      %v777 = vsel %vm273, %v710, 0
      %v779 = vsel %vm273, %v712, 0
      %v781 = vsel %vm273, %v715, 0
      %v783 = vsel %vm273, %v717, 0
      %v785 = vsel %vm273, %v720, 0
      %v787 = vsel %vm273, %v722, 0
      %v789 = vsel %vm273, %v725, 0
      %v791 = vsel %vm273, %v727, 0
      %v793 = vsel %vm370, %v728, 0
      %795 = vmatprep.subr.mxu0 0.0
      %796 = vmatpush1.msra.mxu0 %v793
      %797 = vmatprep.subr.mxu0 0.0
      %798 = vmatpush1.msra.mxu0 0.0
      %799 = vmatprep.subr.mxu0 0.0
      %800 = vmatpush1.msra.mxu0 0.0
      %801 = vmatprep.subr.mxu0 0.0
      %802 = vmatpush1.msra.mxu0 0.0
      %803 = vmatprep.subr.mxu0 0.0
      %804 = vmatpush1.msra.mxu0 0.0
      %805 = vmatprep.subr.mxu0 0.0
      %806 = vmatpush1.msra.mxu0 0.0
      %807 = vmatprep.subr.mxu0 0.0
      %808 = vmatpush1.msra.mxu0 0.0
      %809 = vmatprep.subr.mxu0 0.0
      %810 = vmatpush1.msra.mxu0 0.0
      %811 = vmatprep.subr.mxu0 0.0
      %812 = vmatpush1.msra.mxu0 0.0
      %813 = vmatprep.subr.mxu0 0.0
      %814 = vmatpush1.msra.mxu0 0.0
      %815 = vmatprep.subr.mxu0 0.0
      %816 = vmatpush1.msra.mxu0 0.0
      %817 = vmatprep.subr.mxu0 0.0
      %818 = vmatpush1.msra.mxu0 0.0
      %819 = vmatprep.subr.mxu0 0.0
      %820 = vmatpush1.msra.mxu0 0.0
      %821 = vmatprep.subr.mxu0 0.0
      %822 = vmatpush1.msra.mxu0 0.0
      %823 = vmatprep.subr.mxu0 0.0
      %824 = vmatpush1.msra.mxu0 0.0
      %825 = vmatprep.subr.mxu0 0.0
      %826 = vmatpush1.msra.mxu0 0.0
      %827 = vmatprep.subr.mxu0 0.0
      %828 = vmatpush1.msra.mxu0 0.0
      %829 = vmatprep.subr.mxu0 0.0
      %830 = vmatpush1.msra.mxu0 0.0
      %831 = vmatprep.subr.mxu0 0.0
      %832 = vmatpush1.msra.mxu0 0.0
      %833 = vmatprep.subr.mxu0 0.0
      %834 = vmatpush1.msra.mxu0 0.0
      %835 = vmatprep.subr.mxu0 0.0
      %836 = vmatpush1.msra.mxu0 0.0
      %837 = vmatprep.subr.mxu0 0.0
      %838 = vmatpush1.msra.mxu0 0.0
      %839 = vmatprep.subr.mxu0 0.0
      %840 = vmatpush1.msra.mxu0 0.0
      %841 = vmatprep.subr.mxu0 0.0
      %842 = vmatpush1.msra.mxu0 0.0
      %843 = vmatprep.subr.mxu0 0.0
      %844 = vmatpush1.msra.mxu0 0.0
      %845 = vmatprep.subr.mxu0 0.0
      %846 = vmatpush1.msra.mxu0 0.0
      %847 = vmatprep.subr.mxu0 0.0
      %848 = vmatpush1.msra.mxu0 0.0
      %849 = vmatprep.subr.mxu0 0.0
      %850 = vmatpush1.msra.mxu0 0.0
      %851 = vmatprep.subr.mxu0 0.0
      %852 = vmatpush1.msra.mxu0 0.0
      %853 = vmatprep.subr.mxu0 0.0
      %854 = vmatpush1.msra.mxu0 0.0
      %855 = vmatprep.subr.mxu0 0.0
      %856 = vmatpush1.msra.mxu0 0.0
      %857 = vmatprep.subr.mxu0 0.0
      %858 = vmatpush1.msra.mxu0 0.0
      %859 = vmatprep.mubr.f32.mxu0 0.0
      %860 = vmatmul.mubr.f32.gmra.mrb[0].mxu0 %v729
      %v861 = vpop.f32.mrb[0].mxu0
      %v862 = vadd.f32 0.0, %v861
      %v863 = vpop.f32.mrb[0].mxu0
      %864 = vmatprep.mubr.f32.mxu0 0.0
      %865 = vmatmul.mubr.f32.gmra.mrb[0].mxu0 %v731
      %v866 = vpop.f32.mrb[0].mxu0
      %v867 = vadd.f32 0.0, %v866
      %v868 = vpop.f32.mrb[0].mxu0
      %869 = vmatprep.mubr.f32.mxu0 0.0
      %870 = vmatmul.mubr.f32.gmra.mrb[0].mxu0 %v733
      %v871 = vpop.f32.mrb[0].mxu0
      %v872 = vadd.f32 0.0, %v871
      %v873 = vpop.f32.mrb[0].mxu0
      %874 = vmatprep.mubr.f32.mxu0 0.0
      %875 = vmatmul.mubr.f32.gmra.mrb[0].mxu0 %v735
      %v876 = vpop.f32.mrb[0].mxu0
      %v877 = vadd.f32 0.0, %v876
      %v878 = vpop.f32.mrb[0].mxu0
      %879 = vmatprep.mubr.f32.mxu0 0.0
      %880 = vmatmul.mubr.f32.gmra.mrb[0].mxu0 %v737
      %v881 = vpop.f32.mrb[0].mxu0
      %v882 = vadd.f32 0.0, %v881
      %v883 = vpop.f32.mrb[0].mxu0
      %884 = vmatprep.mubr.f32.mxu0 0.0
      %885 = vmatmul.mubr.f32.gmra.mrb[0].mxu0 %v739
      %v886 = vpop.f32.mrb[0].mxu0
      %v887 = vadd.f32 0.0, %v886
      %v888 = vpop.f32.mrb[0].mxu0
      %889 = vmatprep.mubr.f32.mxu0 0.0
      %890 = vmatmul.mubr.f32.gmra.mrb[0].mxu0 %v741
      %v891 = vpop.f32.mrb[0].mxu0
      %v892 = vadd.f32 0.0, %v891
      %v893 = vpop.f32.mrb[0].mxu0
      %894 = vmatprep.mubr.f32.mxu0 0.0
      %895 = vmatmul.mubr.f32.gmra.mrb[0].mxu0 %v743
      %v896 = vpop.f32.mrb[0].mxu0
      %v897 = vadd.f32 0.0, %v896
      %v898 = vpop.f32.mrb[0].mxu0
      %899 = vmatprep.mubr.f32.mxu0 0.0
      %900 = vmatmul.mubr.f32.gmra.mrb[0].mxu0 %v745
      %v901 = vpop.f32.mrb[0].mxu0
      %v902 = vadd.f32 0.0, %v901
      %v903 = vpop.f32.mrb[0].mxu0
      %904 = vmatprep.mubr.f32.mxu0 0.0
      %905 = vmatmul.mubr.f32.gmra.mrb[0].mxu0 %v747
      %v906 = vpop.f32.mrb[0].mxu0
      %v907 = vadd.f32 0.0, %v906
      %v908 = vpop.f32.mrb[0].mxu0
      %909 = vmatprep.mubr.f32.mxu0 0.0
      %910 = vmatmul.mubr.f32.gmra.mrb[0].mxu0 %v749
      %v911 = vpop.f32.mrb[0].mxu0
      %v912 = vadd.f32 0.0, %v911
      %v913 = vpop.f32.mrb[0].mxu0
      %914 = vmatprep.mubr.f32.mxu0 0.0
      %915 = vmatmul.mubr.f32.gmra.mrb[0].mxu0 %v751
      %v916 = vpop.f32.mrb[0].mxu0
      %v917 = vadd.f32 0.0, %v916
      %v918 = vpop.f32.mrb[0].mxu0
      %919 = vmatprep.mubr.f32.mxu0 0.0
      %920 = vmatmul.mubr.f32.gmra.mrb[0].mxu0 %v753
      %v921 = vpop.f32.mrb[0].mxu0
      %v922 = vadd.f32 0.0, %v921
      %v923 = vpop.f32.mrb[0].mxu0
      %924 = vmatprep.mubr.f32.mxu0 0.0
      %925 = vmatmul.mubr.f32.gmra.mrb[0].mxu0 %v755
      %v926 = vpop.f32.mrb[0].mxu0
      %v927 = vadd.f32 0.0, %v926
      %v928 = vpop.f32.mrb[0].mxu0
      %929 = vmatprep.mubr.f32.mxu0 0.0
      %930 = vmatmul.mubr.f32.gmra.mrb[0].mxu0 %v757
      %v931 = vpop.f32.mrb[0].mxu0
      %v932 = vadd.f32 0.0, %v931
      %v933 = vpop.f32.mrb[0].mxu0
      %934 = vmatprep.mubr.f32.mxu0 0.0
      %935 = vmatmul.mubr.f32.gmra.mrb[0].mxu0 %v759
      %v936 = vpop.f32.mrb[0].mxu0
      %v937 = vadd.f32 0.0, %v936
      %v938 = vpop.f32.mrb[0].mxu0
      %939 = vmatprep.mubr.f32.mxu0 0.0
      %940 = vmatmul.mubr.f32.gmra.mrb[0].mxu0 %v761
      %v941 = vpop.f32.mrb[0].mxu0
      %v942 = vadd.f32 0.0, %v941
      %v943 = vpop.f32.mrb[0].mxu0
      %944 = vmatprep.mubr.f32.mxu0 0.0
      %945 = vmatmul.mubr.f32.gmra.mrb[0].mxu0 %v763
      %v946 = vpop.f32.mrb[0].mxu0
      %v947 = vadd.f32 0.0, %v946
      %v948 = vpop.f32.mrb[0].mxu0
      %949 = vmatprep.mubr.f32.mxu0 0.0
      %950 = vmatmul.mubr.f32.gmra.mrb[0].mxu0 %v765
      %v951 = vpop.f32.mrb[0].mxu0
      %v952 = vadd.f32 0.0, %v951
      %v953 = vpop.f32.mrb[0].mxu0
      %954 = vmatprep.mubr.f32.mxu0 0.0
      %955 = vmatmul.mubr.f32.gmra.mrb[0].mxu0 %v767
      %v956 = vpop.f32.mrb[0].mxu0
      %v957 = vadd.f32 0.0, %v956
      %v958 = vpop.f32.mrb[0].mxu0
      %959 = vmatprep.mubr.f32.mxu0 0.0
      %960 = vmatmul.mubr.f32.gmra.mrb[0].mxu0 %v769
      %v961 = vpop.f32.mrb[0].mxu0
      %v962 = vadd.f32 0.0, %v961
      %v963 = vpop.f32.mrb[0].mxu0
      %964 = vmatprep.mubr.f32.mxu0 0.0
      %965 = vmatmul.mubr.f32.gmra.mrb[0].mxu0 %v771
      %v966 = vpop.f32.mrb[0].mxu0
      %v967 = vadd.f32 0.0, %v966
      %v968 = vpop.f32.mrb[0].mxu0
      %969 = vmatprep.mubr.f32.mxu0 0.0
      %970 = vmatmul.mubr.f32.gmra.mrb[0].mxu0 %v773
      %v971 = vpop.f32.mrb[0].mxu0
      %v972 = vadd.f32 0.0, %v971
      %v973 = vpop.f32.mrb[0].mxu0
      %974 = vmatprep.mubr.f32.mxu0 0.0
      %975 = vmatmul.mubr.f32.gmra.mrb[0].mxu0 %v775
      %v976 = vpop.f32.mrb[0].mxu0
      %v977 = vadd.f32 0.0, %v976
      %v978 = vpop.f32.mrb[0].mxu0
      %979 = vmatprep.mubr.f32.mxu0 0.0
      %980 = vmatmul.mubr.f32.gmra.mrb[0].mxu0 %v777
      %v981 = vpop.f32.mrb[0].mxu0
      %v982 = vadd.f32 0.0, %v981
      %v983 = vpop.f32.mrb[0].mxu0
      %984 = vmatprep.mubr.f32.mxu0 0.0
      %985 = vmatmul.mubr.f32.gmra.mrb[0].mxu0 %v779
      %v986 = vpop.f32.mrb[0].mxu0
      %v987 = vadd.f32 0.0, %v986
      %v988 = vpop.f32.mrb[0].mxu0
      %989 = vmatprep.mubr.f32.mxu0 0.0
      %990 = vmatmul.mubr.f32.gmra.mrb[0].mxu0 %v781
      %v991 = vpop.f32.mrb[0].mxu0
      %v992 = vadd.f32 0.0, %v991
      %v993 = vpop.f32.mrb[0].mxu0
      %994 = vmatprep.mubr.f32.mxu0 0.0
      %995 = vmatmul.mubr.f32.gmra.mrb[0].mxu0 %v783
      %v996 = vpop.f32.mrb[0].mxu0
      %v997 = vadd.f32 0.0, %v996
      %v998 = vpop.f32.mrb[0].mxu0
      %999 = vmatprep.mubr.f32.mxu0 0.0
      %1000 = vmatmul.mubr.f32.gmra.mrb[0].mxu0 %v785
      %v1001 = vpop.f32.mrb[0].mxu0
      %v1002 = vadd.f32 0.0, %v1001
      %v1003 = vpop.f32.mrb[0].mxu0
      %1004 = vmatprep.mubr.f32.mxu0 0.0
      %1005 = vmatmul.mubr.f32.gmra.mrb[0].mxu0 %v787
      %v1006 = vpop.f32.mrb[0].mxu0
      %v1007 = vadd.f32 0.0, %v1006
      %v1008 = vpop.f32.mrb[0].mxu0
      %1009 = vmatprep.mubr.f32.mxu0 0.0
      %1010 = vmatmul.mubr.f32.gmra.mrb[0].mxu0 %v789
      %v1011 = vpop.f32.mrb[0].mxu0
      %v1012 = vadd.f32 0.0, %v1011
      %v1013 = vpop.f32.mrb[0].mxu0
      %1014 = vmatprep.mubr.f32.mxu0 0.0
      %1015 = vmatmul.mubr.f32.gmra.mrb[0].mxu0 %v791
      %v1016 = vpop.f32.mrb[0].mxu0
      %v1017 = vadd.f32 0.0, %v1016
      %v1018 = vpop.f32.mrb[0].mxu0
      %1019 = vdwg.mxu0
      %v1020 = vadd.f32 %v599, %v862
      %v1021 = vadd.f32 %v600, %v867
      %v1022 = vadd.f32 %v601, %v872
      %v1023 = vadd.f32 %v602, %v877
      %v1024 = vadd.f32 %v603, %v882
      %v1025 = vadd.f32 %v604, %v887
      %v1026 = vadd.f32 %v605, %v892
      %v1027 = vadd.f32 %v606, %v897
      %v1028 = vadd.f32 %v607, %v902
      %v1029 = vadd.f32 %v608, %v907
      %v1030 = vadd.f32 %v609, %v912
      %v1031 = vadd.f32 %v610, %v917
      %v1032 = vadd.f32 %v611, %v922
      %v1033 = vadd.f32 %v612, %v927
      %v1034 = vadd.f32 %v613, %v932
      %v1035 = vadd.f32 %v614, %v937
      %v1036 = vadd.f32 %v615, %v942
      %v1037 = vadd.f32 %v616, %v947
      %v1038 = vadd.f32 %v617, %v952
      %v1039 = vadd.f32 %v618, %v957
      %v1040 = vadd.f32 %v619, %v962
      %v1041 = vadd.f32 %v620, %v967
      %v1042 = vadd.f32 %v621, %v972
      %v1043 = vadd.f32 %v622, %v977
      %v1044 = vadd.f32 %v623, %v982
      %v1045 = vadd.f32 %v624, %v987
      %v1046 = vadd.f32 %v625, %v992
      %v1047 = vadd.f32 %v626, %v997
      %v1048 = vadd.f32 %v627, %v1002
      %v1049 = vadd.f32 %v628, %v1007
      %v1050 = vadd.f32 %v629, %v1012
      %v1051 = vadd.f32 %v630, %v1017
      %vm1052 = vcmask 1045504
      %v1053 = vrot.slane %v207, 2
      %v1054 = vrot.slane %v208, 2
      %v1055 = vsel %vm1052, %v1053, %v1054
      %v1056 = vrot.slane %v209, 2
      %v1057 = vsel %vm1052, %v1054, %v1056
      %v1058 = vrot.slane %v210, 2
      %v1059 = vrot.slane %v211, 2
      %v1060 = vsel %vm1052, %v1058, %v1059
      %v1061 = vrot.slane %v212, 2
      %v1062 = vsel %vm1052, %v1059, %v1061
      %v1063 = vrot.slane %v213, 2
      %v1064 = vrot.slane %v214, 2
      %v1065 = vsel %vm1052, %v1063, %v1064
      %v1066 = vrot.slane %v215, 2
      %v1067 = vsel %vm1052, %v1064, %v1066
      %v1068 = vrot.slane %v216, 2
      %v1069 = vrot.slane %v217, 2
      %v1070 = vsel %vm1052, %v1068, %v1069
      %v1071 = vrot.slane %v218, 2
      %v1072 = vsel %vm1052, %v1069, %v1071
      %v1073 = vrot.slane %v219, 2
      %v1074 = vrot.slane %v220, 2
      %v1075 = vsel %vm1052, %v1073, %v1074
      %v1076 = vrot.slane %v221, 2
      %v1077 = vsel %vm1052, %v1074, %v1076
      %v1078 = vrot.slane %v222, 2
      %v1079 = vrot.slane %v223, 2
      %v1080 = vsel %vm1052, %v1078, %v1079
      %v1081 = vrot.slane %v224, 2
      %v1082 = vsel %vm1052, %v1079, %v1081
      %v1083 = vrot.slane %v225, 2
      %v1084 = vrot.slane %v226, 2
      %v1085 = vsel %vm1052, %v1083, %v1084
      %v1086 = vrot.slane %v227, 2
      %v1087 = vsel %vm1052, %v1084, %v1086
      %v1088 = vrot.slane %v228, 2
      %v1089 = vrot.slane %v229, 2
      %v1090 = vsel %vm1052, %v1088, %v1089
      %v1091 = vrot.slane %v230, 2
      %v1092 = vsel %vm1052, %v1089, %v1091
      %v1093 = vrot.slane %v231, 2
      %v1094 = vrot.slane %v232, 2
      %v1095 = vsel %vm1052, %v1093, %v1094
      %v1096 = vrot.slane %v233, 2
      %v1097 = vsel %vm1052, %v1094, %v1096
      %v1098 = vrot.slane %v234, 2
      %v1099 = vrot.slane %v235, 2
      %v1100 = vsel %vm1052, %v1098, %v1099
      %v1101 = vrot.slane %v236, 2
      %v1102 = vsel %vm1052, %v1099, %v1101
      %v1103 = vrot.slane %v237, 2
      %v1104 = vrot.slane %v238, 2
      %v1105 = vsel %vm1052, %v1103, %v1104
      %v1106 = vrot.slane %v239, 2
      %v1107 = vsel %vm1052, %v1104, %v1106
      %v1108 = vrot.slane %v240, 2
      %v1109 = vrot.slane %v241, 2
      %v1110 = vsel %vm1052, %v1108, %v1109
      %v1111 = vrot.slane %v242, 2
      %v1112 = vsel %vm1052, %v1109, %v1111
      %v1113 = vrot.slane %v243, 2
      %v1114 = vrot.slane %v244, 2
      %v1115 = vsel %vm1052, %v1113, %v1114
      %v1116 = vrot.slane %v245, 2
      %v1117 = vsel %vm1052, %v1114, %v1116
      %v1118 = vrot.slane %v246, 2
      %v1119 = vrot.slane %v247, 2
      %v1120 = vsel %vm1052, %v1118, %v1119
      %v1121 = vrot.slane %v248, 2
      %v1122 = vsel %vm1052, %v1119, %v1121
      %v1123 = vrot.slane %v249, 2
      %v1124 = vrot.slane %v250, 2
      %v1125 = vsel %vm1052, %v1123, %v1124
      %v1126 = vrot.slane %v251, 2
      %v1127 = vsel %vm1052, %v1124, %v1126
      %v1128 = vrot.slane %v252, 2
      %v1129 = vrot.slane %v253, 2
      %v1130 = vsel %vm1052, %v1128, %v1129
      %v1131 = vrot.slane %v254, 2
      %v1132 = vsel %vm1052, %v1129, %v1131
      %v1133 = vsel %vm273, %v1055, 0
      %v1135 = vsel %vm273, %v1057, 0
      %v1137 = vsel %vm273, %v1060, 0
      %v1139 = vsel %vm273, %v1062, 0
      %v1141 = vsel %vm273, %v1065, 0
      %v1143 = vsel %vm273, %v1067, 0
      %v1145 = vsel %vm273, %v1070, 0
      %v1147 = vsel %vm273, %v1072, 0
      %v1149 = vsel %vm273, %v1075, 0
      %v1151 = vsel %vm273, %v1077, 0
      %v1153 = vsel %vm273, %v1080, 0
      %v1155 = vsel %vm273, %v1082, 0
      %v1157 = vsel %vm273, %v1085, 0
      %v1159 = vsel %vm273, %v1087, 0
      %v1161 = vsel %vm273, %v1090, 0
      %v1163 = vsel %vm273, %v1092, 0
      %v1165 = vsel %vm273, %v1095, 0
      %v1167 = vsel %vm273, %v1097, 0
      %v1169 = vsel %vm273, %v1100, 0
      %v1171 = vsel %vm273, %v1102, 0
      %v1173 = vsel %vm273, %v1105, 0
      %v1175 = vsel %vm273, %v1107, 0
      %v1177 = vsel %vm273, %v1110, 0
      %v1179 = vsel %vm273, %v1112, 0
      %v1181 = vsel %vm273, %v1115, 0
      %v1183 = vsel %vm273, %v1117, 0
      %v1185 = vsel %vm273, %v1120, 0
      %v1187 = vsel %vm273, %v1122, 0
      %v1189 = vsel %vm273, %v1125, 0
      %v1191 = vsel %vm273, %v1127, 0
      %v1193 = vsel %vm273, %v1130, 0
      %v1195 = vsel %vm273, %v1132, 0
      %v1198 = vsel %vm370, %v262, 0
      %1200 = vmatprep.subr.mxu0 0.0
      %1201 = vmatpush1.msra.mxu0 %v1198
      %1202 = vmatprep.subr.mxu0 0.0
      %1203 = vmatpush1.msra.mxu0 0.0
      %1204 = vmatprep.subr.mxu0 0.0
      %1205 = vmatpush1.msra.mxu0 0.0
      %1206 = vmatprep.subr.mxu0 0.0
      %1207 = vmatpush1.msra.mxu0 0.0
      %1208 = vmatprep.subr.mxu0 0.0
      %1209 = vmatpush1.msra.mxu0 0.0
      %1210 = vmatprep.subr.mxu0 0.0
      %1211 = vmatpush1.msra.mxu0 0.0
      %1212 = vmatprep.subr.mxu0 0.0
      %1213 = vmatpush1.msra.mxu0 0.0
      %1214 = vmatprep.subr.mxu0 0.0
      %1215 = vmatpush1.msra.mxu0 0.0
      %1216 = vmatprep.subr.mxu0 0.0
      %1217 = vmatpush1.msra.mxu0 0.0
      %1218 = vmatprep.subr.mxu0 0.0
      %1219 = vmatpush1.msra.mxu0 0.0
      %1220 = vmatprep.subr.mxu0 0.0
      %1221 = vmatpush1.msra.mxu0 0.0
      %1222 = vmatprep.subr.mxu0 0.0
      %1223 = vmatpush1.msra.mxu0 0.0
      %1224 = vmatprep.subr.mxu0 0.0
      %1225 = vmatpush1.msra.mxu0 0.0
      %1226 = vmatprep.subr.mxu0 0.0
      %1227 = vmatpush1.msra.mxu0 0.0
      %1228 = vmatprep.subr.mxu0 0.0
      %1229 = vmatpush1.msra.mxu0 0.0
      %1230 = vmatprep.subr.mxu0 0.0
      %1231 = vmatpush1.msra.mxu0 0.0
      %1232 = vmatprep.subr.mxu0 0.0
      %1233 = vmatpush1.msra.mxu0 0.0
      %1234 = vmatprep.subr.mxu0 0.0
      %1235 = vmatpush1.msra.mxu0 0.0
      %1236 = vmatprep.subr.mxu0 0.0
      %1237 = vmatpush1.msra.mxu0 0.0
      %1238 = vmatprep.subr.mxu0 0.0
      %1239 = vmatpush1.msra.mxu0 0.0
      %1240 = vmatprep.subr.mxu0 0.0
      %1241 = vmatpush1.msra.mxu0 0.0
      %1242 = vmatprep.subr.mxu0 0.0
      %1243 = vmatpush1.msra.mxu0 0.0
      %1244 = vmatprep.subr.mxu0 0.0
      %1245 = vmatpush1.msra.mxu0 0.0
      %1246 = vmatprep.subr.mxu0 0.0
      %1247 = vmatpush1.msra.mxu0 0.0
      %1248 = vmatprep.subr.mxu0 0.0
      %1249 = vmatpush1.msra.mxu0 0.0
      %1250 = vmatprep.subr.mxu0 0.0
      %1251 = vmatpush1.msra.mxu0 0.0
      %1252 = vmatprep.subr.mxu0 0.0
      %1253 = vmatpush1.msra.mxu0 0.0
      %1254 = vmatprep.subr.mxu0 0.0
      %1255 = vmatpush1.msra.mxu0 0.0
      %1256 = vmatprep.subr.mxu0 0.0
      %1257 = vmatpush1.msra.mxu0 0.0
      %1258 = vmatprep.subr.mxu0 0.0
      %1259 = vmatpush1.msra.mxu0 0.0
      %1260 = vmatprep.subr.mxu0 0.0
      %1261 = vmatpush1.msra.mxu0 0.0
      %1262 = vmatprep.subr.mxu0 0.0
      %1263 = vmatpush1.msra.mxu0 0.0
      %1264 = vmatprep.mubr.f32.mxu0 0.0
      %1265 = vmatmul.mubr.f32.gmra.mrb[0].mxu0 %v1133
      %v1266 = vpop.f32.mrb[0].mxu0
      %v1267 = vadd.f32 0.0, %v1266
      %v1268 = vpop.f32.mrb[0].mxu0
      %1269 = vmatprep.mubr.f32.mxu0 0.0
      %1270 = vmatmul.mubr.f32.gmra.mrb[0].mxu0 %v1135
      %v1271 = vpop.f32.mrb[0].mxu0
      %v1272 = vadd.f32 0.0, %v1271
      %v1273 = vpop.f32.mrb[0].mxu0
      %1274 = vmatprep.mubr.f32.mxu0 0.0
      %1275 = vmatmul.mubr.f32.gmra.mrb[0].mxu0 %v1137
      %v1276 = vpop.f32.mrb[0].mxu0
      %v1277 = vadd.f32 0.0, %v1276
      %v1278 = vpop.f32.mrb[0].mxu0
      %1279 = vmatprep.mubr.f32.mxu0 0.0
      %1280 = vmatmul.mubr.f32.gmra.mrb[0].mxu0 %v1139
      %v1281 = vpop.f32.mrb[0].mxu0
      %v1282 = vadd.f32 0.0, %v1281
      %v1283 = vpop.f32.mrb[0].mxu0
      %1284 = vmatprep.mubr.f32.mxu0 0.0
      %1285 = vmatmul.mubr.f32.gmra.mrb[0].mxu0 %v1141
      %v1286 = vpop.f32.mrb[0].mxu0
      %v1287 = vadd.f32 0.0, %v1286
      %v1288 = vpop.f32.mrb[0].mxu0
      %1289 = vmatprep.mubr.f32.mxu0 0.0
      %1290 = vmatmul.mubr.f32.gmra.mrb[0].mxu0 %v1143
      %v1291 = vpop.f32.mrb[0].mxu0
      %v1292 = vadd.f32 0.0, %v1291
      %v1293 = vpop.f32.mrb[0].mxu0
      %1294 = vmatprep.mubr.f32.mxu0 0.0
      %1295 = vmatmul.mubr.f32.gmra.mrb[0].mxu0 %v1145
      %v1296 = vpop.f32.mrb[0].mxu0
      %v1297 = vadd.f32 0.0, %v1296
      %v1298 = vpop.f32.mrb[0].mxu0
      %1299 = vmatprep.mubr.f32.mxu0 0.0
      %1300 = vmatmul.mubr.f32.gmra.mrb[0].mxu0 %v1147
      %v1301 = vpop.f32.mrb[0].mxu0
      %v1302 = vadd.f32 0.0, %v1301
      %v1303 = vpop.f32.mrb[0].mxu0
      %1304 = vmatprep.mubr.f32.mxu0 0.0
      %1305 = vmatmul.mubr.f32.gmra.mrb[0].mxu0 %v1149
      %v1306 = vpop.f32.mrb[0].mxu0
      %v1307 = vadd.f32 0.0, %v1306
      %v1308 = vpop.f32.mrb[0].mxu0
      %1309 = vmatprep.mubr.f32.mxu0 0.0
      %1310 = vmatmul.mubr.f32.gmra.mrb[0].mxu0 %v1151
      %v1311 = vpop.f32.mrb[0].mxu0
      %v1312 = vadd.f32 0.0, %v1311
      %v1313 = vpop.f32.mrb[0].mxu0
      %1314 = vmatprep.mubr.f32.mxu0 0.0
      %1315 = vmatmul.mubr.f32.gmra.mrb[0].mxu0 %v1153
      %v1316 = vpop.f32.mrb[0].mxu0
      %v1317 = vadd.f32 0.0, %v1316
      %v1318 = vpop.f32.mrb[0].mxu0
      %1319 = vmatprep.mubr.f32.mxu0 0.0
      %1320 = vmatmul.mubr.f32.gmra.mrb[0].mxu0 %v1155
      %v1321 = vpop.f32.mrb[0].mxu0
      %v1322 = vadd.f32 0.0, %v1321
      %v1323 = vpop.f32.mrb[0].mxu0
      %1324 = vmatprep.mubr.f32.mxu0 0.0
      %1325 = vmatmul.mubr.f32.gmra.mrb[0].mxu0 %v1157
      %v1326 = vpop.f32.mrb[0].mxu0
      %v1327 = vadd.f32 0.0, %v1326
      %v1328 = vpop.f32.mrb[0].mxu0
      %1329 = vmatprep.mubr.f32.mxu0 0.0
      %1330 = vmatmul.mubr.f32.gmra.mrb[0].mxu0 %v1159
      %v1331 = vpop.f32.mrb[0].mxu0
      %v1332 = vadd.f32 0.0, %v1331
      %v1333 = vpop.f32.mrb[0].mxu0
      %1334 = vmatprep.mubr.f32.mxu0 0.0
      %1335 = vmatmul.mubr.f32.gmra.mrb[0].mxu0 %v1161
      %v1336 = vpop.f32.mrb[0].mxu0
      %v1337 = vadd.f32 0.0, %v1336
      %v1338 = vpop.f32.mrb[0].mxu0
      %1339 = vmatprep.mubr.f32.mxu0 0.0
      %1340 = vmatmul.mubr.f32.gmra.mrb[0].mxu0 %v1163
      %v1341 = vpop.f32.mrb[0].mxu0
      %v1342 = vadd.f32 0.0, %v1341
      %v1343 = vpop.f32.mrb[0].mxu0
      %1344 = vmatprep.mubr.f32.mxu0 0.0
      %1345 = vmatmul.mubr.f32.gmra.mrb[0].mxu0 %v1165
      %v1346 = vpop.f32.mrb[0].mxu0
      %v1347 = vadd.f32 0.0, %v1346
      %v1348 = vpop.f32.mrb[0].mxu0
      %1349 = vmatprep.mubr.f32.mxu0 0.0
      %1350 = vmatmul.mubr.f32.gmra.mrb[0].mxu0 %v1167
      %v1351 = vpop.f32.mrb[0].mxu0
      %v1352 = vadd.f32 0.0, %v1351
      %v1353 = vpop.f32.mrb[0].mxu0
      %1354 = vmatprep.mubr.f32.mxu0 0.0
      %1355 = vmatmul.mubr.f32.gmra.mrb[0].mxu0 %v1169
      %v1356 = vpop.f32.mrb[0].mxu0
      %v1357 = vadd.f32 0.0, %v1356
      %v1358 = vpop.f32.mrb[0].mxu0
      %1359 = vmatprep.mubr.f32.mxu0 0.0
      %1360 = vmatmul.mubr.f32.gmra.mrb[0].mxu0 %v1171
      %v1361 = vpop.f32.mrb[0].mxu0
      %v1362 = vadd.f32 0.0, %v1361
      %v1363 = vpop.f32.mrb[0].mxu0
      %1364 = vmatprep.mubr.f32.mxu0 0.0
      %1365 = vmatmul.mubr.f32.gmra.mrb[0].mxu0 %v1173
      %v1366 = vpop.f32.mrb[0].mxu0
      %v1367 = vadd.f32 0.0, %v1366
      %v1368 = vpop.f32.mrb[0].mxu0
      %1369 = vmatprep.mubr.f32.mxu0 0.0
      %1370 = vmatmul.mubr.f32.gmra.mrb[0].mxu0 %v1175
      %v1371 = vpop.f32.mrb[0].mxu0
      %v1372 = vadd.f32 0.0, %v1371
      %v1373 = vpop.f32.mrb[0].mxu0
      %1374 = vmatprep.mubr.f32.mxu0 0.0
      %1375 = vmatmul.mubr.f32.gmra.mrb[0].mxu0 %v1177
      %v1376 = vpop.f32.mrb[0].mxu0
      %v1377 = vadd.f32 0.0, %v1376
      %v1378 = vpop.f32.mrb[0].mxu0
      %1379 = vmatprep.mubr.f32.mxu0 0.0
      %1380 = vmatmul.mubr.f32.gmra.mrb[0].mxu0 %v1179
      %v1381 = vpop.f32.mrb[0].mxu0
      %v1382 = vadd.f32 0.0, %v1381
      %v1383 = vpop.f32.mrb[0].mxu0
      %1384 = vmatprep.mubr.f32.mxu0 0.0
      %1385 = vmatmul.mubr.f32.gmra.mrb[0].mxu0 %v1181
      %v1386 = vpop.f32.mrb[0].mxu0
      %v1387 = vadd.f32 0.0, %v1386
      %v1388 = vpop.f32.mrb[0].mxu0
      %1389 = vmatprep.mubr.f32.mxu0 0.0
      %1390 = vmatmul.mubr.f32.gmra.mrb[0].mxu0 %v1183
      %v1391 = vpop.f32.mrb[0].mxu0
      %v1392 = vadd.f32 0.0, %v1391
      %v1393 = vpop.f32.mrb[0].mxu0
      %1394 = vmatprep.mubr.f32.mxu0 0.0
      %1395 = vmatmul.mubr.f32.gmra.mrb[0].mxu0 %v1185
      %v1396 = vpop.f32.mrb[0].mxu0
      %v1397 = vadd.f32 0.0, %v1396
      %v1398 = vpop.f32.mrb[0].mxu0
      %1399 = vmatprep.mubr.f32.mxu0 0.0
      %1400 = vmatmul.mubr.f32.gmra.mrb[0].mxu0 %v1187
      %v1401 = vpop.f32.mrb[0].mxu0
      %v1402 = vadd.f32 0.0, %v1401
      %v1403 = vpop.f32.mrb[0].mxu0
      %1404 = vmatprep.mubr.f32.mxu0 0.0
      %1405 = vmatmul.mubr.f32.gmra.mrb[0].mxu0 %v1189
      %v1406 = vpop.f32.mrb[0].mxu0
      %v1407 = vadd.f32 0.0, %v1406
      %v1408 = vpop.f32.mrb[0].mxu0
      %1409 = vmatprep.mubr.f32.mxu0 0.0
      %1410 = vmatmul.mubr.f32.gmra.mrb[0].mxu0 %v1191
      %v1411 = vpop.f32.mrb[0].mxu0
      %v1412 = vadd.f32 0.0, %v1411
      %v1413 = vpop.f32.mrb[0].mxu0
      %1414 = vmatprep.mubr.f32.mxu0 0.0
      %1415 = vmatmul.mubr.f32.gmra.mrb[0].mxu0 %v1193
      %v1416 = vpop.f32.mrb[0].mxu0
      %v1417 = vadd.f32 0.0, %v1416
      %v1418 = vpop.f32.mrb[0].mxu0
      %1419 = vmatprep.mubr.f32.mxu0 0.0
      %1420 = vmatmul.mubr.f32.gmra.mrb[0].mxu0 %v1195
      %v1421 = vpop.f32.mrb[0].mxu0
      %v1422 = vadd.f32 0.0, %v1421
      %v1423 = vpop.f32.mrb[0].mxu0
      %1424 = vdwg.mxu0
      %v1425 = vadd.f32 %v1020, %v1267
      %v1426 = vadd.f32 %v1021, %v1272
      %v1427 = vadd.f32 %v1022, %v1277
      %v1428 = vadd.f32 %v1023, %v1282
      %v1429 = vadd.f32 %v1024, %v1287
      %v1430 = vadd.f32 %v1025, %v1292
      %v1431 = vadd.f32 %v1026, %v1297
      %v1432 = vadd.f32 %v1027, %v1302
      %v1433 = vadd.f32 %v1028, %v1307
      %v1434 = vadd.f32 %v1029, %v1312
      %v1435 = vadd.f32 %v1030, %v1317
      %v1436 = vadd.f32 %v1031, %v1322
      %v1437 = vadd.f32 %v1032, %v1327
      %v1438 = vadd.f32 %v1033, %v1332
      %v1439 = vadd.f32 %v1034, %v1337
      %v1440 = vadd.f32 %v1035, %v1342
      %v1441 = vadd.f32 %v1036, %v1347
      %v1442 = vadd.f32 %v1037, %v1352
      %v1443 = vadd.f32 %v1038, %v1357
      %v1444 = vadd.f32 %v1039, %v1362
      %v1445 = vadd.f32 %v1040, %v1367
      %v1446 = vadd.f32 %v1041, %v1372
      %v1447 = vadd.f32 %v1042, %v1377
      %v1448 = vadd.f32 %v1043, %v1382
      %v1449 = vadd.f32 %v1044, %v1387
      %v1450 = vadd.f32 %v1045, %v1392
      %v1451 = vadd.f32 %v1046, %v1397
      %v1452 = vadd.f32 %v1047, %v1402
      %v1453 = vadd.f32 %v1048, %v1407
      %v1454 = vadd.f32 %v1049, %v1412
      %v1455 = vadd.f32 %v1050, %v1417
      %v1456 = vadd.f32 %v1051, %v1422
      %v1457 = vrot.slane %v262, 4
      %v1459 = vsel %vm273, %v255, 0
      %v1462 = vsel %vm273, %v256, 0
      %v1464 = vsel %vm370, %v1457, 0
      %1466 = vmatprep.subr.mxu0 0.0
      %1467 = vmatpush1.msra.mxu0 %v1464
      %1468 = vmatprep.subr.mxu0 0.0
      %1469 = vmatpush1.msra.mxu0 0.0
      %1470 = vmatprep.subr.mxu0 0.0
      %1471 = vmatpush1.msra.mxu0 0.0
      %1472 = vmatprep.subr.mxu0 0.0
      %1473 = vmatpush1.msra.mxu0 0.0
      %1474 = vmatprep.subr.mxu0 0.0
      %1475 = vmatpush1.msra.mxu0 0.0
      %1476 = vmatprep.subr.mxu0 0.0
      %1477 = vmatpush1.msra.mxu0 0.0
      %1478 = vmatprep.subr.mxu0 0.0
      %1479 = vmatpush1.msra.mxu0 0.0
      %1480 = vmatprep.subr.mxu0 0.0
      %1481 = vmatpush1.msra.mxu0 0.0
      %1482 = vmatprep.subr.mxu0 0.0
      %1483 = vmatpush1.msra.mxu0 0.0
      %1484 = vmatprep.subr.mxu0 0.0
      %1485 = vmatpush1.msra.mxu0 0.0
      %1486 = vmatprep.subr.mxu0 0.0
      %1487 = vmatpush1.msra.mxu0 0.0
      %1488 = vmatprep.subr.mxu0 0.0
      %1489 = vmatpush1.msra.mxu0 0.0
      %1490 = vmatprep.subr.mxu0 0.0
      %1491 = vmatpush1.msra.mxu0 0.0
      %1492 = vmatprep.subr.mxu0 0.0
      %1493 = vmatpush1.msra.mxu0 0.0
      %1494 = vmatprep.subr.mxu0 0.0
      %1495 = vmatpush1.msra.mxu0 0.0
      %1496 = vmatprep.subr.mxu0 0.0
      %1497 = vmatpush1.msra.mxu0 0.0
      %1498 = vmatprep.subr.mxu0 0.0
      %1499 = vmatpush1.msra.mxu0 0.0
      %1500 = vmatprep.subr.mxu0 0.0
      %1501 = vmatpush1.msra.mxu0 0.0
      %1502 = vmatprep.subr.mxu0 0.0
      %1503 = vmatpush1.msra.mxu0 0.0
      %1504 = vmatprep.subr.mxu0 0.0
      %1505 = vmatpush1.msra.mxu0 0.0
      %1506 = vmatprep.subr.mxu0 0.0
      %1507 = vmatpush1.msra.mxu0 0.0
      %1508 = vmatprep.subr.mxu0 0.0
      %1509 = vmatpush1.msra.mxu0 0.0
      %1510 = vmatprep.subr.mxu0 0.0
      %1511 = vmatpush1.msra.mxu0 0.0
      %1512 = vmatprep.subr.mxu0 0.0
      %1513 = vmatpush1.msra.mxu0 0.0
      %1514 = vmatprep.subr.mxu0 0.0
      %1515 = vmatpush1.msra.mxu0 0.0
      %1516 = vmatprep.subr.mxu0 0.0
      %1517 = vmatpush1.msra.mxu0 0.0
      %1518 = vmatprep.subr.mxu0 0.0
      %1519 = vmatpush1.msra.mxu0 0.0
      %1520 = vmatprep.subr.mxu0 0.0
      %1521 = vmatpush1.msra.mxu0 0.0
      %1522 = vmatprep.subr.mxu0 0.0
      %1523 = vmatpush1.msra.mxu0 0.0
      %1524 = vmatprep.subr.mxu0 0.0
      %1525 = vmatpush1.msra.mxu0 0.0
      %1526 = vmatprep.subr.mxu0 0.0
      %1527 = vmatpush1.msra.mxu0 0.0
      %1528 = vmatprep.subr.mxu0 0.0
      %1529 = vmatpush1.msra.mxu0 0.0
      %1530 = vmatprep.mubr.f32.mxu0 0.0
      %1531 = vmatmul.mubr.f32.gmra.mrb[0].mxu0 %v281
      %v1532 = vpop.f32.mrb[0].mxu0
      %v1533 = vadd.f32 0.0, %v1532
      %v1534 = vpop.f32.mrb[0].mxu0
      %1535 = vmatprep.mubr.f32.mxu0 0.0
      %1536 = vmatmul.mubr.f32.gmra.mrb[0].mxu0 %v284
      %v1537 = vpop.f32.mrb[0].mxu0
      %v1538 = vadd.f32 0.0, %v1537
      %v1539 = vpop.f32.mrb[0].mxu0
      %1540 = vmatprep.mubr.f32.mxu0 0.0
      %1541 = vmatmul.mubr.f32.gmra.mrb[0].mxu0 %v287
      %v1542 = vpop.f32.mrb[0].mxu0
      %v1543 = vadd.f32 0.0, %v1542
      %v1544 = vpop.f32.mrb[0].mxu0
      %1545 = vmatprep.mubr.f32.mxu0 0.0
      %1546 = vmatmul.mubr.f32.gmra.mrb[0].mxu0 %v290
      %v1547 = vpop.f32.mrb[0].mxu0
      %v1548 = vadd.f32 0.0, %v1547
      %v1549 = vpop.f32.mrb[0].mxu0
      %1550 = vmatprep.mubr.f32.mxu0 0.0
      %1551 = vmatmul.mubr.f32.gmra.mrb[0].mxu0 %v293
      %v1552 = vpop.f32.mrb[0].mxu0
      %v1553 = vadd.f32 0.0, %v1552
      %v1554 = vpop.f32.mrb[0].mxu0
      %1555 = vmatprep.mubr.f32.mxu0 0.0
      %1556 = vmatmul.mubr.f32.gmra.mrb[0].mxu0 %v296
      %v1557 = vpop.f32.mrb[0].mxu0
      %v1558 = vadd.f32 0.0, %v1557
      %v1559 = vpop.f32.mrb[0].mxu0
      %1560 = vmatprep.mubr.f32.mxu0 0.0
      %1561 = vmatmul.mubr.f32.gmra.mrb[0].mxu0 %v299
      %v1562 = vpop.f32.mrb[0].mxu0
      %v1563 = vadd.f32 0.0, %v1562
      %v1564 = vpop.f32.mrb[0].mxu0
      %1565 = vmatprep.mubr.f32.mxu0 0.0
      %1566 = vmatmul.mubr.f32.gmra.mrb[0].mxu0 %v302
      %v1567 = vpop.f32.mrb[0].mxu0
      %v1568 = vadd.f32 0.0, %v1567
      %v1569 = vpop.f32.mrb[0].mxu0
      %1570 = vmatprep.mubr.f32.mxu0 0.0
      %1571 = vmatmul.mubr.f32.gmra.mrb[0].mxu0 %v305
      %v1572 = vpop.f32.mrb[0].mxu0
      %v1573 = vadd.f32 0.0, %v1572
      %v1574 = vpop.f32.mrb[0].mxu0
      %1575 = vmatprep.mubr.f32.mxu0 0.0
      %1576 = vmatmul.mubr.f32.gmra.mrb[0].mxu0 %v308
      %v1577 = vpop.f32.mrb[0].mxu0
      %v1578 = vadd.f32 0.0, %v1577
      %v1579 = vpop.f32.mrb[0].mxu0
      %1580 = vmatprep.mubr.f32.mxu0 0.0
      %1581 = vmatmul.mubr.f32.gmra.mrb[0].mxu0 %v311
      %v1582 = vpop.f32.mrb[0].mxu0
      %v1583 = vadd.f32 0.0, %v1582
      %v1584 = vpop.f32.mrb[0].mxu0
      %1585 = vmatprep.mubr.f32.mxu0 0.0
      %1586 = vmatmul.mubr.f32.gmra.mrb[0].mxu0 %v314
      %v1587 = vpop.f32.mrb[0].mxu0
      %v1588 = vadd.f32 0.0, %v1587
      %v1589 = vpop.f32.mrb[0].mxu0
      %1590 = vmatprep.mubr.f32.mxu0 0.0
      %1591 = vmatmul.mubr.f32.gmra.mrb[0].mxu0 %v317
      %v1592 = vpop.f32.mrb[0].mxu0
      %v1593 = vadd.f32 0.0, %v1592
      %v1594 = vpop.f32.mrb[0].mxu0
      %1595 = vmatprep.mubr.f32.mxu0 0.0
      %1596 = vmatmul.mubr.f32.gmra.mrb[0].mxu0 %v320
      %v1597 = vpop.f32.mrb[0].mxu0
      %v1598 = vadd.f32 0.0, %v1597
      %v1599 = vpop.f32.mrb[0].mxu0
      %1600 = vmatprep.mubr.f32.mxu0 0.0
      %1601 = vmatmul.mubr.f32.gmra.mrb[0].mxu0 %v323
      %v1602 = vpop.f32.mrb[0].mxu0
      %v1603 = vadd.f32 0.0, %v1602
      %v1604 = vpop.f32.mrb[0].mxu0
      %1605 = vmatprep.mubr.f32.mxu0 0.0
      %1606 = vmatmul.mubr.f32.gmra.mrb[0].mxu0 %v326
      %v1607 = vpop.f32.mrb[0].mxu0
      %v1608 = vadd.f32 0.0, %v1607
      %v1609 = vpop.f32.mrb[0].mxu0
      %1610 = vmatprep.mubr.f32.mxu0 0.0
      %1611 = vmatmul.mubr.f32.gmra.mrb[0].mxu0 %v329
      %v1612 = vpop.f32.mrb[0].mxu0
      %v1613 = vadd.f32 0.0, %v1612
      %v1614 = vpop.f32.mrb[0].mxu0
      %1615 = vmatprep.mubr.f32.mxu0 0.0
      %1616 = vmatmul.mubr.f32.gmra.mrb[0].mxu0 %v332
      %v1617 = vpop.f32.mrb[0].mxu0
      %v1618 = vadd.f32 0.0, %v1617
      %v1619 = vpop.f32.mrb[0].mxu0
      %1620 = vmatprep.mubr.f32.mxu0 0.0
      %1621 = vmatmul.mubr.f32.gmra.mrb[0].mxu0 %v335
      %v1622 = vpop.f32.mrb[0].mxu0
      %v1623 = vadd.f32 0.0, %v1622
      %v1624 = vpop.f32.mrb[0].mxu0
      %1625 = vmatprep.mubr.f32.mxu0 0.0
      %1626 = vmatmul.mubr.f32.gmra.mrb[0].mxu0 %v338
      %v1627 = vpop.f32.mrb[0].mxu0
      %v1628 = vadd.f32 0.0, %v1627
      %v1629 = vpop.f32.mrb[0].mxu0
      %1630 = vmatprep.mubr.f32.mxu0 0.0
      %1631 = vmatmul.mubr.f32.gmra.mrb[0].mxu0 %v341
      %v1632 = vpop.f32.mrb[0].mxu0
      %v1633 = vadd.f32 0.0, %v1632
      %v1634 = vpop.f32.mrb[0].mxu0
      %1635 = vmatprep.mubr.f32.mxu0 0.0
      %1636 = vmatmul.mubr.f32.gmra.mrb[0].mxu0 %v344
      %v1637 = vpop.f32.mrb[0].mxu0
      %v1638 = vadd.f32 0.0, %v1637
      %v1639 = vpop.f32.mrb[0].mxu0
      %1640 = vmatprep.mubr.f32.mxu0 0.0
      %1641 = vmatmul.mubr.f32.gmra.mrb[0].mxu0 %v347
      %v1642 = vpop.f32.mrb[0].mxu0
      %v1643 = vadd.f32 0.0, %v1642
      %v1644 = vpop.f32.mrb[0].mxu0
      %1645 = vmatprep.mubr.f32.mxu0 0.0
      %1646 = vmatmul.mubr.f32.gmra.mrb[0].mxu0 %v350
      %v1647 = vpop.f32.mrb[0].mxu0
      %v1648 = vadd.f32 0.0, %v1647
      %v1649 = vpop.f32.mrb[0].mxu0
      %1650 = vmatprep.mubr.f32.mxu0 0.0
      %1651 = vmatmul.mubr.f32.gmra.mrb[0].mxu0 %v353
      %v1652 = vpop.f32.mrb[0].mxu0
      %v1653 = vadd.f32 0.0, %v1652
      %v1654 = vpop.f32.mrb[0].mxu0
      %1655 = vmatprep.mubr.f32.mxu0 0.0
      %1656 = vmatmul.mubr.f32.gmra.mrb[0].mxu0 %v356
      %v1657 = vpop.f32.mrb[0].mxu0
      %v1658 = vadd.f32 0.0, %v1657
      %v1659 = vpop.f32.mrb[0].mxu0
      %1660 = vmatprep.mubr.f32.mxu0 0.0
      %1661 = vmatmul.mubr.f32.gmra.mrb[0].mxu0 %v359
      %v1662 = vpop.f32.mrb[0].mxu0
      %v1663 = vadd.f32 0.0, %v1662
      %v1664 = vpop.f32.mrb[0].mxu0
      %1665 = vmatprep.mubr.f32.mxu0 0.0
      %1666 = vmatmul.mubr.f32.gmra.mrb[0].mxu0 %v362
      %v1667 = vpop.f32.mrb[0].mxu0
      %v1668 = vadd.f32 0.0, %v1667
      %v1669 = vpop.f32.mrb[0].mxu0
      %1670 = vmatprep.mubr.f32.mxu0 0.0
      %1671 = vmatmul.mubr.f32.gmra.mrb[0].mxu0 %v365
      %v1672 = vpop.f32.mrb[0].mxu0
      %v1673 = vadd.f32 0.0, %v1672
      %v1674 = vpop.f32.mrb[0].mxu0
      %1675 = vmatprep.mubr.f32.mxu0 0.0
      %1676 = vmatmul.mubr.f32.gmra.mrb[0].mxu0 %v368
      %v1677 = vpop.f32.mrb[0].mxu0
      %v1678 = vadd.f32 0.0, %v1677
      %v1679 = vpop.f32.mrb[0].mxu0
      %1680 = vmatprep.mubr.f32.mxu0 0.0
      %1681 = vmatmul.mubr.f32.gmra.mrb[0].mxu0 %v1459
      %v1682 = vpop.f32.mrb[0].mxu0
      %v1683 = vadd.f32 0.0, %v1682
      %v1684 = vpop.f32.mrb[0].mxu0
      %1685 = vmatprep.mubr.f32.mxu0 0.0
      %1686 = vmatmul.mubr.f32.gmra.mrb[0].mxu0 %v1462
      %v1687 = vpop.f32.mrb[0].mxu0
      %v1688 = vadd.f32 0.0, %v1687
      %v1689 = vpop.f32.mrb[0].mxu0
      %1690 = vdwg.mxu0
      %v1691 = vadd.f32 %v1425, %v1533
      %v1692 = vadd.f32 %v1426, %v1538
      %v1693 = vadd.f32 %v1427, %v1543
      %v1694 = vadd.f32 %v1428, %v1548
      %v1695 = vadd.f32 %v1429, %v1553
      %v1696 = vadd.f32 %v1430, %v1558
      %v1697 = vadd.f32 %v1431, %v1563
      %v1698 = vadd.f32 %v1432, %v1568
      %v1699 = vadd.f32 %v1433, %v1573
      %v1700 = vadd.f32 %v1434, %v1578
      %v1701 = vadd.f32 %v1435, %v1583
      %v1702 = vadd.f32 %v1436, %v1588
      %v1703 = vadd.f32 %v1437, %v1593
      %v1704 = vadd.f32 %v1438, %v1598
      %v1705 = vadd.f32 %v1439, %v1603
      %v1706 = vadd.f32 %v1440, %v1608
      %v1707 = vadd.f32 %v1441, %v1613
      %v1708 = vadd.f32 %v1442, %v1618
      %v1709 = vadd.f32 %v1443, %v1623
      %v1710 = vadd.f32 %v1444, %v1628
      %v1711 = vadd.f32 %v1445, %v1633
      %v1712 = vadd.f32 %v1446, %v1638
      %v1713 = vadd.f32 %v1447, %v1643
      %v1714 = vadd.f32 %v1448, %v1648
      %v1715 = vadd.f32 %v1449, %v1653
      %v1716 = vadd.f32 %v1450, %v1658
      %v1717 = vadd.f32 %v1451, %v1663
      %v1718 = vadd.f32 %v1452, %v1668
      %v1719 = vadd.f32 %v1453, %v1673
      %v1720 = vadd.f32 %v1454, %v1678
      %v1721 = vadd.f32 %v1455, %v1683
      %v1722 = vadd.f32 %v1456, %v1688
      %v1724 = vrot.slane %v255, 1
      %v1725 = vrot.slane %v256, 1
      %v1726 = vsel %vm647, %v1724, %v1725
      %v1727 = vrot.slane %v257, 1
      %v1728 = vsel %vm647, %v1725, %v1727
      %v1729 = vsel %vm273, %v1726, 0
      %v1731 = vsel %vm273, %v1728, 0
      %v1734 = vsel %vm370, %v263, 0
      %1736 = vmatprep.subr.mxu0 0.0
      %1737 = vmatpush1.msra.mxu0 %v1734
      %1738 = vmatprep.subr.mxu0 0.0
      %1739 = vmatpush1.msra.mxu0 0.0
      %1740 = vmatprep.subr.mxu0 0.0
      %1741 = vmatpush1.msra.mxu0 0.0
      %1742 = vmatprep.subr.mxu0 0.0
      %1743 = vmatpush1.msra.mxu0 0.0
      %1744 = vmatprep.subr.mxu0 0.0
      %1745 = vmatpush1.msra.mxu0 0.0
      %1746 = vmatprep.subr.mxu0 0.0
      %1747 = vmatpush1.msra.mxu0 0.0
      %1748 = vmatprep.subr.mxu0 0.0
      %1749 = vmatpush1.msra.mxu0 0.0
      %1750 = vmatprep.subr.mxu0 0.0
      %1751 = vmatpush1.msra.mxu0 0.0
      %1752 = vmatprep.subr.mxu0 0.0
      %1753 = vmatpush1.msra.mxu0 0.0
      %1754 = vmatprep.subr.mxu0 0.0
      %1755 = vmatpush1.msra.mxu0 0.0
      %1756 = vmatprep.subr.mxu0 0.0
      %1757 = vmatpush1.msra.mxu0 0.0
      %1758 = vmatprep.subr.mxu0 0.0
      %1759 = vmatpush1.msra.mxu0 0.0
      %1760 = vmatprep.subr.mxu0 0.0
      %1761 = vmatpush1.msra.mxu0 0.0
      %1762 = vmatprep.subr.mxu0 0.0
      %1763 = vmatpush1.msra.mxu0 0.0
      %1764 = vmatprep.subr.mxu0 0.0
      %1765 = vmatpush1.msra.mxu0 0.0
      %1766 = vmatprep.subr.mxu0 0.0
      %1767 = vmatpush1.msra.mxu0 0.0
      %1768 = vmatprep.subr.mxu0 0.0
      %1769 = vmatpush1.msra.mxu0 0.0
      %1770 = vmatprep.subr.mxu0 0.0
      %1771 = vmatpush1.msra.mxu0 0.0
      %1772 = vmatprep.subr.mxu0 0.0
      %1773 = vmatpush1.msra.mxu0 0.0
      %1774 = vmatprep.subr.mxu0 0.0
      %1775 = vmatpush1.msra.mxu0 0.0
      %1776 = vmatprep.subr.mxu0 0.0
      %1777 = vmatpush1.msra.mxu0 0.0
      %1778 = vmatprep.subr.mxu0 0.0
      %1779 = vmatpush1.msra.mxu0 0.0
      %1780 = vmatprep.subr.mxu0 0.0
      %1781 = vmatpush1.msra.mxu0 0.0
      %1782 = vmatprep.subr.mxu0 0.0
      %1783 = vmatpush1.msra.mxu0 0.0
      %1784 = vmatprep.subr.mxu0 0.0
      %1785 = vmatpush1.msra.mxu0 0.0
      %1786 = vmatprep.subr.mxu0 0.0
      %1787 = vmatpush1.msra.mxu0 0.0
      %1788 = vmatprep.subr.mxu0 0.0
      %1789 = vmatpush1.msra.mxu0 0.0
      %1790 = vmatprep.subr.mxu0 0.0
      %1791 = vmatpush1.msra.mxu0 0.0
      %1792 = vmatprep.subr.mxu0 0.0
      %1793 = vmatpush1.msra.mxu0 0.0
      %1794 = vmatprep.subr.mxu0 0.0
      %1795 = vmatpush1.msra.mxu0 0.0
      %1796 = vmatprep.subr.mxu0 0.0
      %1797 = vmatpush1.msra.mxu0 0.0
      %1798 = vmatprep.subr.mxu0 0.0
      %1799 = vmatpush1.msra.mxu0 0.0
      %1800 = vmatprep.mubr.f32.mxu0 0.0
      %1801 = vmatmul.mubr.f32.gmra.mrb[0].mxu0 %v733
      %v1802 = vpop.f32.mrb[0].mxu0
      %v1803 = vadd.f32 0.0, %v1802
      %v1804 = vpop.f32.mrb[0].mxu0
      %1805 = vmatprep.mubr.f32.mxu0 0.0
      %1806 = vmatmul.mubr.f32.gmra.mrb[0].mxu0 %v735
      %v1807 = vpop.f32.mrb[0].mxu0
      %v1808 = vadd.f32 0.0, %v1807
      %v1809 = vpop.f32.mrb[0].mxu0
      %1810 = vmatprep.mubr.f32.mxu0 0.0
      %1811 = vmatmul.mubr.f32.gmra.mrb[0].mxu0 %v737
      %v1812 = vpop.f32.mrb[0].mxu0
      %v1813 = vadd.f32 0.0, %v1812
      %v1814 = vpop.f32.mrb[0].mxu0
      %1815 = vmatprep.mubr.f32.mxu0 0.0
      %1816 = vmatmul.mubr.f32.gmra.mrb[0].mxu0 %v739
      %v1817 = vpop.f32.mrb[0].mxu0
      %v1818 = vadd.f32 0.0, %v1817
      %v1819 = vpop.f32.mrb[0].mxu0
      %1820 = vmatprep.mubr.f32.mxu0 0.0
      %1821 = vmatmul.mubr.f32.gmra.mrb[0].mxu0 %v741
      %v1822 = vpop.f32.mrb[0].mxu0
      %v1823 = vadd.f32 0.0, %v1822
      %v1824 = vpop.f32.mrb[0].mxu0
      %1825 = vmatprep.mubr.f32.mxu0 0.0
      %1826 = vmatmul.mubr.f32.gmra.mrb[0].mxu0 %v743
      %v1827 = vpop.f32.mrb[0].mxu0
      %v1828 = vadd.f32 0.0, %v1827
      %v1829 = vpop.f32.mrb[0].mxu0
      %1830 = vmatprep.mubr.f32.mxu0 0.0
      %1831 = vmatmul.mubr.f32.gmra.mrb[0].mxu0 %v745
      %v1832 = vpop.f32.mrb[0].mxu0
      %v1833 = vadd.f32 0.0, %v1832
      %v1834 = vpop.f32.mrb[0].mxu0
      %1835 = vmatprep.mubr.f32.mxu0 0.0
      %1836 = vmatmul.mubr.f32.gmra.mrb[0].mxu0 %v747
      %v1837 = vpop.f32.mrb[0].mxu0
      %v1838 = vadd.f32 0.0, %v1837
      %v1839 = vpop.f32.mrb[0].mxu0
      %1840 = vmatprep.mubr.f32.mxu0 0.0
      %1841 = vmatmul.mubr.f32.gmra.mrb[0].mxu0 %v749
      %v1842 = vpop.f32.mrb[0].mxu0
      %v1843 = vadd.f32 0.0, %v1842
      %v1844 = vpop.f32.mrb[0].mxu0
      %1845 = vmatprep.mubr.f32.mxu0 0.0
      %1846 = vmatmul.mubr.f32.gmra.mrb[0].mxu0 %v751
      %v1847 = vpop.f32.mrb[0].mxu0
      %v1848 = vadd.f32 0.0, %v1847
      %v1849 = vpop.f32.mrb[0].mxu0
      %1850 = vmatprep.mubr.f32.mxu0 0.0
      %1851 = vmatmul.mubr.f32.gmra.mrb[0].mxu0 %v753
      %v1852 = vpop.f32.mrb[0].mxu0
      %v1853 = vadd.f32 0.0, %v1852
      %v1854 = vpop.f32.mrb[0].mxu0
      %1855 = vmatprep.mubr.f32.mxu0 0.0
      %1856 = vmatmul.mubr.f32.gmra.mrb[0].mxu0 %v755
      %v1857 = vpop.f32.mrb[0].mxu0
      %v1858 = vadd.f32 0.0, %v1857
      %v1859 = vpop.f32.mrb[0].mxu0
      %1860 = vmatprep.mubr.f32.mxu0 0.0
      %1861 = vmatmul.mubr.f32.gmra.mrb[0].mxu0 %v757
      %v1862 = vpop.f32.mrb[0].mxu0
      %v1863 = vadd.f32 0.0, %v1862
      %v1864 = vpop.f32.mrb[0].mxu0
      %1865 = vmatprep.mubr.f32.mxu0 0.0
      %1866 = vmatmul.mubr.f32.gmra.mrb[0].mxu0 %v759
      %v1867 = vpop.f32.mrb[0].mxu0
      %v1868 = vadd.f32 0.0, %v1867
      %v1869 = vpop.f32.mrb[0].mxu0
      %1870 = vmatprep.mubr.f32.mxu0 0.0
      %1871 = vmatmul.mubr.f32.gmra.mrb[0].mxu0 %v761
      %v1872 = vpop.f32.mrb[0].mxu0
      %v1873 = vadd.f32 0.0, %v1872
      %v1874 = vpop.f32.mrb[0].mxu0
      %1875 = vmatprep.mubr.f32.mxu0 0.0
      %1876 = vmatmul.mubr.f32.gmra.mrb[0].mxu0 %v763
      %v1877 = vpop.f32.mrb[0].mxu0
      %v1878 = vadd.f32 0.0, %v1877
      %v1879 = vpop.f32.mrb[0].mxu0
      %1880 = vmatprep.mubr.f32.mxu0 0.0
      %1881 = vmatmul.mubr.f32.gmra.mrb[0].mxu0 %v765
      %v1882 = vpop.f32.mrb[0].mxu0
      %v1883 = vadd.f32 0.0, %v1882
      %v1884 = vpop.f32.mrb[0].mxu0
      %1885 = vmatprep.mubr.f32.mxu0 0.0
      %1886 = vmatmul.mubr.f32.gmra.mrb[0].mxu0 %v767
      %v1887 = vpop.f32.mrb[0].mxu0
      %v1888 = vadd.f32 0.0, %v1887
      %v1889 = vpop.f32.mrb[0].mxu0
      %1890 = vmatprep.mubr.f32.mxu0 0.0
      %1891 = vmatmul.mubr.f32.gmra.mrb[0].mxu0 %v769
      %v1892 = vpop.f32.mrb[0].mxu0
      %v1893 = vadd.f32 0.0, %v1892
      %v1894 = vpop.f32.mrb[0].mxu0
      %1895 = vmatprep.mubr.f32.mxu0 0.0
      %1896 = vmatmul.mubr.f32.gmra.mrb[0].mxu0 %v771
      %v1897 = vpop.f32.mrb[0].mxu0
      %v1898 = vadd.f32 0.0, %v1897
      %v1899 = vpop.f32.mrb[0].mxu0
      %1900 = vmatprep.mubr.f32.mxu0 0.0
      %1901 = vmatmul.mubr.f32.gmra.mrb[0].mxu0 %v773
      %v1902 = vpop.f32.mrb[0].mxu0
      %v1903 = vadd.f32 0.0, %v1902
      %v1904 = vpop.f32.mrb[0].mxu0
      %1905 = vmatprep.mubr.f32.mxu0 0.0
      %1906 = vmatmul.mubr.f32.gmra.mrb[0].mxu0 %v775
      %v1907 = vpop.f32.mrb[0].mxu0
      %v1908 = vadd.f32 0.0, %v1907
      %v1909 = vpop.f32.mrb[0].mxu0
      %1910 = vmatprep.mubr.f32.mxu0 0.0
      %1911 = vmatmul.mubr.f32.gmra.mrb[0].mxu0 %v777
      %v1912 = vpop.f32.mrb[0].mxu0
      %v1913 = vadd.f32 0.0, %v1912
      %v1914 = vpop.f32.mrb[0].mxu0
      %1915 = vmatprep.mubr.f32.mxu0 0.0
      %1916 = vmatmul.mubr.f32.gmra.mrb[0].mxu0 %v779
      %v1917 = vpop.f32.mrb[0].mxu0
      %v1918 = vadd.f32 0.0, %v1917
      %v1919 = vpop.f32.mrb[0].mxu0
      %1920 = vmatprep.mubr.f32.mxu0 0.0
      %1921 = vmatmul.mubr.f32.gmra.mrb[0].mxu0 %v781
      %v1922 = vpop.f32.mrb[0].mxu0
      %v1923 = vadd.f32 0.0, %v1922
      %v1924 = vpop.f32.mrb[0].mxu0
      %1925 = vmatprep.mubr.f32.mxu0 0.0
      %1926 = vmatmul.mubr.f32.gmra.mrb[0].mxu0 %v783
      %v1927 = vpop.f32.mrb[0].mxu0
      %v1928 = vadd.f32 0.0, %v1927
      %v1929 = vpop.f32.mrb[0].mxu0
      %1930 = vmatprep.mubr.f32.mxu0 0.0
      %1931 = vmatmul.mubr.f32.gmra.mrb[0].mxu0 %v785
      %v1932 = vpop.f32.mrb[0].mxu0
      %v1933 = vadd.f32 0.0, %v1932
      %v1934 = vpop.f32.mrb[0].mxu0
      %1935 = vmatprep.mubr.f32.mxu0 0.0
      %1936 = vmatmul.mubr.f32.gmra.mrb[0].mxu0 %v787
      %v1937 = vpop.f32.mrb[0].mxu0
      %v1938 = vadd.f32 0.0, %v1937
      %v1939 = vpop.f32.mrb[0].mxu0
      %1940 = vmatprep.mubr.f32.mxu0 0.0
      %1941 = vmatmul.mubr.f32.gmra.mrb[0].mxu0 %v789
      %v1942 = vpop.f32.mrb[0].mxu0
      %v1943 = vadd.f32 0.0, %v1942
      %v1944 = vpop.f32.mrb[0].mxu0
      %1945 = vmatprep.mubr.f32.mxu0 0.0
      %1946 = vmatmul.mubr.f32.gmra.mrb[0].mxu0 %v791
      %v1947 = vpop.f32.mrb[0].mxu0
      %v1948 = vadd.f32 0.0, %v1947
      %v1949 = vpop.f32.mrb[0].mxu0
      %1950 = vmatprep.mubr.f32.mxu0 0.0
      %1951 = vmatmul.mubr.f32.gmra.mrb[0].mxu0 %v1729
      %v1952 = vpop.f32.mrb[0].mxu0
      %v1953 = vadd.f32 0.0, %v1952
      %v1954 = vpop.f32.mrb[0].mxu0
      %1955 = vmatprep.mubr.f32.mxu0 0.0
      %1956 = vmatmul.mubr.f32.gmra.mrb[0].mxu0 %v1731
      %v1957 = vpop.f32.mrb[0].mxu0
      %v1958 = vadd.f32 0.0, %v1957
      %v1959 = vpop.f32.mrb[0].mxu0
      %1960 = vdwg.mxu0
      %v1961 = vadd.f32 %v1691, %v1803
      %v1962 = vadd.f32 %v1692, %v1808
      %v1963 = vadd.f32 %v1693, %v1813
      %v1964 = vadd.f32 %v1694, %v1818
      %v1965 = vadd.f32 %v1695, %v1823
      %v1966 = vadd.f32 %v1696, %v1828
      %v1967 = vadd.f32 %v1697, %v1833
      %v1968 = vadd.f32 %v1698, %v1838
      %v1969 = vadd.f32 %v1699, %v1843
      %v1970 = vadd.f32 %v1700, %v1848
      %v1971 = vadd.f32 %v1701, %v1853
      %v1972 = vadd.f32 %v1702, %v1858
      %v1973 = vadd.f32 %v1703, %v1863
      %v1974 = vadd.f32 %v1704, %v1868
      %v1975 = vadd.f32 %v1705, %v1873
      %v1976 = vadd.f32 %v1706, %v1878
      %v1977 = vadd.f32 %v1707, %v1883
      %v1978 = vadd.f32 %v1708, %v1888
      %v1979 = vadd.f32 %v1709, %v1893
      %v1980 = vadd.f32 %v1710, %v1898
      %v1981 = vadd.f32 %v1711, %v1903
      %v1982 = vadd.f32 %v1712, %v1908
      %v1983 = vadd.f32 %v1713, %v1913
      %v1984 = vadd.f32 %v1714, %v1918
      %v1985 = vadd.f32 %v1715, %v1923
      %v1986 = vadd.f32 %v1716, %v1928
      %v1987 = vadd.f32 %v1717, %v1933
      %v1988 = vadd.f32 %v1718, %v1938
      %v1989 = vadd.f32 %v1719, %v1943
      %v1990 = vadd.f32 %v1720, %v1948
      %v1991 = vadd.f32 %v1721, %v1953
      %v1992 = vadd.f32 %v1722, %v1958
      %v1993 = vrot.slane %v255, 2
      %v1994 = vrot.slane %v256, 2
      %v1995 = vsel %vm1052, %v1993, %v1994
      %v1996 = vrot.slane %v257, 2
      %v1997 = vsel %vm1052, %v1994, %v1996
      %v1998 = vrot.slane %v263, 4
      %v1999 = vsel %vm273, %v1995, 0
      %v2001 = vsel %vm273, %v1997, 0
      %v2003 = vsel %vm370, %v1998, 0
      %2005 = vmatprep.subr.mxu0 0.0
      %2006 = vmatpush1.msra.mxu0 %v2003
      %2007 = vmatprep.subr.mxu0 0.0
      %2008 = vmatpush1.msra.mxu0 0.0
      %2009 = vmatprep.subr.mxu0 0.0
      %2010 = vmatpush1.msra.mxu0 0.0
      %2011 = vmatprep.subr.mxu0 0.0
      %2012 = vmatpush1.msra.mxu0 0.0
      %2013 = vmatprep.subr.mxu0 0.0
      %2014 = vmatpush1.msra.mxu0 0.0
      %2015 = vmatprep.subr.mxu0 0.0
      %2016 = vmatpush1.msra.mxu0 0.0
      %2017 = vmatprep.subr.mxu0 0.0
      %2018 = vmatpush1.msra.mxu0 0.0
      %2019 = vmatprep.subr.mxu0 0.0
      %2020 = vmatpush1.msra.mxu0 0.0
      %2021 = vmatprep.subr.mxu0 0.0
      %2022 = vmatpush1.msra.mxu0 0.0
      %2023 = vmatprep.subr.mxu0 0.0
      %2024 = vmatpush1.msra.mxu0 0.0
      %2025 = vmatprep.subr.mxu0 0.0
      %2026 = vmatpush1.msra.mxu0 0.0
      %2027 = vmatprep.subr.mxu0 0.0
      %2028 = vmatpush1.msra.mxu0 0.0
      %2029 = vmatprep.subr.mxu0 0.0
      %2030 = vmatpush1.msra.mxu0 0.0
      %2031 = vmatprep.subr.mxu0 0.0
      %2032 = vmatpush1.msra.mxu0 0.0
      %2033 = vmatprep.subr.mxu0 0.0
      %2034 = vmatpush1.msra.mxu0 0.0
      %2035 = vmatprep.subr.mxu0 0.0
      %2036 = vmatpush1.msra.mxu0 0.0
      %2037 = vmatprep.subr.mxu0 0.0
      %2038 = vmatpush1.msra.mxu0 0.0
      %2039 = vmatprep.subr.mxu0 0.0
      %2040 = vmatpush1.msra.mxu0 0.0
      %2041 = vmatprep.subr.mxu0 0.0
      %2042 = vmatpush1.msra.mxu0 0.0
      %2043 = vmatprep.subr.mxu0 0.0
      %2044 = vmatpush1.msra.mxu0 0.0
      %2045 = vmatprep.subr.mxu0 0.0
      %2046 = vmatpush1.msra.mxu0 0.0
      %2047 = vmatprep.subr.mxu0 0.0
      %2048 = vmatpush1.msra.mxu0 0.0
      %2049 = vmatprep.subr.mxu0 0.0
      %2050 = vmatpush1.msra.mxu0 0.0
      %2051 = vmatprep.subr.mxu0 0.0
      %2052 = vmatpush1.msra.mxu0 0.0
      %2053 = vmatprep.subr.mxu0 0.0
      %2054 = vmatpush1.msra.mxu0 0.0
      %2055 = vmatprep.subr.mxu0 0.0
      %2056 = vmatpush1.msra.mxu0 0.0
      %2057 = vmatprep.subr.mxu0 0.0
      %2058 = vmatpush1.msra.mxu0 0.0
      %2059 = vmatprep.subr.mxu0 0.0
      %2060 = vmatpush1.msra.mxu0 0.0
      %2061 = vmatprep.subr.mxu0 0.0
      %2062 = vmatpush1.msra.mxu0 0.0
      %2063 = vmatprep.subr.mxu0 0.0
      %2064 = vmatpush1.msra.mxu0 0.0
      %2065 = vmatprep.subr.mxu0 0.0
      %2066 = vmatpush1.msra.mxu0 0.0
      %2067 = vmatprep.subr.mxu0 0.0
      %2068 = vmatpush1.msra.mxu0 0.0
      %2069 = vmatprep.mubr.f32.mxu0 0.0
      %2070 = vmatmul.mubr.f32.gmra.mrb[0].mxu0 %v1137
      %v2071 = vpop.f32.mrb[0].mxu0
      %v2072 = vadd.f32 0.0, %v2071
      %v2073 = vpop.f32.mrb[0].mxu0
      %2074 = vmatprep.mubr.f32.mxu0 0.0
      %2075 = vmatmul.mubr.f32.gmra.mrb[0].mxu0 %v1139
      %v2076 = vpop.f32.mrb[0].mxu0
      %v2077 = vadd.f32 0.0, %v2076
      %v2078 = vpop.f32.mrb[0].mxu0
      %2079 = vmatprep.mubr.f32.mxu0 0.0
      %2080 = vmatmul.mubr.f32.gmra.mrb[0].mxu0 %v1141
      %v2081 = vpop.f32.mrb[0].mxu0
      %v2082 = vadd.f32 0.0, %v2081
      %v2083 = vpop.f32.mrb[0].mxu0
      %2084 = vmatprep.mubr.f32.mxu0 0.0
      %2085 = vmatmul.mubr.f32.gmra.mrb[0].mxu0 %v1143
      %v2086 = vpop.f32.mrb[0].mxu0
      %v2087 = vadd.f32 0.0, %v2086
      %v2088 = vpop.f32.mrb[0].mxu0
      %2089 = vmatprep.mubr.f32.mxu0 0.0
      %2090 = vmatmul.mubr.f32.gmra.mrb[0].mxu0 %v1145
      %v2091 = vpop.f32.mrb[0].mxu0
      %v2092 = vadd.f32 0.0, %v2091
      %v2093 = vpop.f32.mrb[0].mxu0
      %2094 = vmatprep.mubr.f32.mxu0 0.0
      %2095 = vmatmul.mubr.f32.gmra.mrb[0].mxu0 %v1147
      %v2096 = vpop.f32.mrb[0].mxu0
      %v2097 = vadd.f32 0.0, %v2096
      %v2098 = vpop.f32.mrb[0].mxu0
      %2099 = vmatprep.mubr.f32.mxu0 0.0
      %2100 = vmatmul.mubr.f32.gmra.mrb[0].mxu0 %v1149
      %v2101 = vpop.f32.mrb[0].mxu0
      %v2102 = vadd.f32 0.0, %v2101
      %v2103 = vpop.f32.mrb[0].mxu0
      %2104 = vmatprep.mubr.f32.mxu0 0.0
      %2105 = vmatmul.mubr.f32.gmra.mrb[0].mxu0 %v1151
      %v2106 = vpop.f32.mrb[0].mxu0
      %v2107 = vadd.f32 0.0, %v2106
      %v2108 = vpop.f32.mrb[0].mxu0
      %2109 = vmatprep.mubr.f32.mxu0 0.0
      %2110 = vmatmul.mubr.f32.gmra.mrb[0].mxu0 %v1153
      %v2111 = vpop.f32.mrb[0].mxu0
      %v2112 = vadd.f32 0.0, %v2111
      %v2113 = vpop.f32.mrb[0].mxu0
      %2114 = vmatprep.mubr.f32.mxu0 0.0
      %2115 = vmatmul.mubr.f32.gmra.mrb[0].mxu0 %v1155
      %v2116 = vpop.f32.mrb[0].mxu0
      %v2117 = vadd.f32 0.0, %v2116
      %v2118 = vpop.f32.mrb[0].mxu0
      %2119 = vmatprep.mubr.f32.mxu0 0.0
      %2120 = vmatmul.mubr.f32.gmra.mrb[0].mxu0 %v1157
      %v2121 = vpop.f32.mrb[0].mxu0
      %v2122 = vadd.f32 0.0, %v2121
      %v2123 = vpop.f32.mrb[0].mxu0
      %2124 = vmatprep.mubr.f32.mxu0 0.0
      %2125 = vmatmul.mubr.f32.gmra.mrb[0].mxu0 %v1159
      %v2126 = vpop.f32.mrb[0].mxu0
      %v2127 = vadd.f32 0.0, %v2126
      %v2128 = vpop.f32.mrb[0].mxu0
      %2129 = vmatprep.mubr.f32.mxu0 0.0
      %2130 = vmatmul.mubr.f32.gmra.mrb[0].mxu0 %v1161
      %v2131 = vpop.f32.mrb[0].mxu0
      %v2132 = vadd.f32 0.0, %v2131
      %v2133 = vpop.f32.mrb[0].mxu0
      %2134 = vmatprep.mubr.f32.mxu0 0.0
      %2135 = vmatmul.mubr.f32.gmra.mrb[0].mxu0 %v1163
      %v2136 = vpop.f32.mrb[0].mxu0
      %v2137 = vadd.f32 0.0, %v2136
      %v2138 = vpop.f32.mrb[0].mxu0
      %2139 = vmatprep.mubr.f32.mxu0 0.0
      %2140 = vmatmul.mubr.f32.gmra.mrb[0].mxu0 %v1165
      %v2141 = vpop.f32.mrb[0].mxu0
      %v2142 = vadd.f32 0.0, %v2141
      %v2143 = vpop.f32.mrb[0].mxu0
      %2144 = vmatprep.mubr.f32.mxu0 0.0
      %2145 = vmatmul.mubr.f32.gmra.mrb[0].mxu0 %v1167
      %v2146 = vpop.f32.mrb[0].mxu0
      %v2147 = vadd.f32 0.0, %v2146
      %v2148 = vpop.f32.mrb[0].mxu0
      %2149 = vmatprep.mubr.f32.mxu0 0.0
      %2150 = vmatmul.mubr.f32.gmra.mrb[0].mxu0 %v1169
      %v2151 = vpop.f32.mrb[0].mxu0
      %v2152 = vadd.f32 0.0, %v2151
      %v2153 = vpop.f32.mrb[0].mxu0
      %2154 = vmatprep.mubr.f32.mxu0 0.0
      %2155 = vmatmul.mubr.f32.gmra.mrb[0].mxu0 %v1171
      %v2156 = vpop.f32.mrb[0].mxu0
      %v2157 = vadd.f32 0.0, %v2156
      %v2158 = vpop.f32.mrb[0].mxu0
      %2159 = vmatprep.mubr.f32.mxu0 0.0
      %2160 = vmatmul.mubr.f32.gmra.mrb[0].mxu0 %v1173
      %v2161 = vpop.f32.mrb[0].mxu0
      %v2162 = vadd.f32 0.0, %v2161
      %v2163 = vpop.f32.mrb[0].mxu0
      %2164 = vmatprep.mubr.f32.mxu0 0.0
      %2165 = vmatmul.mubr.f32.gmra.mrb[0].mxu0 %v1175
      %v2166 = vpop.f32.mrb[0].mxu0
      %v2167 = vadd.f32 0.0, %v2166
      %v2168 = vpop.f32.mrb[0].mxu0
      %2169 = vmatprep.mubr.f32.mxu0 0.0
      %2170 = vmatmul.mubr.f32.gmra.mrb[0].mxu0 %v1177
      %v2171 = vpop.f32.mrb[0].mxu0
      %v2172 = vadd.f32 0.0, %v2171
      %v2173 = vpop.f32.mrb[0].mxu0
      %2174 = vmatprep.mubr.f32.mxu0 0.0
      %2175 = vmatmul.mubr.f32.gmra.mrb[0].mxu0 %v1179
      %v2176 = vpop.f32.mrb[0].mxu0
      %v2177 = vadd.f32 0.0, %v2176
      %v2178 = vpop.f32.mrb[0].mxu0
      %2179 = vmatprep.mubr.f32.mxu0 0.0
      %2180 = vmatmul.mubr.f32.gmra.mrb[0].mxu0 %v1181
      %v2181 = vpop.f32.mrb[0].mxu0
      %v2182 = vadd.f32 0.0, %v2181
      %v2183 = vpop.f32.mrb[0].mxu0
      %2184 = vmatprep.mubr.f32.mxu0 0.0
      %2185 = vmatmul.mubr.f32.gmra.mrb[0].mxu0 %v1183
      %v2186 = vpop.f32.mrb[0].mxu0
      %v2187 = vadd.f32 0.0, %v2186
      %v2188 = vpop.f32.mrb[0].mxu0
      %2189 = vmatprep.mubr.f32.mxu0 0.0
      %2190 = vmatmul.mubr.f32.gmra.mrb[0].mxu0 %v1185
      %v2191 = vpop.f32.mrb[0].mxu0
      %v2192 = vadd.f32 0.0, %v2191
      %v2193 = vpop.f32.mrb[0].mxu0
      %2194 = vmatprep.mubr.f32.mxu0 0.0
      %2195 = vmatmul.mubr.f32.gmra.mrb[0].mxu0 %v1187
      %v2196 = vpop.f32.mrb[0].mxu0
      %v2197 = vadd.f32 0.0, %v2196
      %v2198 = vpop.f32.mrb[0].mxu0
      %2199 = vmatprep.mubr.f32.mxu0 0.0
      %2200 = vmatmul.mubr.f32.gmra.mrb[0].mxu0 %v1189
      %v2201 = vpop.f32.mrb[0].mxu0
      %v2202 = vadd.f32 0.0, %v2201
      %v2203 = vpop.f32.mrb[0].mxu0
      %2204 = vmatprep.mubr.f32.mxu0 0.0
      %2205 = vmatmul.mubr.f32.gmra.mrb[0].mxu0 %v1191
      %v2206 = vpop.f32.mrb[0].mxu0
      %v2207 = vadd.f32 0.0, %v2206
      %v2208 = vpop.f32.mrb[0].mxu0
      %2209 = vmatprep.mubr.f32.mxu0 0.0
      %2210 = vmatmul.mubr.f32.gmra.mrb[0].mxu0 %v1193
      %v2211 = vpop.f32.mrb[0].mxu0
      %v2212 = vadd.f32 0.0, %v2211
      %v2213 = vpop.f32.mrb[0].mxu0
      %2214 = vmatprep.mubr.f32.mxu0 0.0
      %2215 = vmatmul.mubr.f32.gmra.mrb[0].mxu0 %v1195
      %v2216 = vpop.f32.mrb[0].mxu0
      %v2217 = vadd.f32 0.0, %v2216
      %v2218 = vpop.f32.mrb[0].mxu0
      %2219 = vmatprep.mubr.f32.mxu0 0.0
      %2220 = vmatmul.mubr.f32.gmra.mrb[0].mxu0 %v1999
      %v2221 = vpop.f32.mrb[0].mxu0
      %v2222 = vadd.f32 0.0, %v2221
      %v2223 = vpop.f32.mrb[0].mxu0
      %2224 = vmatprep.mubr.f32.mxu0 0.0
      %2225 = vmatmul.mubr.f32.gmra.mrb[0].mxu0 %v2001
      %v2226 = vpop.f32.mrb[0].mxu0
      %v2227 = vadd.f32 0.0, %v2226
      %v2228 = vpop.f32.mrb[0].mxu0
      %2229 = vdwg.mxu0
      %v2230 = vadd.f32 %v1961, %v2072
      %v2231 = vadd.f32 %v1962, %v2077
      %v2232 = vadd.f32 %v1963, %v2082
      %v2233 = vadd.f32 %v1964, %v2087
      %v2234 = vadd.f32 %v1965, %v2092
      %v2235 = vadd.f32 %v1966, %v2097
      %v2236 = vadd.f32 %v1967, %v2102
      %v2237 = vadd.f32 %v1968, %v2107
      %v2238 = vadd.f32 %v1969, %v2112
      %v2239 = vadd.f32 %v1970, %v2117
      %v2240 = vadd.f32 %v1971, %v2122
      %v2241 = vadd.f32 %v1972, %v2127
      %v2242 = vadd.f32 %v1973, %v2132
      %v2243 = vadd.f32 %v1974, %v2137
      %v2244 = vadd.f32 %v1975, %v2142
      %v2245 = vadd.f32 %v1976, %v2147
      %v2246 = vadd.f32 %v1977, %v2152
      %v2247 = vadd.f32 %v1978, %v2157
      %v2248 = vadd.f32 %v1979, %v2162
      %v2249 = vadd.f32 %v1980, %v2167
      %v2250 = vadd.f32 %v1981, %v2172
      %v2251 = vadd.f32 %v1982, %v2177
      %v2252 = vadd.f32 %v1983, %v2182
      %v2253 = vadd.f32 %v1984, %v2187
      %v2254 = vadd.f32 %v1985, %v2192
      %v2255 = vadd.f32 %v1986, %v2197
      %v2256 = vadd.f32 %v1987, %v2202
      %v2257 = vadd.f32 %v1988, %v2207
      %v2258 = vadd.f32 %v1989, %v2212
      %v2259 = vadd.f32 %v1990, %v2217
      %v2260 = vadd.f32 %v1991, %v2222
      %v2261 = vadd.f32 %v1992, %v2227
      %v2263 = vsel %vm273, %v258, 0
      %v2266 = vsel %vm273, %v259, 0
      %v2269 = vsel %vm370, %v264, 0
      %2271 = vmatprep.subr.mxu0 0.0
      %2272 = vmatpush1.msra.mxu0 %v2269
      %2273 = vmatprep.subr.mxu0 0.0
      %2274 = vmatpush1.msra.mxu0 0.0
      %2275 = vmatprep.subr.mxu0 0.0
      %2276 = vmatpush1.msra.mxu0 0.0
      %2277 = vmatprep.subr.mxu0 0.0
      %2278 = vmatpush1.msra.mxu0 0.0
      %2279 = vmatprep.subr.mxu0 0.0
      %2280 = vmatpush1.msra.mxu0 0.0
      %2281 = vmatprep.subr.mxu0 0.0
      %2282 = vmatpush1.msra.mxu0 0.0
      %2283 = vmatprep.subr.mxu0 0.0
      %2284 = vmatpush1.msra.mxu0 0.0
      %2285 = vmatprep.subr.mxu0 0.0
      %2286 = vmatpush1.msra.mxu0 0.0
      %2287 = vmatprep.subr.mxu0 0.0
      %2288 = vmatpush1.msra.mxu0 0.0
      %2289 = vmatprep.subr.mxu0 0.0
      %2290 = vmatpush1.msra.mxu0 0.0
      %2291 = vmatprep.subr.mxu0 0.0
      %2292 = vmatpush1.msra.mxu0 0.0
      %2293 = vmatprep.subr.mxu0 0.0
      %2294 = vmatpush1.msra.mxu0 0.0
      %2295 = vmatprep.subr.mxu0 0.0
      %2296 = vmatpush1.msra.mxu0 0.0
      %2297 = vmatprep.subr.mxu0 0.0
      %2298 = vmatpush1.msra.mxu0 0.0
      %2299 = vmatprep.subr.mxu0 0.0
      %2300 = vmatpush1.msra.mxu0 0.0
      %2301 = vmatprep.subr.mxu0 0.0
      %2302 = vmatpush1.msra.mxu0 0.0
      %2303 = vmatprep.subr.mxu0 0.0
      %2304 = vmatpush1.msra.mxu0 0.0
      %2305 = vmatprep.subr.mxu0 0.0
      %2306 = vmatpush1.msra.mxu0 0.0
      %2307 = vmatprep.subr.mxu0 0.0
      %2308 = vmatpush1.msra.mxu0 0.0
      %2309 = vmatprep.subr.mxu0 0.0
      %2310 = vmatpush1.msra.mxu0 0.0
      %2311 = vmatprep.subr.mxu0 0.0
      %2312 = vmatpush1.msra.mxu0 0.0
      %2313 = vmatprep.subr.mxu0 0.0
      %2314 = vmatpush1.msra.mxu0 0.0
      %2315 = vmatprep.subr.mxu0 0.0
      %2316 = vmatpush1.msra.mxu0 0.0
      %2317 = vmatprep.subr.mxu0 0.0
      %2318 = vmatpush1.msra.mxu0 0.0
      %2319 = vmatprep.subr.mxu0 0.0
      %2320 = vmatpush1.msra.mxu0 0.0
      %2321 = vmatprep.subr.mxu0 0.0
      %2322 = vmatpush1.msra.mxu0 0.0
      %2323 = vmatprep.subr.mxu0 0.0
      %2324 = vmatpush1.msra.mxu0 0.0
      %2325 = vmatprep.subr.mxu0 0.0
      %2326 = vmatpush1.msra.mxu0 0.0
      %2327 = vmatprep.subr.mxu0 0.0
      %2328 = vmatpush1.msra.mxu0 0.0
      %2329 = vmatprep.subr.mxu0 0.0
      %2330 = vmatpush1.msra.mxu0 0.0
      %2331 = vmatprep.subr.mxu0 0.0
      %2332 = vmatpush1.msra.mxu0 0.0
      %2333 = vmatprep.subr.mxu0 0.0
      %2334 = vmatpush1.msra.mxu0 0.0
      %2335 = vmatprep.mubr.f32.mxu0 0.0
      %2336 = vmatmul.mubr.f32.gmra.mrb[0].mxu0 %v287
      %v2337 = vpop.f32.mrb[0].mxu0
      %v2338 = vadd.f32 0.0, %v2337
      %v2339 = vpop.f32.mrb[0].mxu0
      %2340 = vmatprep.mubr.f32.mxu0 0.0
      %2341 = vmatmul.mubr.f32.gmra.mrb[0].mxu0 %v290
      %v2342 = vpop.f32.mrb[0].mxu0
      %v2343 = vadd.f32 0.0, %v2342
      %v2344 = vpop.f32.mrb[0].mxu0
      %2345 = vmatprep.mubr.f32.mxu0 0.0
      %2346 = vmatmul.mubr.f32.gmra.mrb[0].mxu0 %v293
      %v2347 = vpop.f32.mrb[0].mxu0
      %v2348 = vadd.f32 0.0, %v2347
      %v2349 = vpop.f32.mrb[0].mxu0
      %2350 = vmatprep.mubr.f32.mxu0 0.0
      %2351 = vmatmul.mubr.f32.gmra.mrb[0].mxu0 %v296
      %v2352 = vpop.f32.mrb[0].mxu0
      %v2353 = vadd.f32 0.0, %v2352
      %v2354 = vpop.f32.mrb[0].mxu0
      %2355 = vmatprep.mubr.f32.mxu0 0.0
      %2356 = vmatmul.mubr.f32.gmra.mrb[0].mxu0 %v299
      %v2357 = vpop.f32.mrb[0].mxu0
      %v2358 = vadd.f32 0.0, %v2357
      %v2359 = vpop.f32.mrb[0].mxu0
      %2360 = vmatprep.mubr.f32.mxu0 0.0
      %2361 = vmatmul.mubr.f32.gmra.mrb[0].mxu0 %v302
      %v2362 = vpop.f32.mrb[0].mxu0
      %v2363 = vadd.f32 0.0, %v2362
      %v2364 = vpop.f32.mrb[0].mxu0
      %2365 = vmatprep.mubr.f32.mxu0 0.0
      %2366 = vmatmul.mubr.f32.gmra.mrb[0].mxu0 %v305
      %v2367 = vpop.f32.mrb[0].mxu0
      %v2368 = vadd.f32 0.0, %v2367
      %v2369 = vpop.f32.mrb[0].mxu0
      %2370 = vmatprep.mubr.f32.mxu0 0.0
      %2371 = vmatmul.mubr.f32.gmra.mrb[0].mxu0 %v308
      %v2372 = vpop.f32.mrb[0].mxu0
      %v2373 = vadd.f32 0.0, %v2372
      %v2374 = vpop.f32.mrb[0].mxu0
      %2375 = vmatprep.mubr.f32.mxu0 0.0
      %2376 = vmatmul.mubr.f32.gmra.mrb[0].mxu0 %v311
      %v2377 = vpop.f32.mrb[0].mxu0
      %v2378 = vadd.f32 0.0, %v2377
      %v2379 = vpop.f32.mrb[0].mxu0
      %2380 = vmatprep.mubr.f32.mxu0 0.0
      %2381 = vmatmul.mubr.f32.gmra.mrb[0].mxu0 %v314
      %v2382 = vpop.f32.mrb[0].mxu0
      %v2383 = vadd.f32 0.0, %v2382
      %v2384 = vpop.f32.mrb[0].mxu0
      %2385 = vmatprep.mubr.f32.mxu0 0.0
      %2386 = vmatmul.mubr.f32.gmra.mrb[0].mxu0 %v317
      %v2387 = vpop.f32.mrb[0].mxu0
      %v2388 = vadd.f32 0.0, %v2387
      %v2389 = vpop.f32.mrb[0].mxu0
      %2390 = vmatprep.mubr.f32.mxu0 0.0
      %2391 = vmatmul.mubr.f32.gmra.mrb[0].mxu0 %v320
      %v2392 = vpop.f32.mrb[0].mxu0
      %v2393 = vadd.f32 0.0, %v2392
      %v2394 = vpop.f32.mrb[0].mxu0
      %2395 = vmatprep.mubr.f32.mxu0 0.0
      %2396 = vmatmul.mubr.f32.gmra.mrb[0].mxu0 %v323
      %v2397 = vpop.f32.mrb[0].mxu0
      %v2398 = vadd.f32 0.0, %v2397
      %v2399 = vpop.f32.mrb[0].mxu0
      %2400 = vmatprep.mubr.f32.mxu0 0.0
      %2401 = vmatmul.mubr.f32.gmra.mrb[0].mxu0 %v326
      %v2402 = vpop.f32.mrb[0].mxu0
      %v2403 = vadd.f32 0.0, %v2402
      %v2404 = vpop.f32.mrb[0].mxu0
      %2405 = vmatprep.mubr.f32.mxu0 0.0
      %2406 = vmatmul.mubr.f32.gmra.mrb[0].mxu0 %v329
      %v2407 = vpop.f32.mrb[0].mxu0
      %v2408 = vadd.f32 0.0, %v2407
      %v2409 = vpop.f32.mrb[0].mxu0
      %2410 = vmatprep.mubr.f32.mxu0 0.0
      %2411 = vmatmul.mubr.f32.gmra.mrb[0].mxu0 %v332
      %v2412 = vpop.f32.mrb[0].mxu0
      %v2413 = vadd.f32 0.0, %v2412
      %v2414 = vpop.f32.mrb[0].mxu0
      %2415 = vmatprep.mubr.f32.mxu0 0.0
      %2416 = vmatmul.mubr.f32.gmra.mrb[0].mxu0 %v335
      %v2417 = vpop.f32.mrb[0].mxu0
      %v2418 = vadd.f32 0.0, %v2417
      %v2419 = vpop.f32.mrb[0].mxu0
      %2420 = vmatprep.mubr.f32.mxu0 0.0
      %2421 = vmatmul.mubr.f32.gmra.mrb[0].mxu0 %v338
      %v2422 = vpop.f32.mrb[0].mxu0
      %v2423 = vadd.f32 0.0, %v2422
      %v2424 = vpop.f32.mrb[0].mxu0
      %2425 = vmatprep.mubr.f32.mxu0 0.0
      %2426 = vmatmul.mubr.f32.gmra.mrb[0].mxu0 %v341
      %v2427 = vpop.f32.mrb[0].mxu0
      %v2428 = vadd.f32 0.0, %v2427
      %v2429 = vpop.f32.mrb[0].mxu0
      %2430 = vmatprep.mubr.f32.mxu0 0.0
      %2431 = vmatmul.mubr.f32.gmra.mrb[0].mxu0 %v344
      %v2432 = vpop.f32.mrb[0].mxu0
      %v2433 = vadd.f32 0.0, %v2432
      %v2434 = vpop.f32.mrb[0].mxu0
      %2435 = vmatprep.mubr.f32.mxu0 0.0
      %2436 = vmatmul.mubr.f32.gmra.mrb[0].mxu0 %v347
      %v2437 = vpop.f32.mrb[0].mxu0
      %v2438 = vadd.f32 0.0, %v2437
      %v2439 = vpop.f32.mrb[0].mxu0
      %2440 = vmatprep.mubr.f32.mxu0 0.0
      %2441 = vmatmul.mubr.f32.gmra.mrb[0].mxu0 %v350
      %v2442 = vpop.f32.mrb[0].mxu0
      %v2443 = vadd.f32 0.0, %v2442
      %v2444 = vpop.f32.mrb[0].mxu0
      %2445 = vmatprep.mubr.f32.mxu0 0.0
      %2446 = vmatmul.mubr.f32.gmra.mrb[0].mxu0 %v353
      %v2447 = vpop.f32.mrb[0].mxu0
      %v2448 = vadd.f32 0.0, %v2447
      %v2449 = vpop.f32.mrb[0].mxu0
      %2450 = vmatprep.mubr.f32.mxu0 0.0
      %2451 = vmatmul.mubr.f32.gmra.mrb[0].mxu0 %v356
      %v2452 = vpop.f32.mrb[0].mxu0
      %v2453 = vadd.f32 0.0, %v2452
      %v2454 = vpop.f32.mrb[0].mxu0
      %2455 = vmatprep.mubr.f32.mxu0 0.0
      %2456 = vmatmul.mubr.f32.gmra.mrb[0].mxu0 %v359
      %v2457 = vpop.f32.mrb[0].mxu0
      %v2458 = vadd.f32 0.0, %v2457
      %v2459 = vpop.f32.mrb[0].mxu0
      %2460 = vmatprep.mubr.f32.mxu0 0.0
      %2461 = vmatmul.mubr.f32.gmra.mrb[0].mxu0 %v362
      %v2462 = vpop.f32.mrb[0].mxu0
      %v2463 = vadd.f32 0.0, %v2462
      %v2464 = vpop.f32.mrb[0].mxu0
      %2465 = vmatprep.mubr.f32.mxu0 0.0
      %2466 = vmatmul.mubr.f32.gmra.mrb[0].mxu0 %v365
      %v2467 = vpop.f32.mrb[0].mxu0
      %v2468 = vadd.f32 0.0, %v2467
      %v2469 = vpop.f32.mrb[0].mxu0
      %2470 = vmatprep.mubr.f32.mxu0 0.0
      %2471 = vmatmul.mubr.f32.gmra.mrb[0].mxu0 %v368
      %v2472 = vpop.f32.mrb[0].mxu0
      %v2473 = vadd.f32 0.0, %v2472
      %v2474 = vpop.f32.mrb[0].mxu0
      %2475 = vmatprep.mubr.f32.mxu0 0.0
      %2476 = vmatmul.mubr.f32.gmra.mrb[0].mxu0 %v1459
      %v2477 = vpop.f32.mrb[0].mxu0
      %v2478 = vadd.f32 0.0, %v2477
      %v2479 = vpop.f32.mrb[0].mxu0
      %2480 = vmatprep.mubr.f32.mxu0 0.0
      %2481 = vmatmul.mubr.f32.gmra.mrb[0].mxu0 %v1462
      %v2482 = vpop.f32.mrb[0].mxu0
      %v2483 = vadd.f32 0.0, %v2482
      %v2484 = vpop.f32.mrb[0].mxu0
      %2485 = vmatprep.mubr.f32.mxu0 0.0
      %2486 = vmatmul.mubr.f32.gmra.mrb[0].mxu0 %v2263
      %v2487 = vpop.f32.mrb[0].mxu0
      %v2488 = vadd.f32 0.0, %v2487
      %v2489 = vpop.f32.mrb[0].mxu0
      %2490 = vmatprep.mubr.f32.mxu0 0.0
      %2491 = vmatmul.mubr.f32.gmra.mrb[0].mxu0 %v2266
      %v2492 = vpop.f32.mrb[0].mxu0
      %v2493 = vadd.f32 0.0, %v2492
      %v2494 = vpop.f32.mrb[0].mxu0
      %2495 = vdwg.mxu0
      %v2496 = vadd.f32 %v2230, %v2338
      %v2497 = vadd.f32 %v2231, %v2343
      %v2498 = vadd.f32 %v2232, %v2348
      %v2499 = vadd.f32 %v2233, %v2353
      %v2500 = vadd.f32 %v2234, %v2358
      %v2501 = vadd.f32 %v2235, %v2363
      %v2502 = vadd.f32 %v2236, %v2368
      %v2503 = vadd.f32 %v2237, %v2373
      %v2504 = vadd.f32 %v2238, %v2378
      %v2505 = vadd.f32 %v2239, %v2383
      %v2506 = vadd.f32 %v2240, %v2388
      %v2507 = vadd.f32 %v2241, %v2393
      %v2508 = vadd.f32 %v2242, %v2398
      %v2509 = vadd.f32 %v2243, %v2403
      %v2510 = vadd.f32 %v2244, %v2408
      %v2511 = vadd.f32 %v2245, %v2413
      %v2512 = vadd.f32 %v2246, %v2418
      %v2513 = vadd.f32 %v2247, %v2423
      %v2514 = vadd.f32 %v2248, %v2428
      %v2515 = vadd.f32 %v2249, %v2433
      %v2516 = vadd.f32 %v2250, %v2438
      %v2517 = vadd.f32 %v2251, %v2443
      %v2518 = vadd.f32 %v2252, %v2448
      %v2519 = vadd.f32 %v2253, %v2453
      %v2520 = vadd.f32 %v2254, %v2458
      %v2521 = vadd.f32 %v2255, %v2463
      %v2522 = vadd.f32 %v2256, %v2468
      %v2523 = vadd.f32 %v2257, %v2473
      %v2524 = vadd.f32 %v2258, %v2478
      %v2525 = vadd.f32 %v2259, %v2483
      %v2526 = vadd.f32 %v2260, %v2488
      %v2527 = vadd.f32 %v2261, %v2493
      %v2529 = vrot.slane %v258, 1
      %v2530 = vrot.slane %v259, 1
      %v2531 = vsel %vm647, %v2529, %v2530
      %v2532 = vrot.slane %v260, 1
      %v2533 = vsel %vm647, %v2530, %v2532
      %v2534 = vrot.slane %v264, 4
      %v2535 = vsel %vm273, %v2531, 0
      %v2537 = vsel %vm273, %v2533, 0
      %v2539 = vsel %vm370, %v2534, 0
      %2541 = vmatprep.subr.mxu0 0.0
      %2542 = vmatpush1.msra.mxu0 %v2539
      %2543 = vmatprep.subr.mxu0 0.0
      %2544 = vmatpush1.msra.mxu0 0.0
      %2545 = vmatprep.subr.mxu0 0.0
      %2546 = vmatpush1.msra.mxu0 0.0
      %2547 = vmatprep.subr.mxu0 0.0
      %2548 = vmatpush1.msra.mxu0 0.0
      %2549 = vmatprep.subr.mxu0 0.0
      %2550 = vmatpush1.msra.mxu0 0.0
      %2551 = vmatprep.subr.mxu0 0.0
      %2552 = vmatpush1.msra.mxu0 0.0
      %2553 = vmatprep.subr.mxu0 0.0
      %2554 = vmatpush1.msra.mxu0 0.0
      %2555 = vmatprep.subr.mxu0 0.0
      %2556 = vmatpush1.msra.mxu0 0.0
      %2557 = vmatprep.subr.mxu0 0.0
      %2558 = vmatpush1.msra.mxu0 0.0
      %2559 = vmatprep.subr.mxu0 0.0
      %2560 = vmatpush1.msra.mxu0 0.0
      %2561 = vmatprep.subr.mxu0 0.0
      %2562 = vmatpush1.msra.mxu0 0.0
      %2563 = vmatprep.subr.mxu0 0.0
      %2564 = vmatpush1.msra.mxu0 0.0
      %2565 = vmatprep.subr.mxu0 0.0
      %2566 = vmatpush1.msra.mxu0 0.0
      %2567 = vmatprep.subr.mxu0 0.0
      %2568 = vmatpush1.msra.mxu0 0.0
      %2569 = vmatprep.subr.mxu0 0.0
      %2570 = vmatpush1.msra.mxu0 0.0
      %2571 = vmatprep.subr.mxu0 0.0
      %2572 = vmatpush1.msra.mxu0 0.0
      %2573 = vmatprep.subr.mxu0 0.0
      %2574 = vmatpush1.msra.mxu0 0.0
      %2575 = vmatprep.subr.mxu0 0.0
      %2576 = vmatpush1.msra.mxu0 0.0
      %2577 = vmatprep.subr.mxu0 0.0
      %2578 = vmatpush1.msra.mxu0 0.0
      %2579 = vmatprep.subr.mxu0 0.0
      %2580 = vmatpush1.msra.mxu0 0.0
      %2581 = vmatprep.subr.mxu0 0.0
      %2582 = vmatpush1.msra.mxu0 0.0
      %2583 = vmatprep.subr.mxu0 0.0
      %2584 = vmatpush1.msra.mxu0 0.0
      %2585 = vmatprep.subr.mxu0 0.0
      %2586 = vmatpush1.msra.mxu0 0.0
      %2587 = vmatprep.subr.mxu0 0.0
      %2588 = vmatpush1.msra.mxu0 0.0
      %2589 = vmatprep.subr.mxu0 0.0
      %2590 = vmatpush1.msra.mxu0 0.0
      %2591 = vmatprep.subr.mxu0 0.0
      %2592 = vmatpush1.msra.mxu0 0.0
      %2593 = vmatprep.subr.mxu0 0.0
      %2594 = vmatpush1.msra.mxu0 0.0
      %2595 = vmatprep.subr.mxu0 0.0
      %2596 = vmatpush1.msra.mxu0 0.0
      %2597 = vmatprep.subr.mxu0 0.0
      %2598 = vmatpush1.msra.mxu0 0.0
      %2599 = vmatprep.subr.mxu0 0.0
      %2600 = vmatpush1.msra.mxu0 0.0
      %2601 = vmatprep.subr.mxu0 0.0
      %2602 = vmatpush1.msra.mxu0 0.0
      %2603 = vmatprep.subr.mxu0 0.0
      %2604 = vmatpush1.msra.mxu0 0.0
      %2605 = vmatprep.mubr.f32.mxu0 0.0
      %2606 = vmatmul.mubr.f32.gmra.mrb[0].mxu0 %v737
      %v2607 = vpop.f32.mrb[0].mxu0
      %v2608 = vadd.f32 0.0, %v2607
      %v2609 = vpop.f32.mrb[0].mxu0
      %2610 = vmatprep.mubr.f32.mxu0 0.0
      %2611 = vmatmul.mubr.f32.gmra.mrb[0].mxu0 %v739
      %v2612 = vpop.f32.mrb[0].mxu0
      %v2613 = vadd.f32 0.0, %v2612
      %v2614 = vpop.f32.mrb[0].mxu0
      %2615 = vmatprep.mubr.f32.mxu0 0.0
      %2616 = vmatmul.mubr.f32.gmra.mrb[0].mxu0 %v741
      %v2617 = vpop.f32.mrb[0].mxu0
      %v2618 = vadd.f32 0.0, %v2617
      %v2619 = vpop.f32.mrb[0].mxu0
      %2620 = vmatprep.mubr.f32.mxu0 0.0
      %2621 = vmatmul.mubr.f32.gmra.mrb[0].mxu0 %v743
      %v2622 = vpop.f32.mrb[0].mxu0
      %v2623 = vadd.f32 0.0, %v2622
      %v2624 = vpop.f32.mrb[0].mxu0
      %2625 = vmatprep.mubr.f32.mxu0 0.0
      %2626 = vmatmul.mubr.f32.gmra.mrb[0].mxu0 %v745
      %v2627 = vpop.f32.mrb[0].mxu0
      %v2628 = vadd.f32 0.0, %v2627
      %v2629 = vpop.f32.mrb[0].mxu0
      %2630 = vmatprep.mubr.f32.mxu0 0.0
      %2631 = vmatmul.mubr.f32.gmra.mrb[0].mxu0 %v747
      %v2632 = vpop.f32.mrb[0].mxu0
      %v2633 = vadd.f32 0.0, %v2632
      %v2634 = vpop.f32.mrb[0].mxu0
      %2635 = vmatprep.mubr.f32.mxu0 0.0
      %2636 = vmatmul.mubr.f32.gmra.mrb[0].mxu0 %v749
      %v2637 = vpop.f32.mrb[0].mxu0
      %v2638 = vadd.f32 0.0, %v2637
      %v2639 = vpop.f32.mrb[0].mxu0
      %2640 = vmatprep.mubr.f32.mxu0 0.0
      %2641 = vmatmul.mubr.f32.gmra.mrb[0].mxu0 %v751
      %v2642 = vpop.f32.mrb[0].mxu0
      %v2643 = vadd.f32 0.0, %v2642
      %v2644 = vpop.f32.mrb[0].mxu0
      %2645 = vmatprep.mubr.f32.mxu0 0.0
      %2646 = vmatmul.mubr.f32.gmra.mrb[0].mxu0 %v753
      %v2647 = vpop.f32.mrb[0].mxu0
      %v2648 = vadd.f32 0.0, %v2647
      %v2649 = vpop.f32.mrb[0].mxu0
      %2650 = vmatprep.mubr.f32.mxu0 0.0
      %2651 = vmatmul.mubr.f32.gmra.mrb[0].mxu0 %v755
      %v2652 = vpop.f32.mrb[0].mxu0
      %v2653 = vadd.f32 0.0, %v2652
      %v2654 = vpop.f32.mrb[0].mxu0
      %2655 = vmatprep.mubr.f32.mxu0 0.0
      %2656 = vmatmul.mubr.f32.gmra.mrb[0].mxu0 %v757
      %v2657 = vpop.f32.mrb[0].mxu0
      %v2658 = vadd.f32 0.0, %v2657
      %v2659 = vpop.f32.mrb[0].mxu0
      %2660 = vmatprep.mubr.f32.mxu0 0.0
      %2661 = vmatmul.mubr.f32.gmra.mrb[0].mxu0 %v759
      %v2662 = vpop.f32.mrb[0].mxu0
      %v2663 = vadd.f32 0.0, %v2662
      %v2664 = vpop.f32.mrb[0].mxu0
      %2665 = vmatprep.mubr.f32.mxu0 0.0
      %2666 = vmatmul.mubr.f32.gmra.mrb[0].mxu0 %v761
      %v2667 = vpop.f32.mrb[0].mxu0
      %v2668 = vadd.f32 0.0, %v2667
      %v2669 = vpop.f32.mrb[0].mxu0
      %2670 = vmatprep.mubr.f32.mxu0 0.0
      %2671 = vmatmul.mubr.f32.gmra.mrb[0].mxu0 %v763
      %v2672 = vpop.f32.mrb[0].mxu0
      %v2673 = vadd.f32 0.0, %v2672
      %v2674 = vpop.f32.mrb[0].mxu0
      %2675 = vmatprep.mubr.f32.mxu0 0.0
      %2676 = vmatmul.mubr.f32.gmra.mrb[0].mxu0 %v765
      %v2677 = vpop.f32.mrb[0].mxu0
      %v2678 = vadd.f32 0.0, %v2677
      %v2679 = vpop.f32.mrb[0].mxu0
      %2680 = vmatprep.mubr.f32.mxu0 0.0
      %2681 = vmatmul.mubr.f32.gmra.mrb[0].mxu0 %v767
      %v2682 = vpop.f32.mrb[0].mxu0
      %v2683 = vadd.f32 0.0, %v2682
      %v2684 = vpop.f32.mrb[0].mxu0
      %2685 = vmatprep.mubr.f32.mxu0 0.0
      %2686 = vmatmul.mubr.f32.gmra.mrb[0].mxu0 %v769
      %v2687 = vpop.f32.mrb[0].mxu0
      %v2688 = vadd.f32 0.0, %v2687
      %v2689 = vpop.f32.mrb[0].mxu0
      %2690 = vmatprep.mubr.f32.mxu0 0.0
      %2691 = vmatmul.mubr.f32.gmra.mrb[0].mxu0 %v771
      %v2692 = vpop.f32.mrb[0].mxu0
      %v2693 = vadd.f32 0.0, %v2692
      %v2694 = vpop.f32.mrb[0].mxu0
      %2695 = vmatprep.mubr.f32.mxu0 0.0
      %2696 = vmatmul.mubr.f32.gmra.mrb[0].mxu0 %v773
      %v2697 = vpop.f32.mrb[0].mxu0
      %v2698 = vadd.f32 0.0, %v2697
      %v2699 = vpop.f32.mrb[0].mxu0
      %2700 = vmatprep.mubr.f32.mxu0 0.0
      %2701 = vmatmul.mubr.f32.gmra.mrb[0].mxu0 %v775
      %v2702 = vpop.f32.mrb[0].mxu0
      %v2703 = vadd.f32 0.0, %v2702
      %v2704 = vpop.f32.mrb[0].mxu0
      %2705 = vmatprep.mubr.f32.mxu0 0.0
      %2706 = vmatmul.mubr.f32.gmra.mrb[0].mxu0 %v777
      %v2707 = vpop.f32.mrb[0].mxu0
      %v2708 = vadd.f32 0.0, %v2707
      %v2709 = vpop.f32.mrb[0].mxu0
      %2710 = vmatprep.mubr.f32.mxu0 0.0
      %2711 = vmatmul.mubr.f32.gmra.mrb[0].mxu0 %v779
      %v2712 = vpop.f32.mrb[0].mxu0
      %v2713 = vadd.f32 0.0, %v2712
      %v2714 = vpop.f32.mrb[0].mxu0
      %2715 = vmatprep.mubr.f32.mxu0 0.0
      %2716 = vmatmul.mubr.f32.gmra.mrb[0].mxu0 %v781
      %v2717 = vpop.f32.mrb[0].mxu0
      %v2718 = vadd.f32 0.0, %v2717
      %v2719 = vpop.f32.mrb[0].mxu0
      %2720 = vmatprep.mubr.f32.mxu0 0.0
      %2721 = vmatmul.mubr.f32.gmra.mrb[0].mxu0 %v783
      %v2722 = vpop.f32.mrb[0].mxu0
      %v2723 = vadd.f32 0.0, %v2722
      %v2724 = vpop.f32.mrb[0].mxu0
      %2725 = vmatprep.mubr.f32.mxu0 0.0
      %2726 = vmatmul.mubr.f32.gmra.mrb[0].mxu0 %v785
      %v2727 = vpop.f32.mrb[0].mxu0
      %v2728 = vadd.f32 0.0, %v2727
      %v2729 = vpop.f32.mrb[0].mxu0
      %2730 = vmatprep.mubr.f32.mxu0 0.0
      %2731 = vmatmul.mubr.f32.gmra.mrb[0].mxu0 %v787
      %v2732 = vpop.f32.mrb[0].mxu0
      %v2733 = vadd.f32 0.0, %v2732
      %v2734 = vpop.f32.mrb[0].mxu0
      %2735 = vmatprep.mubr.f32.mxu0 0.0
      %2736 = vmatmul.mubr.f32.gmra.mrb[0].mxu0 %v789
      %v2737 = vpop.f32.mrb[0].mxu0
      %v2738 = vadd.f32 0.0, %v2737
      %v2739 = vpop.f32.mrb[0].mxu0
      %2740 = vmatprep.mubr.f32.mxu0 0.0
      %2741 = vmatmul.mubr.f32.gmra.mrb[0].mxu0 %v791
      %v2742 = vpop.f32.mrb[0].mxu0
      %v2743 = vadd.f32 0.0, %v2742
      %v2744 = vpop.f32.mrb[0].mxu0
      %2745 = vmatprep.mubr.f32.mxu0 0.0
      %2746 = vmatmul.mubr.f32.gmra.mrb[0].mxu0 %v1729
      %v2747 = vpop.f32.mrb[0].mxu0
      %v2748 = vadd.f32 0.0, %v2747
      %v2749 = vpop.f32.mrb[0].mxu0
      %2750 = vmatprep.mubr.f32.mxu0 0.0
      %2751 = vmatmul.mubr.f32.gmra.mrb[0].mxu0 %v1731
      %v2752 = vpop.f32.mrb[0].mxu0
      %v2753 = vadd.f32 0.0, %v2752
      %v2754 = vpop.f32.mrb[0].mxu0
      %2755 = vmatprep.mubr.f32.mxu0 0.0
      %2756 = vmatmul.mubr.f32.gmra.mrb[0].mxu0 %v2535
      %v2757 = vpop.f32.mrb[0].mxu0
      %v2758 = vadd.f32 0.0, %v2757
      %v2759 = vpop.f32.mrb[0].mxu0
      %2760 = vmatprep.mubr.f32.mxu0 0.0
      %2761 = vmatmul.mubr.f32.gmra.mrb[0].mxu0 %v2537
      %v2762 = vpop.f32.mrb[0].mxu0
      %v2763 = vadd.f32 0.0, %v2762
      %v2764 = vpop.f32.mrb[0].mxu0
      %2765 = vdwg.mxu0
      %v2766 = vadd.f32 %v2496, %v2608
      %v2767 = vadd.f32 %v2497, %v2613
      %v2768 = vadd.f32 %v2498, %v2618
      %v2769 = vadd.f32 %v2499, %v2623
      %v2770 = vadd.f32 %v2500, %v2628
      %v2771 = vadd.f32 %v2501, %v2633
      %v2772 = vadd.f32 %v2502, %v2638
      %v2773 = vadd.f32 %v2503, %v2643
      %v2774 = vadd.f32 %v2504, %v2648
      %v2775 = vadd.f32 %v2505, %v2653
      %v2776 = vadd.f32 %v2506, %v2658
      %v2777 = vadd.f32 %v2507, %v2663
      %v2778 = vadd.f32 %v2508, %v2668
      %v2779 = vadd.f32 %v2509, %v2673
      %v2780 = vadd.f32 %v2510, %v2678
      %v2781 = vadd.f32 %v2511, %v2683
      %v2782 = vadd.f32 %v2512, %v2688
      %v2783 = vadd.f32 %v2513, %v2693
      %v2784 = vadd.f32 %v2514, %v2698
      %v2785 = vadd.f32 %v2515, %v2703
      %v2786 = vadd.f32 %v2516, %v2708
      %v2787 = vadd.f32 %v2517, %v2713
      %v2788 = vadd.f32 %v2518, %v2718
      %v2789 = vadd.f32 %v2519, %v2723
      %v2790 = vadd.f32 %v2520, %v2728
      %v2791 = vadd.f32 %v2521, %v2733
      %v2792 = vadd.f32 %v2522, %v2738
      %v2793 = vadd.f32 %v2523, %v2743
      %v2794 = vadd.f32 %v2524, %v2748
      %v2795 = vadd.f32 %v2525, %v2753
      %v2796 = vadd.f32 %v2526, %v2758
      %v2797 = vadd.f32 %v2527, %v2763
      %v2798 = vrot.slane %v258, 2
      %v2799 = vrot.slane %v259, 2
      %v2800 = vsel %vm1052, %v2798, %v2799
      %v2801 = vrot.slane %v260, 2
      %v2802 = vsel %vm1052, %v2799, %v2801
      %v2803 = vsel %vm273, %v2800, 0
      %v2805 = vsel %vm273, %v2802, 0
      %v2808 = vsel %vm370, %v265, 0
      %2810 = vmatprep.subr.mxu0 0.0
      %2811 = vmatpush1.msra.mxu0 %v2808
      %2812 = vmatprep.subr.mxu0 0.0
      %2813 = vmatpush1.msra.mxu0 0.0
      %2814 = vmatprep.subr.mxu0 0.0
      %2815 = vmatpush1.msra.mxu0 0.0
      %2816 = vmatprep.subr.mxu0 0.0
      %2817 = vmatpush1.msra.mxu0 0.0
      %2818 = vmatprep.subr.mxu0 0.0
      %2819 = vmatpush1.msra.mxu0 0.0
      %2820 = vmatprep.subr.mxu0 0.0
      %2821 = vmatpush1.msra.mxu0 0.0
      %2822 = vmatprep.subr.mxu0 0.0
      %2823 = vmatpush1.msra.mxu0 0.0
      %2824 = vmatprep.subr.mxu0 0.0
      %2825 = vmatpush1.msra.mxu0 0.0
      %2826 = vmatprep.subr.mxu0 0.0
      %2827 = vmatpush1.msra.mxu0 0.0
      %2828 = vmatprep.subr.mxu0 0.0
      %2829 = vmatpush1.msra.mxu0 0.0
      %2830 = vmatprep.subr.mxu0 0.0
      %2831 = vmatpush1.msra.mxu0 0.0
      %2832 = vmatprep.subr.mxu0 0.0
      %2833 = vmatpush1.msra.mxu0 0.0
      %2834 = vmatprep.subr.mxu0 0.0
      %2835 = vmatpush1.msra.mxu0 0.0
      %2836 = vmatprep.subr.mxu0 0.0
      %2837 = vmatpush1.msra.mxu0 0.0
      %2838 = vmatprep.subr.mxu0 0.0
      %2839 = vmatpush1.msra.mxu0 0.0
      %2840 = vmatprep.subr.mxu0 0.0
      %2841 = vmatpush1.msra.mxu0 0.0
      %2842 = vmatprep.subr.mxu0 0.0
      %2843 = vmatpush1.msra.mxu0 0.0
      %2844 = vmatprep.subr.mxu0 0.0
      %2845 = vmatpush1.msra.mxu0 0.0
      %2846 = vmatprep.subr.mxu0 0.0
      %2847 = vmatpush1.msra.mxu0 0.0
      %2848 = vmatprep.subr.mxu0 0.0
      %2849 = vmatpush1.msra.mxu0 0.0
      %2850 = vmatprep.subr.mxu0 0.0
      %2851 = vmatpush1.msra.mxu0 0.0
      %2852 = vmatprep.subr.mxu0 0.0
      %2853 = vmatpush1.msra.mxu0 0.0
      %2854 = vmatprep.subr.mxu0 0.0
      %2855 = vmatpush1.msra.mxu0 0.0
      %2856 = vmatprep.subr.mxu0 0.0
      %2857 = vmatpush1.msra.mxu0 0.0
      %2858 = vmatprep.subr.mxu0 0.0
      %2859 = vmatpush1.msra.mxu0 0.0
      %2860 = vmatprep.subr.mxu0 0.0
      %2861 = vmatpush1.msra.mxu0 0.0
      %2862 = vmatprep.subr.mxu0 0.0
      %2863 = vmatpush1.msra.mxu0 0.0
      %2864 = vmatprep.subr.mxu0 0.0
      %2865 = vmatpush1.msra.mxu0 0.0
      %2866 = vmatprep.subr.mxu0 0.0
      %2867 = vmatpush1.msra.mxu0 0.0
      %2868 = vmatprep.subr.mxu0 0.0
      %2869 = vmatpush1.msra.mxu0 0.0
      %2870 = vmatprep.subr.mxu0 0.0
      %2871 = vmatpush1.msra.mxu0 0.0
      %2872 = vmatprep.subr.mxu0 0.0
      %2873 = vmatpush1.msra.mxu0 0.0
      %2874 = vmatprep.mubr.f32.mxu0 0.0
      %2875 = vmatmul.mubr.f32.gmra.mrb[0].mxu0 %v1141
      %v2876 = vpop.f32.mrb[0].mxu0
      %v2877 = vadd.f32 0.0, %v2876
      %v2878 = vpop.f32.mrb[0].mxu0
      %2879 = vmatprep.mubr.f32.mxu0 0.0
      %2880 = vmatmul.mubr.f32.gmra.mrb[0].mxu0 %v1143
      %v2881 = vpop.f32.mrb[0].mxu0
      %v2882 = vadd.f32 0.0, %v2881
      %v2883 = vpop.f32.mrb[0].mxu0
      %2884 = vmatprep.mubr.f32.mxu0 0.0
      %2885 = vmatmul.mubr.f32.gmra.mrb[0].mxu0 %v1145
      %v2886 = vpop.f32.mrb[0].mxu0
      %v2887 = vadd.f32 0.0, %v2886
      %v2888 = vpop.f32.mrb[0].mxu0
      %2889 = vmatprep.mubr.f32.mxu0 0.0
      %2890 = vmatmul.mubr.f32.gmra.mrb[0].mxu0 %v1147
      %v2891 = vpop.f32.mrb[0].mxu0
      %v2892 = vadd.f32 0.0, %v2891
      %v2893 = vpop.f32.mrb[0].mxu0
      %2894 = vmatprep.mubr.f32.mxu0 0.0
      %2895 = vmatmul.mubr.f32.gmra.mrb[0].mxu0 %v1149
      %v2896 = vpop.f32.mrb[0].mxu0
      %v2897 = vadd.f32 0.0, %v2896
      %v2898 = vpop.f32.mrb[0].mxu0
      %2899 = vmatprep.mubr.f32.mxu0 0.0
      %2900 = vmatmul.mubr.f32.gmra.mrb[0].mxu0 %v1151
      %v2901 = vpop.f32.mrb[0].mxu0
      %v2902 = vadd.f32 0.0, %v2901
      %v2903 = vpop.f32.mrb[0].mxu0
      %2904 = vmatprep.mubr.f32.mxu0 0.0
      %2905 = vmatmul.mubr.f32.gmra.mrb[0].mxu0 %v1153
      %v2906 = vpop.f32.mrb[0].mxu0
      %v2907 = vadd.f32 0.0, %v2906
      %v2908 = vpop.f32.mrb[0].mxu0
      %2909 = vmatprep.mubr.f32.mxu0 0.0
      %2910 = vmatmul.mubr.f32.gmra.mrb[0].mxu0 %v1155
      %v2911 = vpop.f32.mrb[0].mxu0
      %v2912 = vadd.f32 0.0, %v2911
      %v2913 = vpop.f32.mrb[0].mxu0
      %2914 = vmatprep.mubr.f32.mxu0 0.0
      %2915 = vmatmul.mubr.f32.gmra.mrb[0].mxu0 %v1157
      %v2916 = vpop.f32.mrb[0].mxu0
      %v2917 = vadd.f32 0.0, %v2916
      %v2918 = vpop.f32.mrb[0].mxu0
      %2919 = vmatprep.mubr.f32.mxu0 0.0
      %2920 = vmatmul.mubr.f32.gmra.mrb[0].mxu0 %v1159
      %v2921 = vpop.f32.mrb[0].mxu0
      %v2922 = vadd.f32 0.0, %v2921
      %v2923 = vpop.f32.mrb[0].mxu0
      %2924 = vmatprep.mubr.f32.mxu0 0.0
      %2925 = vmatmul.mubr.f32.gmra.mrb[0].mxu0 %v1161
      %v2926 = vpop.f32.mrb[0].mxu0
      %v2927 = vadd.f32 0.0, %v2926
      %v2928 = vpop.f32.mrb[0].mxu0
      %2929 = vmatprep.mubr.f32.mxu0 0.0
      %2930 = vmatmul.mubr.f32.gmra.mrb[0].mxu0 %v1163
      %v2931 = vpop.f32.mrb[0].mxu0
      %v2932 = vadd.f32 0.0, %v2931
      %v2933 = vpop.f32.mrb[0].mxu0
      %2934 = vmatprep.mubr.f32.mxu0 0.0
      %2935 = vmatmul.mubr.f32.gmra.mrb[0].mxu0 %v1165
      %v2936 = vpop.f32.mrb[0].mxu0
      %v2937 = vadd.f32 0.0, %v2936
      %v2938 = vpop.f32.mrb[0].mxu0
      %2939 = vmatprep.mubr.f32.mxu0 0.0
      %2940 = vmatmul.mubr.f32.gmra.mrb[0].mxu0 %v1167
      %v2941 = vpop.f32.mrb[0].mxu0
      %v2942 = vadd.f32 0.0, %v2941
      %v2943 = vpop.f32.mrb[0].mxu0
      %2944 = vmatprep.mubr.f32.mxu0 0.0
      %2945 = vmatmul.mubr.f32.gmra.mrb[0].mxu0 %v1169
      %v2946 = vpop.f32.mrb[0].mxu0
      %v2947 = vadd.f32 0.0, %v2946
      %v2948 = vpop.f32.mrb[0].mxu0
      %2949 = vmatprep.mubr.f32.mxu0 0.0
      %2950 = vmatmul.mubr.f32.gmra.mrb[0].mxu0 %v1171
      %v2951 = vpop.f32.mrb[0].mxu0
      %v2952 = vadd.f32 0.0, %v2951
      %v2953 = vpop.f32.mrb[0].mxu0
      %2954 = vmatprep.mubr.f32.mxu0 0.0
      %2955 = vmatmul.mubr.f32.gmra.mrb[0].mxu0 %v1173
      %v2956 = vpop.f32.mrb[0].mxu0
      %v2957 = vadd.f32 0.0, %v2956
      %v2958 = vpop.f32.mrb[0].mxu0
      %2959 = vmatprep.mubr.f32.mxu0 0.0
      %2960 = vmatmul.mubr.f32.gmra.mrb[0].mxu0 %v1175
      %v2961 = vpop.f32.mrb[0].mxu0
      %v2962 = vadd.f32 0.0, %v2961
      %v2963 = vpop.f32.mrb[0].mxu0
      %2964 = vmatprep.mubr.f32.mxu0 0.0
      %2965 = vmatmul.mubr.f32.gmra.mrb[0].mxu0 %v1177
      %v2966 = vpop.f32.mrb[0].mxu0
      %v2967 = vadd.f32 0.0, %v2966
      %v2968 = vpop.f32.mrb[0].mxu0
      %2969 = vmatprep.mubr.f32.mxu0 0.0
      %2970 = vmatmul.mubr.f32.gmra.mrb[0].mxu0 %v1179
      %v2971 = vpop.f32.mrb[0].mxu0
      %v2972 = vadd.f32 0.0, %v2971
      %v2973 = vpop.f32.mrb[0].mxu0
      %2974 = vmatprep.mubr.f32.mxu0 0.0
      %2975 = vmatmul.mubr.f32.gmra.mrb[0].mxu0 %v1181
      %v2976 = vpop.f32.mrb[0].mxu0
      %v2977 = vadd.f32 0.0, %v2976
      %v2978 = vpop.f32.mrb[0].mxu0
      %2979 = vmatprep.mubr.f32.mxu0 0.0
      %2980 = vmatmul.mubr.f32.gmra.mrb[0].mxu0 %v1183
      %v2981 = vpop.f32.mrb[0].mxu0
      %v2982 = vadd.f32 0.0, %v2981
      %v2983 = vpop.f32.mrb[0].mxu0
      %2984 = vmatprep.mubr.f32.mxu0 0.0
      %2985 = vmatmul.mubr.f32.gmra.mrb[0].mxu0 %v1185
      %v2986 = vpop.f32.mrb[0].mxu0
      %v2987 = vadd.f32 0.0, %v2986
      %v2988 = vpop.f32.mrb[0].mxu0
      %2989 = vmatprep.mubr.f32.mxu0 0.0
      %2990 = vmatmul.mubr.f32.gmra.mrb[0].mxu0 %v1187
      %v2991 = vpop.f32.mrb[0].mxu0
      %v2992 = vadd.f32 0.0, %v2991
      %v2993 = vpop.f32.mrb[0].mxu0
      %2994 = vmatprep.mubr.f32.mxu0 0.0
      %2995 = vmatmul.mubr.f32.gmra.mrb[0].mxu0 %v1189
      %v2996 = vpop.f32.mrb[0].mxu0
      %v2997 = vadd.f32 0.0, %v2996
      %v2998 = vpop.f32.mrb[0].mxu0
      %2999 = vmatprep.mubr.f32.mxu0 0.0
      %3000 = vmatmul.mubr.f32.gmra.mrb[0].mxu0 %v1191
      %v3001 = vpop.f32.mrb[0].mxu0
      %v3002 = vadd.f32 0.0, %v3001
      %v3003 = vpop.f32.mrb[0].mxu0
      %3004 = vmatprep.mubr.f32.mxu0 0.0
      %3005 = vmatmul.mubr.f32.gmra.mrb[0].mxu0 %v1193
      %v3006 = vpop.f32.mrb[0].mxu0
      %v3007 = vadd.f32 0.0, %v3006
      %v3008 = vpop.f32.mrb[0].mxu0
      %3009 = vmatprep.mubr.f32.mxu0 0.0
      %3010 = vmatmul.mubr.f32.gmra.mrb[0].mxu0 %v1195
      %v3011 = vpop.f32.mrb[0].mxu0
      %v3012 = vadd.f32 0.0, %v3011
      %v3013 = vpop.f32.mrb[0].mxu0
      %3014 = vmatprep.mubr.f32.mxu0 0.0
      %3015 = vmatmul.mubr.f32.gmra.mrb[0].mxu0 %v1999
      %v3016 = vpop.f32.mrb[0].mxu0
      %v3017 = vadd.f32 0.0, %v3016
      %v3018 = vpop.f32.mrb[0].mxu0
      %3019 = vmatprep.mubr.f32.mxu0 0.0
      %3020 = vmatmul.mubr.f32.gmra.mrb[0].mxu0 %v2001
      %v3021 = vpop.f32.mrb[0].mxu0
      %v3022 = vadd.f32 0.0, %v3021
      %v3023 = vpop.f32.mrb[0].mxu0
      %3024 = vmatprep.mubr.f32.mxu0 0.0
      %3025 = vmatmul.mubr.f32.gmra.mrb[0].mxu0 %v2803
      %v3026 = vpop.f32.mrb[0].mxu0
      %v3027 = vadd.f32 0.0, %v3026
      %v3028 = vpop.f32.mrb[0].mxu0
      %3029 = vmatprep.mubr.f32.mxu0 0.0
      %3030 = vmatmul.mubr.f32.gmra.mrb[0].mxu0 %v2805
      %v3031 = vpop.f32.mrb[0].mxu0
      %v3032 = vadd.f32 0.0, %v3031
      %v3033 = vpop.f32.mrb[0].mxu0
      %3034 = vdwg.mxu0
      %v3035 = vadd.f32 %v2766, %v2877
      %v3036 = vadd.f32 %v2767, %v2882
      %v3037 = vadd.f32 %v2768, %v2887
      %v3038 = vadd.f32 %v2769, %v2892
      %v3039 = vadd.f32 %v2770, %v2897
      %v3040 = vadd.f32 %v2771, %v2902
      %v3041 = vadd.f32 %v2772, %v2907
      %v3042 = vadd.f32 %v2773, %v2912
      %v3043 = vadd.f32 %v2774, %v2917
      %v3044 = vadd.f32 %v2775, %v2922
      %v3045 = vadd.f32 %v2776, %v2927
      %v3046 = vadd.f32 %v2777, %v2932
      %v3047 = vadd.f32 %v2778, %v2937
      %v3048 = vadd.f32 %v2779, %v2942
      %v3049 = vadd.f32 %v2780, %v2947
      %v3050 = vadd.f32 %v2781, %v2952
      %v3051 = vadd.f32 %v2782, %v2957
      %v3052 = vadd.f32 %v2783, %v2962
      %v3053 = vadd.f32 %v2784, %v2967
      %v3054 = vadd.f32 %v2785, %v2972
      %v3055 = vadd.f32 %v2786, %v2977
      %v3056 = vadd.f32 %v2787, %v2982
      %v3057 = vadd.f32 %v2788, %v2987
      %v3058 = vadd.f32 %v2789, %v2992
      %v3059 = vadd.f32 %v2790, %v2997
      %v3060 = vadd.f32 %v2791, %v3002
      %v3061 = vadd.f32 %v2792, %v3007
      %v3062 = vadd.f32 %v2793, %v3012
      %v3063 = vadd.f32 %v2794, %v3017
      %v3064 = vadd.f32 %v2795, %v3022
      %v3065 = vadd.f32 %v2796, %v3027
      %v3066 = vadd.f32 %v2797, %v3032
      %vm3067 = vcmask 64512
      %3068 = vst.msk [vmem:[%s206] sm:$0xff] %vm3067, %v3035
      %3069 = vst.msk [vmem:[%s206 + $0x8] sm:$0xff] %vm3067, %v3036
      %3070 = vst.msk [vmem:[%s206 + $0x10] sm:$0xff] %vm3067, %v3037
      %3071 = vst.msk [vmem:[%s206 + $0x18] sm:$0xff] %vm3067, %v3038
      %3072 = vst.msk [vmem:[%s206 + $0x20] sm:$0xff] %vm3067, %v3039
      %3073 = vst.msk [vmem:[%s206 + $0x28] sm:$0xff] %vm3067, %v3040
      %3074 = vst.msk [vmem:[%s206 + $0x30] sm:$0xff] %vm3067, %v3041
      %3075 = vst.msk [vmem:[%s206 + $0x38] sm:$0xff] %vm3067, %v3042
      %3076 = vst.msk [vmem:[%s206 + $0x40] sm:$0xff] %vm3067, %v3043
      %3077 = vst.msk [vmem:[%s206 + $0x48] sm:$0xff] %vm3067, %v3044
      %3078 = vst.msk [vmem:[%s206 + $0x50] sm:$0xff] %vm3067, %v3045
      %3079 = vst.msk [vmem:[%s206 + $0x58] sm:$0xff] %vm3067, %v3046
      %3080 = vst.msk [vmem:[%s206 + $0x60] sm:$0xff] %vm3067, %v3047
      %3081 = vst.msk [vmem:[%s206 + $0x68] sm:$0xff] %vm3067, %v3048
      %3082 = vst.msk [vmem:[%s206 + $0x70] sm:$0xff] %vm3067, %v3049
      %3083 = vst.msk [vmem:[%s206 + $0x78] sm:$0xff] %vm3067, %v3050
      %3084 = vst.msk [vmem:[%s206 + $0x80] sm:$0xff] %vm3067, %v3051
      %3085 = vst.msk [vmem:[%s206 + $0x88] sm:$0xff] %vm3067, %v3052
      %3086 = vst.msk [vmem:[%s206 + $0x90] sm:$0xff] %vm3067, %v3053
      %3087 = vst.msk [vmem:[%s206 + $0x98] sm:$0xff] %vm3067, %v3054
      %3088 = vst.msk [vmem:[%s206 + $0xa0] sm:$0xff] %vm3067, %v3055
      %3089 = vst.msk [vmem:[%s206 + $0xa8] sm:$0xff] %vm3067, %v3056
      %3090 = vst.msk [vmem:[%s206 + $0xb0] sm:$0xff] %vm3067, %v3057
      %3091 = vst.msk [vmem:[%s206 + $0xb8] sm:$0xff] %vm3067, %v3058
      %3092 = vst.msk [vmem:[%s206 + $0xc0] sm:$0xff] %vm3067, %v3059
      %3093 = vst.msk [vmem:[%s206 + $0xc8] sm:$0xff] %vm3067, %v3060
      %3094 = vst.msk [vmem:[%s206 + $0xd0] sm:$0xff] %vm3067, %v3061
      %3095 = vst.msk [vmem:[%s206 + $0xd8] sm:$0xff] %vm3067, %v3062
      %3096 = vst.msk [vmem:[%s206 + $0xe0] sm:$0xff] %vm3067, %v3063
      %3097 = vst.msk [vmem:[%s206 + $0xe8] sm:$0xff] %vm3067, %v3064
      %3098 = vst.msk [vmem:[%s206 + $0xf0] sm:$0xff] %vm3067, %v3065
      %3099 = vst.msk [vmem:[%s206 + $0xf8] sm:$0xff] %vm3067, %v3066
      %p3100 = scmp.lt.s32.totalorder %s18, 1
      %s3101 = scalar_select %p3100, %s18, 1
      %p3102 = scmp.lt.s32.totalorder %s19, 0
      %s3103 = scalar_select %p3102, %s19, 0
      %s3104 = smul.addr %s3103, 32
      %s3105 = smul.addr %s3101, 32
      %s3106 = sadd.s32 %s3104, %s3105
      %s3107 = smul.addr %s3106, 8
      %s3108 = scalar_lea.vmem %s3, %s3107
      // Predicated region
      $region33: #{csdn_tem_forward.1} parent=31 // pred_check
        %p3109 = pneg %p116
      $region34: #{csdn_tem_forward.1} parent=31 // pred_check_branch
        %3111 = sbr.rel (%p3109) target = $region36
      $region35: #{csdn_tem_forward.1} parent=31 // pred_region
        _
      $region36: #{csdn_tem_forward.1} parent=31 // pred_fallthru
        _
    $region32: #{csdn_tem_forward.1} parent=5 // pred_fallthru
      _
    %p3112 = scmp.le.s32.totalorder 2, %s9
    // Predicated region
    $region37: #{csdn_tem_forward.1} parent=5 // pred_check
      %p3113 = pneg %p3112
    $region38: #{csdn_tem_forward.1} parent=5 // pred_check_branch
      %3115 = sbr.rel (%p3113) target = $region40
    $region39: #{csdn_tem_forward.1} parent=5 // pred_region
      %s3116 = ssub.s32 %s9, 2
      // Predicated region
      $region41: #{csdn_tem_forward.1} parent=39 // pred_check
        %p3117 = pneg %p122
      $region42: #{csdn_tem_forward.1} parent=39 // pred_check_branch
        %3119 = sbr.rel (%p3117) target = $region44
      $region43: #{csdn_tem_forward.1} parent=39 // pred_region
        %p3120 = scmp.lt.s32.totalorder %s20, 1
        %s3121 = scalar_select %p3120, %s20, 1
        %p3122 = scmp.lt.s32.totalorder %s21, 0
        %s3123 = scalar_select %p3122, %s21, 0
        %s3124 = smul.addr %s3123, 32
        %s3125 = smul.addr %s3121, 32
        %s3126 = sadd.s32 %s3124, %s3125
        %s3127 = smul.addr %s3126, 8
        %s3128 = scalar_lea.vmem %s3, %s3127
      $region44: #{csdn_tem_forward.1} parent=39 // pred_fallthru
        _
    $region40: #{csdn_tem_forward.1} parent=5 // pred_fallthru
      _
  $region6: #{csdn_tem_forward.1} parent=0 // loop_footer
    %s13 = sadd.s32 1, %s9
  $region7: #{csdn_tem_forward.1} parent=0 // loop_footer_branch
    %8 = sbr.rel target = $region3
  $region8: #{csdn_tem_forward.1} parent=0 // loop_exit
    _

</llo_original>
